<compile_context>
chip_gen: v7x
topology: tpu7x:2x2x1
jax: 0.10.0
libtpu: 0.0.40
codegen_flags: <defaults>
</compile_context>

<pallas_src>
import numpy as np

import jax
import jax.numpy as jnp
from jax import lax
from jax.experimental import pallas as pl
from jax.experimental.pallas import tpu as pltpu


# --------------------------------------------------------------------------- #
# helpers
# --------------------------------------------------------------------------- #
def _rup(x, m):
    return ((x + m - 1) // m) * m


# --------------------------------------------------------------------------- #
# Pallas kernels (one fused kernel per layer)
# --------------------------------------------------------------------------- #
def _conv_bn_lrelu_kernel(a_ref, b_ref, g_ref, bt_ref, p_ref, o_ref):
    """y = leaky_relu(batchnorm(A @ B), 0.05), batch stats computed in-kernel.

    a: [M, K] bf16 (im2col), b: [K, Np] bf16, g/bt: [1, Np] f32 (padded
    gamma/beta), p: [Np, Np] f32 constant grouping matrix that maps per-column
    sums to per-real-channel means (includes the 1/count factor and the
    sub-pixel phase aggregation for the transposed-conv layers).
    """
    y = jnp.dot(a_ref[...], b_ref[...], preferred_element_type=jnp.float32)

    s = jnp.sum(y, axis=0, keepdims=True)                  # (1, Np)
    ss = jnp.sum(y * y, axis=0, keepdims=True)             # (1, Np)
    mean = jnp.dot(s, p_ref[...], preferred_element_type=jnp.float32)
    ex2 = jnp.dot(ss, p_ref[...], preferred_element_type=jnp.float32)
    var = jnp.maximum(ex2 - mean * mean, 0.0)              # biased var (train mode)

    scale = g_ref[...] * lax.rsqrt(var + 1e-5)
    shift = bt_ref[...] - mean * scale
    y = y * scale + shift
    y = jnp.where(y >= 0.0, y, 0.05 * y)                   # LeakyReLU(0.05)
    o_ref[...] = y.astype(o_ref.dtype)


def _conv_tanh_kernel(a_ref, b_ref, o_ref):
    """y = tanh(A @ B) (last layer, no BatchNorm)."""
    y = jnp.dot(a_ref[...], b_ref[...], preferred_element_type=jnp.float32)
    o_ref[...] = jnp.tanh(y).astype(o_ref.dtype)


# --------------------------------------------------------------------------- #
# Pallas wrappers (whole operands resident in VMEM; everything here is tiny)
# --------------------------------------------------------------------------- #
def _fused_conv_bn_lrelu(a, b, g_p, b_p, p_mat):
    M, K = a.shape
    Np = b.shape[1]
    return pl.pallas_call(
        _conv_bn_lrelu_kernel,
        out_shape=jax.ShapeDtypeStruct((M, Np), jnp.bfloat16),
        grid=(1,),
        in_specs=[
            pl.BlockSpec((M, K), lambda i: (0, 0)),
            pl.BlockSpec((K, Np), lambda i: (0, 0)),
            pl.BlockSpec((1, Np), lambda i: (0, 0)),
            pl.BlockSpec((1, Np), lambda i: (0, 0)),
            pl.BlockSpec((Np, Np), lambda i: (0, 0)),
        ],
        out_specs=pl.BlockSpec((M, Np), lambda i: (0, 0)),
        compiler_params=pltpu.CompilerParams(
            dimension_semantics=("arbitrary",),
        ),
    )(a, b, g_p, b_p, p_mat)


def _fused_conv_tanh(a, b):
    M, K = a.shape
    Np = b.shape[1]
    return pl.pallas_call(
        _conv_tanh_kernel,
        out_shape=jax.ShapeDtypeStruct((M, Np), jnp.bfloat16),
        grid=(1,),
        in_specs=[
            pl.BlockSpec((M, K), lambda i: (0, 0)),
            pl.BlockSpec((K, Np), lambda i: (0, 0)),
        ],
        out_specs=pl.BlockSpec((M, Np), lambda i: (0, 0)),
        compiler_params=pltpu.CompilerParams(
            dimension_semantics=("arbitrary",),
        ),
    )(a, b)


# --------------------------------------------------------------------------- #
# layer glue (im2col / pixel shuffle in plain JAX; heavy work in Pallas)
# --------------------------------------------------------------------------- #
def im2col(x, kh, kw, stride, pad):
    """x: NHWC bf16 -> ([N*Ho*Wo, kh*kw*C] bf16, (N, Ho, Wo))."""
    if pad:
        x = jnp.pad(x, ((0, 0), (pad, pad), (pad, pad), (0, 0)))
    N, H, W, C = x.shape
    Ho = (H - kh) // stride + 1
    Wo = (W - kw) // stride + 1
    cols = [
        x[:, a : a + stride * (Ho - 1) + 1 : stride,
             b : b + stride * (Wo - 1) + 1 : stride, :]
        for a in range(kh) for b in range(kw)
    ]
    a_mat = jnp.concatenate(cols, axis=-1).reshape(N * Ho * Wo, kh * kw * C)
    return a_mat, (N, Ho, Wo)


def _pixel_shuffle2(y, N, H, W, cout):
    """y: [N*H*W, 4*cout], columns ordered (phase_y, phase_x, c) -> NHWC, 2x up."""
    y = y.reshape(N, H, W, 2, 2, cout)
    return jnp.transpose(y, (0, 1, 3, 2, 4, 5)).reshape(N, 2 * H, 2 * W, cout)


def _bn_group_matrix(Np, cout, phases, count):
    """Constant [Np, Np] matrix: (row-sums) @ P = per-column mean, aggregating
    the `phases` sub-pixel phase columns of each real channel. Built with
    numpy at trace time so it is a compile-time constant."""
    idx = np.arange(Np)
    grp = (idx[:, None] % cout) == (idx[None, :] % cout)
    valid = (idx[:, None] < phases * cout) & (idx[None, :] < phases * cout)
    return jnp.asarray((grp & valid).astype(np.float32) / float(count))


def conv_bn_lrelu(x, w_mat, g_p, b_p, cout, kh, kw, stride, pad):
    a, (N, Ho, Wo) = im2col(x, kh, kw, stride, pad)
    M = N * Ho * Wo
    Np = w_mat.shape[1]
    p_mat = _bn_group_matrix(Np, cout, 1, M)
    y = _fused_conv_bn_lrelu(a, w_mat, g_p, b_p, p_mat)   # (M, Np), pad cols stay 0
    return y.reshape(N, Ho, Wo, Np)


def deconv_bn_lrelu(x, w_mat, g_p, b_p, cout):
    """ConvTranspose2d(k4,s2,p1)+BN+LeakyReLU via equivalent 3x3 conv + shuffle."""
    a, (N, H, W) = im2col(x, 3, 3, 1, 1)
    M = N * H * W
    Np = w_mat.shape[1]
    p_mat = _bn_group_matrix(Np, cout, 4, 4 * M)          # stats over all 4 phases
    y = _fused_conv_bn_lrelu(a, w_mat, g_p, b_p, p_mat)   # (M, Np)
    return _pixel_shuffle2(y[:, : 4 * cout], N, H, W, cout)


def deconv_tanh(x, w_mat, cout):
    """ConvTranspose2d(k4,s2,p1)+tanh; tanh fused in the matmul epilogue."""
    a, (N, H, W) = im2col(x, 3, 3, 1, 1)
    y = _fused_conv_tanh(a, w_mat)                        # (M, 128)
    return _pixel_shuffle2(y[:, : 4 * cout], N, H, W, cout)


# --------------------------------------------------------------------------- #
# parameter packing (once at init: weights -> lane-dense bf16 matmul matrices)
# --------------------------------------------------------------------------- #
def _conv_weight_to_mat(w, cin_pad, cout_pad):
    """w: [Cout, Cin, KH, KW] f32 (PyTorch Conv2d) -> [KH*KW*cin_pad, cout_pad] bf16."""
    Cout, Cin, KH, KW = w.shape
    m = jnp.transpose(w, (2, 3, 1, 0))                    # (KH, KW, Cin, Cout)
    m = jnp.pad(m, ((0, 0), (0, 0), (0, cin_pad - Cin), (0, cout_pad - Cout)))
    return m.reshape(KH * KW * cin_pad, cout_pad).astype(jnp.bfloat16)


def _deconv_weight_to_mat(w, cout_pad):
    """w: [Cin, Cout, 4, 4] f32 (PyTorch ConvTranspose2d, k4 s2 p1) ->
    equivalent 3x3-conv matmul matrix [9*Cin, cout_pad] bf16 whose 4*Cout
    output columns are the (phase_y, phase_x, c) sub-pixel phases."""
    Cin, Cout = w.shape[0], w.shape[1]
    # window-tap -> transposed-kernel-index, per phase (from oh = 2*ih - 1 + kh):
    # even phase uses kh {3,1} at taps {0,1}; odd phase uses kh {2,0} at taps {1,2}.
    tap = {0: {0: 3, 1: 1}, 1: {1: 2, 2: 0}}
    weq = jnp.zeros((3, 3, Cin, 4 * Cout), jnp.float32)
    for py in range(2):
        for px in range(2):
            ph = py * 2 + px
            for ty, kh in tap[py].items():
                for tx, kw in tap[px].items():
                    weq = weq.at[ty, tx, :, ph * Cout:(ph + 1) * Cout].set(
                        w[:, :, kh, kw])
    m = weq.reshape(9 * Cin, 4 * Cout)
    m = jnp.pad(m, ((0, 0), (0, cout_pad - 4 * Cout)))
    return m.astype(jnp.bfloat16)


def _pad_row(v, Np):
    return jnp.zeros((1, Np), jnp.float32).at[0, : v.shape[0]].set(v)


def init_params(key, conv_dim=64):
    cd, rd = conv_dim, conv_dim * 2
    cdp, rdp = _rup(cd, 128), _rup(rd, 128)
    ks = jax.random.split(key, 6)

    def w(k, shape):
        return 0.05 * jax.random.normal(k, shape, jnp.float32)

    p = {}
    # conv1: Conv2d(3, cd, 4, 2, 1, bias=False); pad Cin 3->8 so K = 128.
    p["w1"] = _conv_weight_to_mat(w(ks[0], (cd, 3, 4, 4)), 8, cdp)
    p["g1"] = _pad_row(jnp.ones((cd,), jnp.float32), cdp)
    p["b1"] = _pad_row(jnp.zeros((cd,), jnp.float32), cdp)
    # conv2: previous activation keeps cdp channels, so pad weight Cin to cdp.
    p["w2"] = _conv_weight_to_mat(w(ks[1], (rd, cd, 4, 4)), cdp, rdp)
    p["g2"] = _pad_row(jnp.ones((rd,), jnp.float32), rdp)
    p["b2"] = _pad_row(jnp.zeros((rd,), jnp.float32), rdp)
    # conv3 / conv4
    p["w3"] = _conv_weight_to_mat(w(ks[2], (rd, rd, 3, 3)), rd, rdp)
    p["g3"] = _pad_row(jnp.ones((rd,), jnp.float32), rdp)
    p["b3"] = _pad_row(jnp.zeros((rd,), jnp.float32), rdp)
    p["w4"] = _conv_weight_to_mat(w(ks[3], (rd, rd, 3, 3)), rd, rdp)
    p["g4"] = _pad_row(jnp.ones((rd,), jnp.float32), rdp)
    p["b4"] = _pad_row(jnp.zeros((rd,), jnp.float32), rdp)
    # deconv1: ConvTranspose2d(rd, cd, 4, 2, 1, bias=False) + BN
    p["wd1"] = _deconv_weight_to_mat(w(ks[4], (rd, cd, 4, 4)), _rup(4 * cd, 128))
    p["gd1"] = _pad_row(jnp.tile(jnp.ones((cd,), jnp.float32), 4), _rup(4 * cd, 128))
    p["bd1"] = _pad_row(jnp.tile(jnp.zeros((cd,), jnp.float32), 4), _rup(4 * cd, 128))
    # deconv2: ConvTranspose2d(cd, 3, 4, 2, 1, bias=False), no BN, tanh
    p["wd2"] = _deconv_weight_to_mat(w(ks[5], (cd, 3, 4, 4)), _rup(12, 128))
    return p


# --------------------------------------------------------------------------- #
# forward (mnist=False path of G22.forward)
# --------------------------------------------------------------------------- #
def g22_forward(params, x_nchw, conv_dim=64):
    cd, rd = conv_dim, conv_dim * 2
    x = jnp.transpose(x_nchw, (0, 2, 3, 1)).astype(jnp.bfloat16)   # NCHW -> NHWC
    x = jnp.pad(x, ((0, 0), (0, 0), (0, 0), (0, 5)))               # 3 -> 8 channels

    h = conv_bn_lrelu(x, params["w1"], params["g1"], params["b1"], cd, 4, 4, 2, 1)
    h = conv_bn_lrelu(h, params["w2"], params["g2"], params["b2"], rd, 4, 4, 2, 1)
    h = conv_bn_lrelu(h, params["w3"], params["g3"], params["b3"], rd, 3, 3, 1, 1)
    h = conv_bn_lrelu(h, params["w4"], params["g4"], params["b4"], rd, 3, 3, 1, 1)
    h = deconv_bn_lrelu(h, params["wd1"], params["gd1"], params["bd1"], cd)
    h = deconv_tanh(h, params["wd2"], cout=3)

    return jnp.transpose(h, (0, 3, 1, 2)).astype(jnp.float32)      # NHWC -> NCHW


# --------------------------------------------------------------------------- #
# main
# --------------------------------------------------------------------------- #
if __name__ == "__main__":
    key = jax.random.PRNGKey(0)
    kp, kx = jax.random.split(key)

    conv_dim = 64
    batch, spatial = 2, 16

    params = init_params(kp, conv_dim)
    x = jax.random.normal(kx, (batch, 3, spatial, spatial), jnp.float32)

    fwd = jax.jit(g22_forward)
    out = fwd(params, x)
    out = jax.block_until_ready(out)

    assert out.shape == (batch, 3, spatial, spatial), out.shape
    assert bool(jnp.all(jnp.isfinite(out)))
    assert bool(jnp.all(jnp.abs(out) <= 1.0 + 1e-6))   # tanh output range
    print("KERNEL_OK")
</pallas_src>

<mosaic_0001>
module attributes {stable_mosaic.version = 11 : i64} {
  func.func @_conv_bn_lrelu_kernel(%arg0: i32, %arg1: memref<128x128xbf16, #tpu.memory_space<vmem>>, %arg2: memref<128x128xbf16, #tpu.memory_space<vmem>>, %arg3: memref<1x128xf32, #tpu.memory_space<vmem>>, %arg4: memref<1x128xf32, #tpu.memory_space<vmem>>, %arg5: memref<128x128xf32, #tpu.memory_space<vmem>>, %arg6: memref<128x128xbf16, #tpu.memory_space<vmem>>) attributes {dimension_semantics = [#tpu.dimension_semantics<arbitrary>], iteration_bounds = array<i64: 1>, scalar_prefetch = 0 : i64, scratch_operands = 0 : i64, tpu.core_type = #tpu.core_type<tc>, window_params = [{pipeline_mode = #tpu.pipeline_mode<synchronous>, transform_indices = @transform_0, window_bounds = array<i64: 128, 128>}, {pipeline_mode = #tpu.pipeline_mode<synchronous>, transform_indices = @transform_1, window_bounds = array<i64: 128, 128>}, {pipeline_mode = #tpu.pipeline_mode<synchronous>, transform_indices = @transform_2, window_bounds = array<i64: 1, 128>}, {pipeline_mode = #tpu.pipeline_mode<synchronous>, transform_indices = @transform_3, window_bounds = array<i64: 1, 128>}, {pipeline_mode = #tpu.pipeline_mode<synchronous>, transform_indices = @transform_4, window_bounds = array<i64: 128, 128>}, {pipeline_mode = #tpu.pipeline_mode<synchronous>, transform_indices = @transform_5, window_bounds = array<i64: 128, 128>}]} {
    %c0 = arith.constant 0 : index
    %c0_0 = arith.constant 0 : index
    %0 = vector.load %arg1[%c0, %c0_0] : memref<128x128xbf16, #tpu.memory_space<vmem>>, vector<128x128xbf16>
    %c0_1 = arith.constant 0 : index
    %c0_2 = arith.constant 0 : index
    %1 = vector.load %arg2[%c0_1, %c0_2] : memref<128x128xbf16, #tpu.memory_space<vmem>>, vector<128x128xbf16>
    %cst = arith.constant dense<0.000000e+00> : vector<128x128xf32>
    %2 = tpu.matmul %0, %1, %cst {dimension_numbers = #tpu.dot_dimension_numbers<[1], [0], [0], [1], [0, 0, 1, 1], [], []>} : vector<128x128xbf16>, vector<128x128xbf16>, vector<128x128xf32> -> vector<128x128xf32>
    %cst_3 = arith.constant dense<0.000000e+00> : vector<128xf32>
    %3 = vector.multi_reduction <add>, %2, %cst_3 [0] : vector<128x128xf32> to vector<128xf32>
    %4 = vector.shape_cast %3 : vector<128xf32> to vector<1x128xf32>
    %5 = arith.mulf %2, %2 : vector<128x128xf32>
    %cst_4 = arith.constant dense<0.000000e+00> : vector<128xf32>
    %6 = vector.multi_reduction <add>, %5, %cst_4 [0] : vector<128x128xf32> to vector<128xf32>
    %7 = vector.shape_cast %6 : vector<128xf32> to vector<1x128xf32>
    %c0_5 = arith.constant 0 : index
    %c0_6 = arith.constant 0 : index
    %8 = vector.load %arg5[%c0_5, %c0_6] : memref<128x128xf32, #tpu.memory_space<vmem>>, vector<128x128xf32>
    %cst_7 = arith.constant dense<0.000000e+00> : vector<1x128xf32>
    %9 = tpu.matmul %4, %8, %cst_7 {dimension_numbers = #tpu.dot_dimension_numbers<[1], [0], [0], [1], [0, 0, 1, 1], [], []>} : vector<1x128xf32>, vector<128x128xf32>, vector<1x128xf32> -> vector<1x128xf32>
    %c0_8 = arith.constant 0 : index
    %c0_9 = arith.constant 0 : index
    %10 = vector.load %arg5[%c0_8, %c0_9] : memref<128x128xf32, #tpu.memory_space<vmem>>, vector<128x128xf32>
    %cst_10 = arith.constant dense<0.000000e+00> : vector<1x128xf32>
    %11 = tpu.matmul %7, %10, %cst_10 {dimension_numbers = #tpu.dot_dimension_numbers<[1], [0], [0], [1], [0, 0, 1, 1], [], []>} : vector<1x128xf32>, vector<128x128xf32>, vector<1x128xf32> -> vector<1x128xf32>
    %12 = arith.mulf %9, %9 : vector<1x128xf32>
    %13 = arith.subf %11, %12 : vector<1x128xf32>
    %cst_11 = arith.constant 0.000000e+00 : f32
    %14 = vector.broadcast %cst_11 : f32 to vector<1x128xf32>
    %15 = arith.maximumf %13, %14 : vector<1x128xf32>
    %c0_12 = arith.constant 0 : index
    %c0_13 = arith.constant 0 : index
    %16 = vector.load %arg3[%c0_12, %c0_13] : memref<1x128xf32, #tpu.memory_space<vmem>>, vector<1x128xf32>
    %cst_14 = arith.constant 9.99999974E-6 : f32
    %17 = vector.broadcast %cst_14 : f32 to vector<1x128xf32>
    %18 = arith.addf %15, %17 : vector<1x128xf32>
    %19 = math.rsqrt %18 : vector<1x128xf32>
    %20 = arith.mulf %16, %19 : vector<1x128xf32>
    %c0_15 = arith.constant 0 : index
    %c0_16 = arith.constant 0 : index
    %21 = vector.load %arg4[%c0_15, %c0_16] : memref<1x128xf32, #tpu.memory_space<vmem>>, vector<1x128xf32>
    %22 = arith.mulf %9, %20 : vector<1x128xf32>
    %23 = arith.subf %21, %22 : vector<1x128xf32>
    %24 = vector.broadcast %20 : vector<1x128xf32> to vector<128x128xf32>
    %25 = arith.mulf %2, %24 : vector<128x128xf32>
    %26 = vector.broadcast %23 : vector<1x128xf32> to vector<128x128xf32>
    %27 = arith.addf %25, %26 : vector<128x128xf32>
    %cst_17 = arith.constant 0.000000e+00 : f32
    %28 = vector.broadcast %cst_17 : f32 to vector<128x128xf32>
    %29 = arith.cmpf oge, %27, %28 : vector<128x128xf32>
    %cst_18 = arith.constant 5.000000e-02 : f32
    %30 = vector.broadcast %cst_18 : f32 to vector<128x128xf32>
    %31 = arith.mulf %30, %27 : vector<128x128xf32>
    %32 = arith.select %29, %27, %31 : vector<128x128xi1>, vector<128x128xf32>
    %33 = arith.truncf %32 : vector<128x128xf32> to vector<128x128xbf16>
    %c0_19 = arith.constant 0 : index
    %c0_20 = arith.constant 0 : index
    %34 = vector.load %arg6[%c0_19, %c0_20] : memref<128x128xbf16, #tpu.memory_space<vmem>>, vector<128x128xbf16>
    tpu.vector_store %arg6[%c0_19, %c0_20], %33 {strides = array<i32>} : memref<128x128xbf16, #tpu.memory_space<vmem>>, vector<128x128xbf16>,
    return
  }
  func.func @transform_0(%arg0: i32) -> (i32, i32) {
    %c0_i32 = arith.constant 0 : i32
    %c0_i32_0 = arith.constant 0 : i32
    %c0_i32_1 = arith.constant 0 : i32
    return %c0_i32, %c0_i32_0 : i32, i32
  }
  func.func @transform_1(%arg0: i32) -> (i32, i32) {
    %c0_i32 = arith.constant 0 : i32
    %c0_i32_0 = arith.constant 0 : i32
    %c0_i32_1 = arith.constant 0 : i32
    return %c0_i32, %c0_i32_0 : i32, i32
  }
  func.func @transform_2(%arg0: i32) -> (i32, i32) {
    %c0_i32 = arith.constant 0 : i32
    %c0_i32_0 = arith.constant 0 : i32
    %c0_i32_1 = arith.constant 0 : i32
    return %c0_i32, %c0_i32_0 : i32, i32
  }
  func.func @transform_3(%arg0: i32) -> (i32, i32) {
    %c0_i32 = arith.constant 0 : i32
    %c0_i32_0 = arith.constant 0 : i32
    %c0_i32_1 = arith.constant 0 : i32
    return %c0_i32, %c0_i32_0 : i32, i32
  }
  func.func @transform_4(%arg0: i32) -> (i32, i32) {
    %c0_i32 = arith.constant 0 : i32
    %c0_i32_0 = arith.constant 0 : i32
    %c0_i32_1 = arith.constant 0 : i32
    return %c0_i32, %c0_i32_0 : i32, i32
  }
  func.func @transform_5(%arg0: i32) -> (i32, i32) {
    %c0_i32 = arith.constant 0 : i32
    %c0_i32_0 = arith.constant 0 : i32
    %c0_i32_1 = arith.constant 0 : i32
    return %c0_i32, %c0_i32_0 : i32, i32
  }
}

module attributes {stable_mosaic.version = 11 : i64} {
  func.func @_conv_bn_lrelu_kernel(%arg0: i32, %arg1: memref<32x2048xbf16, #tpu.memory_space<vmem>>, %arg2: memref<2048x128xbf16, #tpu.memory_space<vmem>>, %arg3: memref<1x128xf32, #tpu.memory_space<vmem>>, %arg4: memref<1x128xf32, #tpu.memory_space<vmem>>, %arg5: memref<128x128xf32, #tpu.memory_space<vmem>>, %arg6: memref<32x128xbf16, #tpu.memory_space<vmem>>) attributes {dimension_semantics = [#tpu.dimension_semantics<arbitrary>], iteration_bounds = array<i64: 1>, scalar_prefetch = 0 : i64, scratch_operands = 0 : i64, tpu.core_type = #tpu.core_type<tc>, window_params = [{pipeline_mode = #tpu.pipeline_mode<synchronous>, transform_indices = @transform_0, window_bounds = array<i64: 32, 2048>}, {pipeline_mode = #tpu.pipeline_mode<synchronous>, transform_indices = @transform_1, window_bounds = array<i64: 2048, 128>}, {pipeline_mode = #tpu.pipeline_mode<synchronous>, transform_indices = @transform_2, window_bounds = array<i64: 1, 128>}, {pipeline_mode = #tpu.pipeline_mode<synchronous>, transform_indices = @transform_3, window_bounds = array<i64: 1, 128>}, {pipeline_mode = #tpu.pipeline_mode<synchronous>, transform_indices = @transform_4, window_bounds = array<i64: 128, 128>}, {pipeline_mode = #tpu.pipeline_mode<synchronous>, transform_indices = @transform_5, window_bounds = array<i64: 32, 128>}]} {
    %c0 = arith.constant 0 : index
    %c0_0 = arith.constant 0 : index
    %0 = vector.load %arg1[%c0, %c0_0] : memref<32x2048xbf16, #tpu.memory_space<vmem>>, vector<32x2048xbf16>
    %c0_1 = arith.constant 0 : index
    %c0_2 = arith.constant 0 : index
    %1 = vector.load %arg2[%c0_1, %c0_2] : memref<2048x128xbf16, #tpu.memory_space<vmem>>, vector<2048x128xbf16>
    %cst = arith.constant dense<0.000000e+00> : vector<32x128xf32>
    %2 = tpu.matmul %0, %1, %cst {dimension_numbers = #tpu.dot_dimension_numbers<[1], [0], [0], [1], [0, 0, 1, 1], [], []>} : vector<32x2048xbf16>, vector<2048x128xbf16>, vector<32x128xf32> -> vector<32x128xf32>
    %cst_3 = arith.constant dense<0.000000e+00> : vector<128xf32>
    %3 = vector.multi_reduction <add>, %2, %cst_3 [0] : vector<32x128xf32> to vector<128xf32>
    %4 = vector.shape_cast %3 : vector<128xf32> to vector<1x128xf32>
    %5 = arith.mulf %2, %2 : vector<32x128xf32>
    %cst_4 = arith.constant dense<0.000000e+00> : vector<128xf32>
    %6 = vector.multi_reduction <add>, %5, %cst_4 [0] : vector<32x128xf32> to vector<128xf32>
    %7 = vector.shape_cast %6 : vector<128xf32> to vector<1x128xf32>
    %c0_5 = arith.constant 0 : index
    %c0_6 = arith.constant 0 : index
    %8 = vector.load %arg5[%c0_5, %c0_6] : memref<128x128xf32, #tpu.memory_space<vmem>>, vector<128x128xf32>
    %cst_7 = arith.constant dense<0.000000e+00> : vector<1x128xf32>
    %9 = tpu.matmul %4, %8, %cst_7 {dimension_numbers = #tpu.dot_dimension_numbers<[1], [0], [0], [1], [0, 0, 1, 1], [], []>} : vector<1x128xf32>, vector<128x128xf32>, vector<1x128xf32> -> vector<1x128xf32>
    %c0_8 = arith.constant 0 : index
    %c0_9 = arith.constant 0 : index
    %10 = vector.load %arg5[%c0_8, %c0_9] : memref<128x128xf32, #tpu.memory_space<vmem>>, vector<128x128xf32>
    %cst_10 = arith.constant dense<0.000000e+00> : vector<1x128xf32>
    %11 = tpu.matmul %7, %10, %cst_10 {dimension_numbers = #tpu.dot_dimension_numbers<[1], [0], [0], [1], [0, 0, 1, 1], [], []>} : vector<1x128xf32>, vector<128x128xf32>, vector<1x128xf32> -> vector<1x128xf32>
    %12 = arith.mulf %9, %9 : vector<1x128xf32>
    %13 = arith.subf %11, %12 : vector<1x128xf32>
    %cst_11 = arith.constant 0.000000e+00 : f32
    %14 = vector.broadcast %cst_11 : f32 to vector<1x128xf32>
    %15 = arith.maximumf %13, %14 : vector<1x128xf32>
    %c0_12 = arith.constant 0 : index
    %c0_13 = arith.constant 0 : index
    %16 = vector.load %arg3[%c0_12, %c0_13] : memref<1x128xf32, #tpu.memory_space<vmem>>, vector<1x128xf32>
    %cst_14 = arith.constant 9.99999974E-6 : f32
    %17 = vector.broadcast %cst_14 : f32 to vector<1x128xf32>
    %18 = arith.addf %15, %17 : vector<1x128xf32>
    %19 = math.rsqrt %18 : vector<1x128xf32>
    %20 = arith.mulf %16, %19 : vector<1x128xf32>
    %c0_15 = arith.constant 0 : index
    %c0_16 = arith.constant 0 : index
    %21 = vector.load %arg4[%c0_15, %c0_16] : memref<1x128xf32, #tpu.memory_space<vmem>>, vector<1x128xf32>
    %22 = arith.mulf %9, %20 : vector<1x128xf32>
    %23 = arith.subf %21, %22 : vector<1x128xf32>
    %24 = vector.broadcast %20 : vector<1x128xf32> to vector<32x128xf32>
    %25 = arith.mulf %2, %24 : vector<32x128xf32>
    %26 = vector.broadcast %23 : vector<1x128xf32> to vector<32x128xf32>
    %27 = arith.addf %25, %26 : vector<32x128xf32>
    %cst_17 = arith.constant 0.000000e+00 : f32
    %28 = vector.broadcast %cst_17 : f32 to vector<32x128xf32>
    %29 = arith.cmpf oge, %27, %28 : vector<32x128xf32>
    %cst_18 = arith.constant 5.000000e-02 : f32
    %30 = vector.broadcast %cst_18 : f32 to vector<32x128xf32>
    %31 = arith.mulf %30, %27 : vector<32x128xf32>
    %32 = arith.select %29, %27, %31 : vector<32x128xi1>, vector<32x128xf32>
    %33 = arith.truncf %32 : vector<32x128xf32> to vector<32x128xbf16>
    %c0_19 = arith.constant 0 : index
    %c0_20 = arith.constant 0 : index
    %34 = vector.load %arg6[%c0_19, %c0_20] : memref<32x128xbf16, #tpu.memory_space<vmem>>, vector<32x128xbf16>
    tpu.vector_store %arg6[%c0_19, %c0_20], %33 {strides = array<i32>} : memref<32x128xbf16, #tpu.memory_space<vmem>>, vector<32x128xbf16>,
    return
  }
  func.func @transform_0(%arg0: i32) -> (i32, i32) {
    %c0_i32 = arith.constant 0 : i32
    %c0_i32_0 = arith.constant 0 : i32
    %c0_i32_1 = arith.constant 0 : i32
    return %c0_i32, %c0_i32_0 : i32, i32
  }
  func.func @transform_1(%arg0: i32) -> (i32, i32) {
    %c0_i32 = arith.constant 0 : i32
    %c0_i32_0 = arith.constant 0 : i32
    %c0_i32_1 = arith.constant 0 : i32
    return %c0_i32, %c0_i32_0 : i32, i32
  }
  func.func @transform_2(%arg0: i32) -> (i32, i32) {
    %c0_i32 = arith.constant 0 : i32
    %c0_i32_0 = arith.constant 0 : i32
    %c0_i32_1 = arith.constant 0 : i32
    return %c0_i32, %c0_i32_0 : i32, i32
  }
  func.func @transform_3(%arg0: i32) -> (i32, i32) {
    %c0_i32 = arith.constant 0 : i32
    %c0_i32_0 = arith.constant 0 : i32
    %c0_i32_1 = arith.constant 0 : i32
    return %c0_i32, %c0_i32_0 : i32, i32
  }
  func.func @transform_4(%arg0: i32) -> (i32, i32) {
    %c0_i32 = arith.constant 0 : i32
    %c0_i32_0 = arith.constant 0 : i32
    %c0_i32_1 = arith.constant 0 : i32
    return %c0_i32, %c0_i32_0 : i32, i32
  }
  func.func @transform_5(%arg0: i32) -> (i32, i32) {
    %c0_i32 = arith.constant 0 : i32
    %c0_i32_0 = arith.constant 0 : i32
    %c0_i32_1 = arith.constant 0 : i32
    return %c0_i32, %c0_i32_0 : i32, i32
  }
}

module attributes {stable_mosaic.version = 11 : i64} {
  func.func @_conv_bn_lrelu_kernel(%arg0: i32, %arg1: memref<32x1152xbf16, #tpu.memory_space<vmem>>, %arg2: memref<1152x128xbf16, #tpu.memory_space<vmem>>, %arg3: memref<1x128xf32, #tpu.memory_space<vmem>>, %arg4: memref<1x128xf32, #tpu.memory_space<vmem>>, %arg5: memref<128x128xf32, #tpu.memory_space<vmem>>, %arg6: memref<32x128xbf16, #tpu.memory_space<vmem>>) attributes {dimension_semantics = [#tpu.dimension_semantics<arbitrary>], iteration_bounds = array<i64: 1>, scalar_prefetch = 0 : i64, scratch_operands = 0 : i64, tpu.core_type = #tpu.core_type<tc>, window_params = [{pipeline_mode = #tpu.pipeline_mode<synchronous>, transform_indices = @transform_0, window_bounds = array<i64: 32, 1152>}, {pipeline_mode = #tpu.pipeline_mode<synchronous>, transform_indices = @transform_1, window_bounds = array<i64: 1152, 128>}, {pipeline_mode = #tpu.pipeline_mode<synchronous>, transform_indices = @transform_2, window_bounds = array<i64: 1, 128>}, {pipeline_mode = #tpu.pipeline_mode<synchronous>, transform_indices = @transform_3, window_bounds = array<i64: 1, 128>}, {pipeline_mode = #tpu.pipeline_mode<synchronous>, transform_indices = @transform_4, window_bounds = array<i64: 128, 128>}, {pipeline_mode = #tpu.pipeline_mode<synchronous>, transform_indices = @transform_5, window_bounds = array<i64: 32, 128>}]} {
    %c0 = arith.constant 0 : index
    %c0_0 = arith.constant 0 : index
    %0 = vector.load %arg1[%c0, %c0_0] : memref<32x1152xbf16, #tpu.memory_space<vmem>>, vector<32x1152xbf16>
    %c0_1 = arith.constant 0 : index
    %c0_2 = arith.constant 0 : index
    %1 = vector.load %arg2[%c0_1, %c0_2] : memref<1152x128xbf16, #tpu.memory_space<vmem>>, vector<1152x128xbf16>
    %cst = arith.constant dense<0.000000e+00> : vector<32x128xf32>
    %2 = tpu.matmul %0, %1, %cst {dimension_numbers = #tpu.dot_dimension_numbers<[1], [0], [0], [1], [0, 0, 1, 1], [], []>} : vector<32x1152xbf16>, vector<1152x128xbf16>, vector<32x128xf32> -> vector<32x128xf32>
    %cst_3 = arith.constant dense<0.000000e+00> : vector<128xf32>
    %3 = vector.multi_reduction <add>, %2, %cst_3 [0] : vector<32x128xf32> to vector<128xf32>
    %4 = vector.shape_cast %3 : vector<128xf32> to vector<1x128xf32>
    %5 = arith.mulf %2, %2 : vector<32x128xf32>
    %cst_4 = arith.constant dense<0.000000e+00> : vector<128xf32>
    %6 = vector.multi_reduction <add>, %5, %cst_4 [0] : vector<32x128xf32> to vector<128xf32>
    %7 = vector.shape_cast %6 : vector<128xf32> to vector<1x128xf32>
    %c0_5 = arith.constant 0 : index
    %c0_6 = arith.constant 0 : index
    %8 = vector.load %arg5[%c0_5, %c0_6] : memref<128x128xf32, #tpu.memory_space<vmem>>, vector<128x128xf32>
    %cst_7 = arith.constant dense<0.000000e+00> : vector<1x128xf32>
    %9 = tpu.matmul %4, %8, %cst_7 {dimension_numbers = #tpu.dot_dimension_numbers<[1], [0], [0], [1], [0, 0, 1, 1], [], []>} : vector<1x128xf32>, vector<128x128xf32>, vector<1x128xf32> -> vector<1x128xf32>
    %c0_8 = arith.constant 0 : index
    %c0_9 = arith.constant 0 : index
    %10 = vector.load %arg5[%c0_8, %c0_9] : memref<128x128xf32, #tpu.memory_space<vmem>>, vector<128x128xf32>
    %cst_10 = arith.constant dense<0.000000e+00> : vector<1x128xf32>
    %11 = tpu.matmul %7, %10, %cst_10 {dimension_numbers = #tpu.dot_dimension_numbers<[1], [0], [0], [1], [0, 0, 1, 1], [], []>} : vector<1x128xf32>, vector<128x128xf32>, vector<1x128xf32> -> vector<1x128xf32>
    %12 = arith.mulf %9, %9 : vector<1x128xf32>
    %13 = arith.subf %11, %12 : vector<1x128xf32>
    %cst_11 = arith.constant 0.000000e+00 : f32
    %14 = vector.broadcast %cst_11 : f32 to vector<1x128xf32>
    %15 = arith.maximumf %13, %14 : vector<1x128xf32>
    %c0_12 = arith.constant 0 : index
    %c0_13 = arith.constant 0 : index
    %16 = vector.load %arg3[%c0_12, %c0_13] : memref<1x128xf32, #tpu.memory_space<vmem>>, vector<1x128xf32>
    %cst_14 = arith.constant 9.99999974E-6 : f32
    %17 = vector.broadcast %cst_14 : f32 to vector<1x128xf32>
    %18 = arith.addf %15, %17 : vector<1x128xf32>
    %19 = math.rsqrt %18 : vector<1x128xf32>
    %20 = arith.mulf %16, %19 : vector<1x128xf32>
    %c0_15 = arith.constant 0 : index
    %c0_16 = arith.constant 0 : index
    %21 = vector.load %arg4[%c0_15, %c0_16] : memref<1x128xf32, #tpu.memory_space<vmem>>, vector<1x128xf32>
    %22 = arith.mulf %9, %20 : vector<1x128xf32>
    %23 = arith.subf %21, %22 : vector<1x128xf32>
    %24 = vector.broadcast %20 : vector<1x128xf32> to vector<32x128xf32>
    %25 = arith.mulf %2, %24 : vector<32x128xf32>
    %26 = vector.broadcast %23 : vector<1x128xf32> to vector<32x128xf32>
    %27 = arith.addf %25, %26 : vector<32x128xf32>
    %cst_17 = arith.constant 0.000000e+00 : f32
    %28 = vector.broadcast %cst_17 : f32 to vector<32x128xf32>
    %29 = arith.cmpf oge, %27, %28 : vector<32x128xf32>
    %cst_18 = arith.constant 5.000000e-02 : f32
    %30 = vector.broadcast %cst_18 : f32 to vector<32x128xf32>
    %31 = arith.mulf %30, %27 : vector<32x128xf32>
    %32 = arith.select %29, %27, %31 : vector<32x128xi1>, vector<32x128xf32>
    %33 = arith.truncf %32 : vector<32x128xf32> to vector<32x128xbf16>
    %c0_19 = arith.constant 0 : index
    %c0_20 = arith.constant 0 : index
    %34 = vector.load %arg6[%c0_19, %c0_20] : memref<32x128xbf16, #tpu.memory_space<vmem>>, vector<32x128xbf16>
    tpu.vector_store %arg6[%c0_19, %c0_20], %33 {strides = array<i32>} : memref<32x128xbf16, #tpu.memory_space<vmem>>, vector<32x128xbf16>,
    return
  }
  func.func @transform_0(%arg0: i32) -> (i32, i32) {
    %c0_i32 = arith.constant 0 : i32
    %c0_i32_0 = arith.constant 0 : i32
    %c0_i32_1 = arith.constant 0 : i32
    return %c0_i32, %c0_i32_0 : i32, i32
  }
  func.func @transform_1(%arg0: i32) -> (i32, i32) {
    %c0_i32 = arith.constant 0 : i32
    %c0_i32_0 = arith.constant 0 : i32
    %c0_i32_1 = arith.constant 0 : i32
    return %c0_i32, %c0_i32_0 : i32, i32
  }
  func.func @transform_2(%arg0: i32) -> (i32, i32) {
    %c0_i32 = arith.constant 0 : i32
    %c0_i32_0 = arith.constant 0 : i32
    %c0_i32_1 = arith.constant 0 : i32
    return %c0_i32, %c0_i32_0 : i32, i32
  }
  func.func @transform_3(%arg0: i32) -> (i32, i32) {
    %c0_i32 = arith.constant 0 : i32
    %c0_i32_0 = arith.constant 0 : i32
    %c0_i32_1 = arith.constant 0 : i32
    return %c0_i32, %c0_i32_0 : i32, i32
  }
  func.func @transform_4(%arg0: i32) -> (i32, i32) {
    %c0_i32 = arith.constant 0 : i32
    %c0_i32_0 = arith.constant 0 : i32
    %c0_i32_1 = arith.constant 0 : i32
    return %c0_i32, %c0_i32_0 : i32, i32
  }
  func.func @transform_5(%arg0: i32) -> (i32, i32) {
    %c0_i32 = arith.constant 0 : i32
    %c0_i32_0 = arith.constant 0 : i32
    %c0_i32_1 = arith.constant 0 : i32
    return %c0_i32, %c0_i32_0 : i32, i32
  }
}

module attributes {stable_mosaic.version = 11 : i64} {
  func.func @_conv_bn_lrelu_kernel(%arg0: i32, %arg1: memref<32x1152xbf16, #tpu.memory_space<vmem>>, %arg2: memref<1152x256xbf16, #tpu.memory_space<vmem>>, %arg3: memref<1x256xf32, #tpu.memory_space<vmem>>, %arg4: memref<1x256xf32, #tpu.memory_space<vmem>>, %arg5: memref<256x256xf32, #tpu.memory_space<vmem>>, %arg6: memref<32x256xbf16, #tpu.memory_space<vmem>>) attributes {dimension_semantics = [#tpu.dimension_semantics<arbitrary>], iteration_bounds = array<i64: 1>, scalar_prefetch = 0 : i64, scratch_operands = 0 : i64, tpu.core_type = #tpu.core_type<tc>, window_params = [{pipeline_mode = #tpu.pipeline_mode<synchronous>, transform_indices = @transform_0, window_bounds = array<i64: 32, 1152>}, {pipeline_mode = #tpu.pipeline_mode<synchronous>, transform_indices = @transform_1, window_bounds = array<i64: 1152, 256>}, {pipeline_mode = #tpu.pipeline_mode<synchronous>, transform_indices = @transform_2, window_bounds = array<i64: 1, 256>}, {pipeline_mode = #tpu.pipeline_mode<synchronous>, transform_indices = @transform_3, window_bounds = array<i64: 1, 256>}, {pipeline_mode = #tpu.pipeline_mode<synchronous>, transform_indices = @transform_4, window_bounds = array<i64: 256, 256>}, {pipeline_mode = #tpu.pipeline_mode<synchronous>, transform_indices = @transform_5, window_bounds = array<i64: 32, 256>}]} {
    %c0 = arith.constant 0 : index
    %c0_0 = arith.constant 0 : index
    %0 = vector.load %arg1[%c0, %c0_0] : memref<32x1152xbf16, #tpu.memory_space<vmem>>, vector<32x1152xbf16>
    %c0_1 = arith.constant 0 : index
    %c0_2 = arith.constant 0 : index
    %1 = vector.load %arg2[%c0_1, %c0_2] : memref<1152x256xbf16, #tpu.memory_space<vmem>>, vector<1152x256xbf16>
    %cst = arith.constant dense<0.000000e+00> : vector<32x256xf32>
    %2 = tpu.matmul %0, %1, %cst {dimension_numbers = #tpu.dot_dimension_numbers<[1], [0], [0], [1], [0, 0, 1, 1], [], []>} : vector<32x1152xbf16>, vector<1152x256xbf16>, vector<32x256xf32> -> vector<32x256xf32>
    %cst_3 = arith.constant dense<0.000000e+00> : vector<256xf32>
    %3 = vector.multi_reduction <add>, %2, %cst_3 [0] : vector<32x256xf32> to vector<256xf32>
    %4 = vector.shape_cast %3 : vector<256xf32> to vector<1x256xf32>
    %5 = arith.mulf %2, %2 : vector<32x256xf32>
    %cst_4 = arith.constant dense<0.000000e+00> : vector<256xf32>
    %6 = vector.multi_reduction <add>, %5, %cst_4 [0] : vector<32x256xf32> to vector<256xf32>
    %7 = vector.shape_cast %6 : vector<256xf32> to vector<1x256xf32>
    %c0_5 = arith.constant 0 : index
    %c0_6 = arith.constant 0 : index
    %8 = vector.load %arg5[%c0_5, %c0_6] : memref<256x256xf32, #tpu.memory_space<vmem>>, vector<256x256xf32>
    %cst_7 = arith.constant dense<0.000000e+00> : vector<1x256xf32>
    %9 = tpu.matmul %4, %8, %cst_7 {dimension_numbers = #tpu.dot_dimension_numbers<[1], [0], [0], [1], [0, 0, 1, 1], [], []>} : vector<1x256xf32>, vector<256x256xf32>, vector<1x256xf32> -> vector<1x256xf32>
    %c0_8 = arith.constant 0 : index
    %c0_9 = arith.constant 0 : index
    %10 = vector.load %arg5[%c0_8, %c0_9] : memref<256x256xf32, #tpu.memory_space<vmem>>, vector<256x256xf32>
    %cst_10 = arith.constant dense<0.000000e+00> : vector<1x256xf32>
    %11 = tpu.matmul %7, %10, %cst_10 {dimension_numbers = #tpu.dot_dimension_numbers<[1], [0], [0], [1], [0, 0, 1, 1], [], []>} : vector<1x256xf32>, vector<256x256xf32>, vector<1x256xf32> -> vector<1x256xf32>
    %12 = arith.mulf %9, %9 : vector<1x256xf32>
    %13 = arith.subf %11, %12 : vector<1x256xf32>
    %cst_11 = arith.constant 0.000000e+00 : f32
    %14 = vector.broadcast %cst_11 : f32 to vector<1x256xf32>
    %15 = arith.maximumf %13, %14 : vector<1x256xf32>
    %c0_12 = arith.constant 0 : index
    %c0_13 = arith.constant 0 : index
    %16 = vector.load %arg3[%c0_12, %c0_13] : memref<1x256xf32, #tpu.memory_space<vmem>>, vector<1x256xf32>
    %cst_14 = arith.constant 9.99999974E-6 : f32
    %17 = vector.broadcast %cst_14 : f32 to vector<1x256xf32>
    %18 = arith.addf %15, %17 : vector<1x256xf32>
    %19 = math.rsqrt %18 : vector<1x256xf32>
    %20 = arith.mulf %16, %19 : vector<1x256xf32>
    %c0_15 = arith.constant 0 : index
    %c0_16 = arith.constant 0 : index
    %21 = vector.load %arg4[%c0_15, %c0_16] : memref<1x256xf32, #tpu.memory_space<vmem>>, vector<1x256xf32>
    %22 = arith.mulf %9, %20 : vector<1x256xf32>
    %23 = arith.subf %21, %22 : vector<1x256xf32>
    %24 = vector.broadcast %20 : vector<1x256xf32> to vector<32x256xf32>
    %25 = arith.mulf %2, %24 : vector<32x256xf32>
    %26 = vector.broadcast %23 : vector<1x256xf32> to vector<32x256xf32>
    %27 = arith.addf %25, %26 : vector<32x256xf32>
    %cst_17 = arith.constant 0.000000e+00 : f32
    %28 = vector.broadcast %cst_17 : f32 to vector<32x256xf32>
    %29 = arith.cmpf oge, %27, %28 : vector<32x256xf32>
    %cst_18 = arith.constant 5.000000e-02 : f32
    %30 = vector.broadcast %cst_18 : f32 to vector<32x256xf32>
    %31 = arith.mulf %30, %27 : vector<32x256xf32>
    %32 = arith.select %29, %27, %31 : vector<32x256xi1>, vector<32x256xf32>
    %33 = arith.truncf %32 : vector<32x256xf32> to vector<32x256xbf16>
    %c0_19 = arith.constant 0 : index
    %c0_20 = arith.constant 0 : index
    %34 = vector.load %arg6[%c0_19, %c0_20] : memref<32x256xbf16, #tpu.memory_space<vmem>>, vector<32x256xbf16>
    tpu.vector_store %arg6[%c0_19, %c0_20], %33 {strides = array<i32>} : memref<32x256xbf16, #tpu.memory_space<vmem>>, vector<32x256xbf16>,
    return
  }
  func.func @transform_0(%arg0: i32) -> (i32, i32) {
    %c0_i32 = arith.constant 0 : i32
    %c0_i32_0 = arith.constant 0 : i32
    %c0_i32_1 = arith.constant 0 : i32
    return %c0_i32, %c0_i32_0 : i32, i32
  }
  func.func @transform_1(%arg0: i32) -> (i32, i32) {
    %c0_i32 = arith.constant 0 : i32
    %c0_i32_0 = arith.constant 0 : i32
    %c0_i32_1 = arith.constant 0 : i32
    return %c0_i32, %c0_i32_0 : i32, i32
  }
  func.func @transform_2(%arg0: i32) -> (i32, i32) {
    %c0_i32 = arith.constant 0 : i32
    %c0_i32_0 = arith.constant 0 : i32
    %c0_i32_1 = arith.constant 0 : i32
    return %c0_i32, %c0_i32_0 : i32, i32
  }
  func.func @transform_3(%arg0: i32) -> (i32, i32) {
    %c0_i32 = arith.constant 0 : i32
    %c0_i32_0 = arith.constant 0 : i32
    %c0_i32_1 = arith.constant 0 : i32
    return %c0_i32, %c0_i32_0 : i32, i32
  }
  func.func @transform_4(%arg0: i32) -> (i32, i32) {
    %c0_i32 = arith.constant 0 : i32
    %c0_i32_0 = arith.constant 0 : i32
    %c0_i32_1 = arith.constant 0 : i32
    return %c0_i32, %c0_i32_0 : i32, i32
  }
  func.func @transform_5(%arg0: i32) -> (i32, i32) {
    %c0_i32 = arith.constant 0 : i32
    %c0_i32_0 = arith.constant 0 : i32
    %c0_i32_1 = arith.constant 0 : i32
    return %c0_i32, %c0_i32_0 : i32, i32
  }
}

module attributes {stable_mosaic.version = 11 : i64} {
  func.func @_conv_tanh_kernel(%arg0: i32, %arg1: memref<128x576xbf16, #tpu.memory_space<vmem>>, %arg2: memref<576x128xbf16, #tpu.memory_space<vmem>>, %arg3: memref<128x128xbf16, #tpu.memory_space<vmem>>) attributes {dimension_semantics = [#tpu.dimension_semantics<arbitrary>], iteration_bounds = array<i64: 1>, scalar_prefetch = 0 : i64, scratch_operands = 0 : i64, tpu.core_type = #tpu.core_type<tc>, window_params = [{pipeline_mode = #tpu.pipeline_mode<synchronous>, transform_indices = @transform_0, window_bounds = array<i64: 128, 576>}, {pipeline_mode = #tpu.pipeline_mode<synchronous>, transform_indices = @transform_1, window_bounds = array<i64: 576, 128>}, {pipeline_mode = #tpu.pipeline_mode<synchronous>, transform_indices = @transform_2, window_bounds = array<i64: 128, 128>}]} {
    %c0 = arith.constant 0 : index
    %c0_0 = arith.constant 0 : index
    %0 = vector.load %arg1[%c0, %c0_0] : memref<128x576xbf16, #tpu.memory_space<vmem>>, vector<128x576xbf16>
    %c0_1 = arith.constant 0 : index
    %c0_2 = arith.constant 0 : index
    %1 = vector.load %arg2[%c0_1, %c0_2] : memref<576x128xbf16, #tpu.memory_space<vmem>>, vector<576x128xbf16>
    %cst = arith.constant dense<0.000000e+00> : vector<128x128xf32>
    %2 = tpu.matmul %0, %1, %cst {dimension_numbers = #tpu.dot_dimension_numbers<[1], [0], [0], [1], [0, 0, 1, 1], [], []>} : vector<128x576xbf16>, vector<576x128xbf16>, vector<128x128xf32> -> vector<128x128xf32>
    %3 = math.tanh %2 : vector<128x128xf32>
    %4 = arith.truncf %3 : vector<128x128xf32> to vector<128x128xbf16>
    %c0_3 = arith.constant 0 : index
    %c0_4 = arith.constant 0 : index
    %5 = vector.load %arg3[%c0_3, %c0_4] : memref<128x128xbf16, #tpu.memory_space<vmem>>, vector<128x128xbf16>
    tpu.vector_store %arg3[%c0_3, %c0_4], %4 {strides = array<i32>} : memref<128x128xbf16, #tpu.memory_space<vmem>>, vector<128x128xbf16>,
    return
  }
  func.func @transform_0(%arg0: i32) -> (i32, i32) {
    %c0_i32 = arith.constant 0 : i32
    %c0_i32_0 = arith.constant 0 : i32
    %c0_i32_1 = arith.constant 0 : i32
    return %c0_i32, %c0_i32_0 : i32, i32
  }
  func.func @transform_1(%arg0: i32) -> (i32, i32) {
    %c0_i32 = arith.constant 0 : i32
    %c0_i32_0 = arith.constant 0 : i32
    %c0_i32_1 = arith.constant 0 : i32
    return %c0_i32, %c0_i32_0 : i32, i32
  }
  func.func @transform_2(%arg0: i32) -> (i32, i32) {
    %c0_i32 = arith.constant 0 : i32
    %c0_i32_0 = arith.constant 0 : i32
    %c0_i32_1 = arith.constant 0 : i32
    return %c0_i32, %c0_i32_0 : i32, i32
  }
}

</mosaic_0001>

<llo_original>
// kernel: g22_forward.6
$region0: #{g22_forward.6}
  #allocation0 [shape = 'u32[]', space=smem, size = 0x4, offset = 0x4, fixed_abs, tag = 'smem constant byte address 0x4 - core index']
  #allocation1 [shape = 'u32[144,128]{1,0:T(1,128)}', space=vmem, size = 0x12000, scoped, tag = 'internal scratch']
  %s0 = inlined_call_operand.vmem [shape: bf16[128,128], index: 0, kind: input, shape index: {}]
  %s1 = inlined_call_operand.vmem [shape: bf16[128,128], index: 1, kind: input, shape index: {}]
  %s2 = inlined_call_operand.vmem [shape: f32[1,128], index: 2, kind: input, shape index: {}]
  %s3 = inlined_call_operand.vmem [shape: f32[1,128], index: 3, kind: input, shape index: {}]
  %s4 = inlined_call_operand.vmem [shape: f32[128,128], index: 4, kind: input, shape index: {}]
  %s5 = inlined_call_operand.vmem [shape: bf16[128,128], index: 5, kind: output, shape index: {}]
  %s6 = sld [smem:[#allocation0]]
  $region30: #{g22_forward.6} parent=0
    _
  %s8 = ssub.s32 1, %s6
  %s9 = scalar_select 0, %s8, %s6
  // Predicated region
  $region2: #{g22_forward.6} parent=0 // pred_check
    _
  $region3: #{g22_forward.6} parent=0 // pred_check_branch
    %11 = sbr.rel (0) target = $region5
  $region4: #{g22_forward.6} parent=0 // pred_region
    _
  $region5: #{g22_forward.6} parent=0 // pred_fallthru
    _
  // Predicated region
  $region6: #{g22_forward.6} parent=0 // pred_check
    _
  $region7: #{g22_forward.6} parent=0 // pred_check_branch
    %13 = sbr.rel (0) target = $region9
  $region8: #{g22_forward.6} parent=0 // pred_region
    _
  $region9: #{g22_forward.6} parent=0 // pred_fallthru
    _
  // Predicated region
  $region10: #{g22_forward.6} parent=0 // pred_check
    _
  $region11: #{g22_forward.6} parent=0 // pred_check_branch
    %15 = sbr.rel (0) target = $region13
  $region12: #{g22_forward.6} parent=0 // pred_region
    _
  $region13: #{g22_forward.6} parent=0 // pred_fallthru
    _
  // Predicated region
  $region14: #{g22_forward.6} parent=0 // pred_check
    _
  $region15: #{g22_forward.6} parent=0 // pred_check_branch
    %17 = sbr.rel (0) target = $region17
  $region16: #{g22_forward.6} parent=0 // pred_region
    _
  $region17: #{g22_forward.6} parent=0 // pred_fallthru
    _
  // Predicated region
  $region18: #{g22_forward.6} parent=0 // pred_check
    _
  $region19: #{g22_forward.6} parent=0 // pred_check_branch
    %19 = sbr.rel (0) target = $region21
  $region20: #{g22_forward.6} parent=0 // pred_region
    _
  $region21: #{g22_forward.6} parent=0 // pred_fallthru
    _
  %v21 = vld [vmem:[%s0] sm:$0xf]
  %v22 = vld [vmem:[%s0 + $0x4] sm:$0xf]
  %v23 = vld [vmem:[%s0 + $0x8] sm:$0xf]
  %v24 = vld [vmem:[%s0 + $0xc] sm:$0xf]
  %v25 = vld [vmem:[%s0 + $0x10] sm:$0xf]
  %v26 = vld [vmem:[%s0 + $0x14] sm:$0xf]
  %v27 = vld [vmem:[%s0 + $0x18] sm:$0xf]
  %v28 = vld [vmem:[%s0 + $0x1c] sm:$0xf]
  %v29 = vld [vmem:[%s0 + $0x20] sm:$0xf]
  %v30 = vld [vmem:[%s0 + $0x24] sm:$0xf]
  %v31 = vld [vmem:[%s0 + $0x28] sm:$0xf]
  %v32 = vld [vmem:[%s0 + $0x2c] sm:$0xf]
  %v33 = vld [vmem:[%s0 + $0x30] sm:$0xf]
  %v34 = vld [vmem:[%s0 + $0x34] sm:$0xf]
  %v35 = vld [vmem:[%s0 + $0x38] sm:$0xf]
  %v36 = vld [vmem:[%s0 + $0x3c] sm:$0xf]
  %v37 = vld [vmem:[%s1] sm:$0xf]
  %v38 = vld [vmem:[%s1 + $0x4] sm:$0xf]
  %v39 = vld [vmem:[%s1 + $0x8] sm:$0xf]
  %v40 = vld [vmem:[%s1 + $0xc] sm:$0xf]
  %v41 = vld [vmem:[%s1 + $0x10] sm:$0xf]
  %v42 = vld [vmem:[%s1 + $0x14] sm:$0xf]
  %v43 = vld [vmem:[%s1 + $0x18] sm:$0xf]
  %v44 = vld [vmem:[%s1 + $0x1c] sm:$0xf]
  %v45 = vld [vmem:[%s1 + $0x20] sm:$0xf]
  %v46 = vld [vmem:[%s1 + $0x24] sm:$0xf]
  %v47 = vld [vmem:[%s1 + $0x28] sm:$0xf]
  %v48 = vld [vmem:[%s1 + $0x2c] sm:$0xf]
  %v49 = vld [vmem:[%s1 + $0x30] sm:$0xf]
  %v50 = vld [vmem:[%s1 + $0x34] sm:$0xf]
  %v51 = vld [vmem:[%s1 + $0x38] sm:$0xf]
  %v52 = vld [vmem:[%s1 + $0x3c] sm:$0xf]
  %v69 = vunpack.c.l.b16 %v21
  %v70 = vunpack.c.l.b16 %v22
  %v71 = vunpack.c.l.b16 %v23
  %v72 = vunpack.c.l.b16 %v24
  %v73 = vunpack.c.l.b16 %v25
  %v74 = vunpack.c.l.b16 %v26
  %v75 = vunpack.c.l.b16 %v27
  %v76 = vunpack.c.l.b16 %v28
  %v77 = vunpack.c.l.b16 %v29
  %v78 = vunpack.c.l.b16 %v30
  %v79 = vunpack.c.l.b16 %v31
  %v80 = vunpack.c.l.b16 %v32
  %v81 = vunpack.c.l.b16 %v33
  %v82 = vunpack.c.l.b16 %v34
  %v83 = vunpack.c.l.b16 %v35
  %v84 = vunpack.c.l.b16 %v36
  %v85 = vpack.c.b16 %v70, %v69
  %v86 = vpack.c.b16 %v72, %v71
  %v87 = vpack.c.b16 %v74, %v73
  %v88 = vpack.c.b16 %v76, %v75
  %v89 = vpack.c.b16 %v78, %v77
  %v90 = vpack.c.b16 %v80, %v79
  %v91 = vpack.c.b16 %v82, %v81
  %v92 = vpack.c.b16 %v84, %v83
  %v117 = vunpack.c.l.b16 %v37
  %v118 = vunpack.c.l.b16 %v38
  %v119 = vunpack.c.l.b16 %v39
  %v120 = vunpack.c.l.b16 %v40
  %v121 = vunpack.c.l.b16 %v41
  %v122 = vunpack.c.l.b16 %v42
  %v123 = vunpack.c.l.b16 %v43
  %v124 = vunpack.c.l.b16 %v44
  %v125 = vunpack.c.l.b16 %v45
  %v126 = vunpack.c.l.b16 %v46
  %v127 = vunpack.c.l.b16 %v47
  %v128 = vunpack.c.l.b16 %v48
  %v129 = vunpack.c.l.b16 %v49
  %v130 = vunpack.c.l.b16 %v50
  %v131 = vunpack.c.l.b16 %v51
  %v132 = vunpack.c.l.b16 %v52
  %v133 = vpack.c.b16 %v118, %v117
  %v134 = vpack.c.b16 %v120, %v119
  %v135 = vpack.c.b16 %v122, %v121
  %v136 = vpack.c.b16 %v124, %v123
  %v137 = vpack.c.b16 %v126, %v125
  %v138 = vpack.c.b16 %v128, %v127
  %v139 = vpack.c.b16 %v130, %v129
  %v140 = vpack.c.b16 %v132, %v131
  %149 = vmatprep.subr.bf16.mxu0 0
  %150 = vmatpush1.bf16.msra.mxu0 %v133
  %151 = vmatprep.subr.bf16.mxu0 0
  %152 = vmatpush1.bf16.msra.mxu0 %v134
  %153 = vmatprep.subr.bf16.mxu0 0
  %154 = vmatpush1.bf16.msra.mxu0 %v135
  %155 = vmatprep.subr.bf16.mxu0 0
  %156 = vmatpush1.bf16.msra.mxu0 %v136
  %157 = vmatprep.subr.bf16.mxu0 0
  %158 = vmatpush1.bf16.msra.mxu0 %v137
  %159 = vmatprep.subr.bf16.mxu0 0
  %160 = vmatpush1.bf16.msra.mxu0 %v138
  %161 = vmatprep.subr.bf16.mxu0 0
  %162 = vmatpush1.bf16.msra.mxu0 %v139
  %163 = vmatprep.subr.bf16.mxu0 0
  %164 = vmatpush1.bf16.msra.mxu0 %v140
  %165 = vmatprep.subr.bf16.mxu0 0
  %166 = vmatpush1.bf16.msra.mxu0 0
  %167 = vmatprep.subr.bf16.mxu0 0
  %168 = vmatpush1.bf16.msra.mxu0 0
  %169 = vmatprep.subr.bf16.mxu0 0
  %170 = vmatpush1.bf16.msra.mxu0 0
  %171 = vmatprep.subr.bf16.mxu0 0
  %172 = vmatpush1.bf16.msra.mxu0 0
  %173 = vmatprep.subr.bf16.mxu0 0
  %174 = vmatpush1.bf16.msra.mxu0 0
  %175 = vmatprep.subr.bf16.mxu0 0
  %176 = vmatpush1.bf16.msra.mxu0 0
  %177 = vmatprep.subr.bf16.mxu0 0
  %178 = vmatpush1.bf16.msra.mxu0 0
  %179 = vmatprep.subr.bf16.mxu0 0
  %180 = vmatpush1.bf16.msra.mxu0 0
  %181 = vmatprep.mubr.bf16.mxu0 0
  %182 = vmatmul.mubr.bf16.gmra.mrb[0].mxu0 %v85
  %v183 = vpop.f32.mrb[0].mxu0
  %v184 = vadd.f32 0.0, %v183
  %v185 = vpop.f32.mrb[0].mxu0
  %v186 = vpop.f32.mrb[0].mxu0
  %v187 = vadd.f32 0.0, %v186
  %v188 = vpop.f32.mrb[0].mxu0
  %189 = vmatprep.mubr.bf16.mxu0 0
  %190 = vmatmul.mubr.bf16.gmra.mrb[0].mxu0 %v86
  %v191 = vpop.f32.mrb[0].mxu0
  %v192 = vadd.f32 0.0, %v191
  %v193 = vpop.f32.mrb[0].mxu0
  %v194 = vpop.f32.mrb[0].mxu0
  %v195 = vadd.f32 0.0, %v194
  %v196 = vpop.f32.mrb[0].mxu0
  %197 = vmatprep.mubr.bf16.mxu0 0
  %198 = vmatmul.mubr.bf16.gmra.mrb[0].mxu0 %v87
  %v199 = vpop.f32.mrb[0].mxu0
  %v200 = vadd.f32 0.0, %v199
  %v201 = vpop.f32.mrb[0].mxu0
  %v202 = vpop.f32.mrb[0].mxu0
  %v203 = vadd.f32 0.0, %v202
  %v204 = vpop.f32.mrb[0].mxu0
  %205 = vmatprep.mubr.bf16.mxu0 0
  %206 = vmatmul.mubr.bf16.gmra.mrb[0].mxu0 %v88
  %v207 = vpop.f32.mrb[0].mxu0
  %v208 = vadd.f32 0.0, %v207
  %v209 = vpop.f32.mrb[0].mxu0
  %v210 = vpop.f32.mrb[0].mxu0
  %v211 = vadd.f32 0.0, %v210
  %v212 = vpop.f32.mrb[0].mxu0
  %213 = vmatprep.mubr.bf16.mxu0 0
  %214 = vmatmul.mubr.bf16.gmra.mrb[0].mxu0 %v89
  %v215 = vpop.f32.mrb[0].mxu0
  %v216 = vadd.f32 0.0, %v215
  %v217 = vpop.f32.mrb[0].mxu0
  %v218 = vpop.f32.mrb[0].mxu0
  %v219 = vadd.f32 0.0, %v218
  %v220 = vpop.f32.mrb[0].mxu0
  %221 = vmatprep.mubr.bf16.mxu0 0
  %222 = vmatmul.mubr.bf16.gmra.mrb[0].mxu0 %v90
  %v223 = vpop.f32.mrb[0].mxu0
  %v224 = vadd.f32 0.0, %v223
  %v225 = vpop.f32.mrb[0].mxu0
  %v226 = vpop.f32.mrb[0].mxu0
  %v227 = vadd.f32 0.0, %v226
  %v228 = vpop.f32.mrb[0].mxu0
  %229 = vmatprep.mubr.bf16.mxu0 0
  %230 = vmatmul.mubr.bf16.gmra.mrb[0].mxu0 %v91
  %v231 = vpop.f32.mrb[0].mxu0
  %v232 = vadd.f32 0.0, %v231
  %v233 = vpop.f32.mrb[0].mxu0
  %v234 = vpop.f32.mrb[0].mxu0
  %v235 = vadd.f32 0.0, %v234
  %v236 = vpop.f32.mrb[0].mxu0
  %237 = vmatprep.mubr.bf16.mxu0 0
  %238 = vmatmul.mubr.bf16.gmra.mrb[0].mxu0 %v92
  %v239 = vpop.f32.mrb[0].mxu0
  %v240 = vadd.f32 0.0, %v239
  %v241 = vpop.f32.mrb[0].mxu0
  %v242 = vpop.f32.mrb[0].mxu0
  %v243 = vadd.f32 0.0, %v242
  %v244 = vpop.f32.mrb[0].mxu0
  %245 = vdwg.mxu0
  %v246 = vadd.f32 %v184, %v187
  %v247 = vadd.f32 %v246, %v192
  %v248 = vadd.f32 %v247, %v195
  %v249 = vadd.f32 %v248, %v200
  %v250 = vadd.f32 %v249, %v203
  %v251 = vadd.f32 %v250, %v208
  %v252 = vadd.f32 %v251, %v211
  %v253 = vadd.f32 %v252, %v216
  %v254 = vadd.f32 %v253, %v219
  %v255 = vadd.f32 %v254, %v224
  %v256 = vadd.f32 %v255, %v227
  %v257 = vadd.f32 %v256, %v232
  %v258 = vadd.f32 %v257, %v235
  %v259 = vadd.f32 %v258, %v240
  %v260 = vadd.f32 %v259, %v243
  %v261 = vrot.slane %v260, 4
  %v262 = vadd.f32 %v260, %v261
  %v263 = vrot.slane %v262, 2
  %v264 = vadd.f32 %v262, %v263
  %v265 = vrot.slane %v264, 1
  %v266 = vadd.f32 %v264, %v265
  %v267 = vmul.f32 %v184, %v184
  %v268 = vmul.f32 %v187, %v187
  %v269 = vmul.f32 %v192, %v192
  %v270 = vmul.f32 %v195, %v195
  %v271 = vmul.f32 %v200, %v200
  %v272 = vmul.f32 %v203, %v203
  %v273 = vmul.f32 %v208, %v208
  %v274 = vmul.f32 %v211, %v211
  %v275 = vmul.f32 %v216, %v216
  %v276 = vmul.f32 %v219, %v219
  %v277 = vmul.f32 %v224, %v224
  %v278 = vmul.f32 %v227, %v227
  %v279 = vmul.f32 %v232, %v232
  %v280 = vmul.f32 %v235, %v235
  %v281 = vmul.f32 %v240, %v240
  %v282 = vmul.f32 %v243, %v243
  %v283 = vadd.f32 %v267, %v268
  %v284 = vadd.f32 %v283, %v269
  %v285 = vadd.f32 %v284, %v270
  %v286 = vadd.f32 %v285, %v271
  %v287 = vadd.f32 %v286, %v272
  %v288 = vadd.f32 %v287, %v273
  %v289 = vadd.f32 %v288, %v274
  %v290 = vadd.f32 %v289, %v275
  %v291 = vadd.f32 %v290, %v276
  %v292 = vadd.f32 %v291, %v277
  %v293 = vadd.f32 %v292, %v278
  %v294 = vadd.f32 %v293, %v279
  %v295 = vadd.f32 %v294, %v280
  %v296 = vadd.f32 %v295, %v281
  %v297 = vadd.f32 %v296, %v282
  %v298 = vrot.slane %v297, 4
  %v299 = vadd.f32 %v297, %v298
  %v300 = vrot.slane %v299, 2
  %v301 = vadd.f32 %v299, %v300
  %v302 = vrot.slane %v301, 1
  %v303 = vadd.f32 %v301, %v302
  %v304 = vld [vmem:[%s4] sm:$0xff]
  %v305 = vld [vmem:[%s4 + $0x8] sm:$0xff]
  %v306 = vld [vmem:[%s4 + $0x10] sm:$0xff]
  %v307 = vld [vmem:[%s4 + $0x18] sm:$0xff]
  %v308 = vld [vmem:[%s4 + $0x20] sm:$0xff]
  %v309 = vld [vmem:[%s4 + $0x28] sm:$0xff]
  %v310 = vld [vmem:[%s4 + $0x30] sm:$0xff]
  %v311 = vld [vmem:[%s4 + $0x38] sm:$0xff]
  %v312 = vld [vmem:[%s4 + $0x40] sm:$0xff]
  %v313 = vld [vmem:[%s4 + $0x48] sm:$0xff]
  %v314 = vld [vmem:[%s4 + $0x50] sm:$0xff]
  %v315 = vld [vmem:[%s4 + $0x58] sm:$0xff]
  %v316 = vld [vmem:[%s4 + $0x60] sm:$0xff]
  %v317 = vld [vmem:[%s4 + $0x68] sm:$0xff]
  %v318 = vld [vmem:[%s4 + $0x70] sm:$0xff]
  %v319 = vld [vmem:[%s4 + $0x78] sm:$0xff]
  %320 = vmatprep.subr.mxu0 0.0
  %321 = vmatpush1.msra.mxu0 %v304
  %322 = vmatprep.subr.mxu0 0.0
  %323 = vmatpush1.msra.mxu0 %v305
  %324 = vmatprep.subr.mxu0 0.0
  %325 = vmatpush1.msra.mxu0 %v306
  %326 = vmatprep.subr.mxu0 0.0
  %327 = vmatpush1.msra.mxu0 %v307
  %328 = vmatprep.subr.mxu0 0.0
  %329 = vmatpush1.msra.mxu0 %v308
  %330 = vmatprep.subr.mxu0 0.0
  %331 = vmatpush1.msra.mxu0 %v309
  %332 = vmatprep.subr.mxu0 0.0
  %333 = vmatpush1.msra.mxu0 %v310
  %334 = vmatprep.subr.mxu0 0.0
  %335 = vmatpush1.msra.mxu0 %v311
  %336 = vmatprep.subr.mxu0 0.0
  %337 = vmatpush1.msra.mxu0 %v312
  %338 = vmatprep.subr.mxu0 0.0
  %339 = vmatpush1.msra.mxu0 %v313
  %340 = vmatprep.subr.mxu0 0.0
  %341 = vmatpush1.msra.mxu0 %v314
  %342 = vmatprep.subr.mxu0 0.0
  %343 = vmatpush1.msra.mxu0 %v315
  %344 = vmatprep.subr.mxu0 0.0
  %345 = vmatpush1.msra.mxu0 %v316
  %346 = vmatprep.subr.mxu0 0.0
  %347 = vmatpush1.msra.mxu0 %v317
  %348 = vmatprep.subr.mxu0 0.0
  %349 = vmatpush1.msra.mxu0 %v318
  %350 = vmatprep.subr.mxu0 0.0
  %351 = vmatpush1.msra.mxu0 %v319
  %352 = vmatprep.subr.mxu0 0.0
  %353 = vmatpush1.msra.mxu0 0.0
  %354 = vmatprep.subr.mxu0 0.0
  %355 = vmatpush1.msra.mxu0 0.0
  %356 = vmatprep.subr.mxu0 0.0
  %357 = vmatpush1.msra.mxu0 0.0
  %358 = vmatprep.subr.mxu0 0.0
  %359 = vmatpush1.msra.mxu0 0.0
  %360 = vmatprep.subr.mxu0 0.0
  %361 = vmatpush1.msra.mxu0 0.0
  %362 = vmatprep.subr.mxu0 0.0
  %363 = vmatpush1.msra.mxu0 0.0
  %364 = vmatprep.subr.mxu0 0.0
  %365 = vmatpush1.msra.mxu0 0.0
  %366 = vmatprep.subr.mxu0 0.0
  %367 = vmatpush1.msra.mxu0 0.0
  %368 = vmatprep.subr.mxu0 0.0
  %369 = vmatpush1.msra.mxu0 0.0
  %370 = vmatprep.subr.mxu0 0.0
  %371 = vmatpush1.msra.mxu0 0.0
  %372 = vmatprep.subr.mxu0 0.0
  %373 = vmatpush1.msra.mxu0 0.0
  %374 = vmatprep.subr.mxu0 0.0
  %375 = vmatpush1.msra.mxu0 0.0
  %376 = vmatprep.subr.mxu0 0.0
  %377 = vmatpush1.msra.mxu0 0.0
  %378 = vmatprep.subr.mxu0 0.0
  %379 = vmatpush1.msra.mxu0 0.0
  %380 = vmatprep.subr.mxu0 0.0
  %381 = vmatpush1.msra.mxu0 0.0
  %382 = vmatprep.subr.mxu0 0.0
  %383 = vmatpush1.msra.mxu0 0.0
  %384 = vmatprep.mubr.f32.mxu0 0.0
  %385 = vmatmul.mubr.f32.gmra.mrb[0].mxu0 %v266
  %v386 = vpop.f32.mrb[0].mxu0
  %v387 = vadd.f32 0.0, %v386
  %v388 = vpop.f32.mrb[0].mxu0
  %389 = vdwg.mxu0
  %390 = vmatprep.subr.mxu0 0.0
  %391 = vmatpush1.msra.mxu0 %v304
  %392 = vmatprep.subr.mxu0 0.0
  %393 = vmatpush1.msra.mxu0 %v305
  %394 = vmatprep.subr.mxu0 0.0
  %395 = vmatpush1.msra.mxu0 %v306
  %396 = vmatprep.subr.mxu0 0.0
  %397 = vmatpush1.msra.mxu0 %v307
  %398 = vmatprep.subr.mxu0 0.0
  %399 = vmatpush1.msra.mxu0 %v308
  %400 = vmatprep.subr.mxu0 0.0
  %401 = vmatpush1.msra.mxu0 %v309
  %402 = vmatprep.subr.mxu0 0.0
  %403 = vmatpush1.msra.mxu0 %v310
  %404 = vmatprep.subr.mxu0 0.0
  %405 = vmatpush1.msra.mxu0 %v311
  %406 = vmatprep.subr.mxu0 0.0
  %407 = vmatpush1.msra.mxu0 %v312
  %408 = vmatprep.subr.mxu0 0.0
  %409 = vmatpush1.msra.mxu0 %v313
  %410 = vmatprep.subr.mxu0 0.0
  %411 = vmatpush1.msra.mxu0 %v314
  %412 = vmatprep.subr.mxu0 0.0
  %413 = vmatpush1.msra.mxu0 %v315
  %414 = vmatprep.subr.mxu0 0.0
  %415 = vmatpush1.msra.mxu0 %v316
  %416 = vmatprep.subr.mxu0 0.0
  %417 = vmatpush1.msra.mxu0 %v317
  %418 = vmatprep.subr.mxu0 0.0
  %419 = vmatpush1.msra.mxu0 %v318
  %420 = vmatprep.subr.mxu0 0.0
  %421 = vmatpush1.msra.mxu0 %v319
  %422 = vmatprep.subr.mxu0 0.0
  %423 = vmatpush1.msra.mxu0 0.0
  %424 = vmatprep.subr.mxu0 0.0
  %425 = vmatpush1.msra.mxu0 0.0
  %426 = vmatprep.subr.mxu0 0.0
  %427 = vmatpush1.msra.mxu0 0.0
  %428 = vmatprep.subr.mxu0 0.0
  %429 = vmatpush1.msra.mxu0 0.0
  %430 = vmatprep.subr.mxu0 0.0
  %431 = vmatpush1.msra.mxu0 0.0
  %432 = vmatprep.subr.mxu0 0.0
  %433 = vmatpush1.msra.mxu0 0.0
  %434 = vmatprep.subr.mxu0 0.0
  %435 = vmatpush1.msra.mxu0 0.0
  %436 = vmatprep.subr.mxu0 0.0
  %437 = vmatpush1.msra.mxu0 0.0
  %438 = vmatprep.subr.mxu0 0.0
  %439 = vmatpush1.msra.mxu0 0.0
  %440 = vmatprep.subr.mxu0 0.0
  %441 = vmatpush1.msra.mxu0 0.0
  %442 = vmatprep.subr.mxu0 0.0
  %443 = vmatpush1.msra.mxu0 0.0
  %444 = vmatprep.subr.mxu0 0.0
  %445 = vmatpush1.msra.mxu0 0.0
  %446 = vmatprep.subr.mxu0 0.0
  %447 = vmatpush1.msra.mxu0 0.0
  %448 = vmatprep.subr.mxu0 0.0
  %449 = vmatpush1.msra.mxu0 0.0
  %450 = vmatprep.subr.mxu0 0.0
  %451 = vmatpush1.msra.mxu0 0.0
  %452 = vmatprep.subr.mxu0 0.0
  %453 = vmatpush1.msra.mxu0 0.0
  %454 = vmatprep.mubr.f32.mxu0 0.0
  %455 = vmatmul.mubr.f32.gmra.mrb[0].mxu0 %v303
  %v456 = vpop.f32.mrb[0].mxu0
  %v457 = vadd.f32 0.0, %v456
  %v458 = vpop.f32.mrb[0].mxu0
  %459 = vdwg.mxu0
  %v460 = vmul.f32 %v387, %v387
  %v461 = vsub.f32 %v457, %v460
  %v462 = vmax.f32 %v461, 0.0
  %v463 = vld [vmem:[%s2] sm:$0x1]
  %v464 = vadd.f32 %v462, 1e-05
  %v465 = vrsqrt.pop %v464
  %v466 = vmul.f32 %v463, %v465
  %v467 = vld [vmem:[%s3] sm:$0x1]
  %v468 = vmul.f32 %v387, %v466
  %v469 = vsub.f32 %v467, %v468
  %v471 = vlaneseq
  %v472 = vshrl.u32 %v471, 7
  %v473 = vsub.s32 0, %v472
  %v474 = vrot.slane %v466, %v473
  %v476 = vmul.f32 %v184, %v474
  %v477 = vmul.f32 %v187, %v474
  %v478 = vmul.f32 %v192, %v474
  %v479 = vmul.f32 %v195, %v474
  %v480 = vmul.f32 %v200, %v474
  %v481 = vmul.f32 %v203, %v474
  %v482 = vmul.f32 %v208, %v474
  %v483 = vmul.f32 %v211, %v474
  %v484 = vmul.f32 %v216, %v474
  %v485 = vmul.f32 %v219, %v474
  %v486 = vmul.f32 %v224, %v474
  %v487 = vmul.f32 %v227, %v474
  %v488 = vmul.f32 %v232, %v474
  %v489 = vmul.f32 %v235, %v474
  %v490 = vmul.f32 %v240, %v474
  %v491 = vmul.f32 %v243, %v474
  %v493 = vlaneseq
  %v494 = vshrl.u32 %v493, 7
  %v495 = vsub.s32 0, %v494
  %v496 = vrot.slane %v469, %v495
  %v498 = vadd.f32 %v476, %v496
  %v499 = vadd.f32 %v477, %v496
  %v500 = vadd.f32 %v478, %v496
  %v501 = vadd.f32 %v479, %v496
  %v502 = vadd.f32 %v480, %v496
  %v503 = vadd.f32 %v481, %v496
  %v504 = vadd.f32 %v482, %v496
  %v505 = vadd.f32 %v483, %v496
  %v506 = vadd.f32 %v484, %v496
  %v507 = vadd.f32 %v485, %v496
  %v508 = vadd.f32 %v486, %v496
  %v509 = vadd.f32 %v487, %v496
  %v510 = vadd.f32 %v488, %v496
  %v511 = vadd.f32 %v489, %v496
  %v512 = vadd.f32 %v490, %v496
  %v513 = vadd.f32 %v491, %v496
  %vm514 = vcmp.ge.f32.partialorder %v498, 0.0
  %vm515 = vcmp.ge.f32.partialorder %v499, 0.0
  %vm516 = vcmp.ge.f32.partialorder %v500, 0.0
  %vm517 = vcmp.ge.f32.partialorder %v501, 0.0
  %vm518 = vcmp.ge.f32.partialorder %v502, 0.0
  %vm519 = vcmp.ge.f32.partialorder %v503, 0.0
  %vm520 = vcmp.ge.f32.partialorder %v504, 0.0
  %vm521 = vcmp.ge.f32.partialorder %v505, 0.0
  %vm522 = vcmp.ge.f32.partialorder %v506, 0.0
  %vm523 = vcmp.ge.f32.partialorder %v507, 0.0
  %vm524 = vcmp.ge.f32.partialorder %v508, 0.0
  %vm525 = vcmp.ge.f32.partialorder %v509, 0.0
  %vm526 = vcmp.ge.f32.partialorder %v510, 0.0
  %vm527 = vcmp.ge.f32.partialorder %v511, 0.0
  %vm528 = vcmp.ge.f32.partialorder %v512, 0.0
  %vm529 = vcmp.ge.f32.partialorder %v513, 0.0
  %v530 = vmul.f32 %v498, 0.05
  %v531 = vmul.f32 %v499, 0.05
  %v532 = vmul.f32 %v500, 0.05
  %v533 = vmul.f32 %v501, 0.05
  %v534 = vmul.f32 %v502, 0.05
  %v535 = vmul.f32 %v503, 0.05
  %v536 = vmul.f32 %v504, 0.05
  %v537 = vmul.f32 %v505, 0.05
  %v538 = vmul.f32 %v506, 0.05
  %v539 = vmul.f32 %v507, 0.05
  %v540 = vmul.f32 %v508, 0.05
  %v541 = vmul.f32 %v509, 0.05
  %v542 = vmul.f32 %v510, 0.05
  %v543 = vmul.f32 %v511, 0.05
  %v544 = vmul.f32 %v512, 0.05
  %v545 = vmul.f32 %v513, 0.05
  %v546 = vsel %vm514, %v498, %v530
  %v547 = vsel %vm515, %v499, %v531
  %v548 = vsel %vm516, %v500, %v532
  %v549 = vsel %vm517, %v501, %v533
  %v550 = vsel %vm518, %v502, %v534
  %v551 = vsel %vm519, %v503, %v535
  %v552 = vsel %vm520, %v504, %v536
  %v553 = vsel %vm521, %v505, %v537
  %v554 = vsel %vm522, %v506, %v538
  %v555 = vsel %vm523, %v507, %v539
  %v556 = vsel %vm524, %v508, %v540
  %v557 = vsel %vm525, %v509, %v541
  %v558 = vsel %vm526, %v510, %v542
  %v559 = vsel %vm527, %v511, %v543
  %v560 = vsel %vm528, %v512, %v544
  %v561 = vsel %vm529, %v513, %v545
  %v562 = vpack.c.bf16 %v547, %v546
  %v563 = vpack.c.bf16 %v549, %v548
  %v564 = vpack.c.bf16 %v551, %v550
  %v565 = vpack.c.bf16 %v553, %v552
  %v566 = vpack.c.bf16 %v555, %v554
  %v567 = vpack.c.bf16 %v557, %v556
  %v568 = vpack.c.bf16 %v559, %v558
  %v569 = vpack.c.bf16 %v561, %v560
  %v578 = vunpack.c.l.b16 %v562
  %v579 = vunpack.c.h.b16 %v562
  %v580 = vunpack.c.l.b16 %v563
  %v581 = vunpack.c.h.b16 %v563
  %v582 = vunpack.c.l.b16 %v564
  %v583 = vunpack.c.h.b16 %v564
  %v584 = vunpack.c.l.b16 %v565
  %v585 = vunpack.c.h.b16 %v565
  %v586 = vunpack.c.l.b16 %v566
  %v587 = vunpack.c.h.b16 %v566
  %v588 = vunpack.c.l.b16 %v567
  %v589 = vunpack.c.h.b16 %v567
  %v590 = vunpack.c.l.b16 %v568
  %v591 = vunpack.c.h.b16 %v568
  %v592 = vunpack.c.l.b16 %v569
  %v593 = vunpack.c.h.b16 %v569
  %v594 = vpack.c.b16 %v578, %v578
  %v595 = vpack.c.b16 %v579, %v579
  %v596 = vpack.c.b16 %v580, %v580
  %v597 = vpack.c.b16 %v581, %v581
  %v598 = vpack.c.b16 %v582, %v582
  %v599 = vpack.c.b16 %v583, %v583
  %v600 = vpack.c.b16 %v584, %v584
  %v601 = vpack.c.b16 %v585, %v585
  %v602 = vpack.c.b16 %v586, %v586
  %v603 = vpack.c.b16 %v587, %v587
  %v604 = vpack.c.b16 %v588, %v588
  %v605 = vpack.c.b16 %v589, %v589
  %v606 = vpack.c.b16 %v590, %v590
  %v607 = vpack.c.b16 %v591, %v591
  %v608 = vpack.c.b16 %v592, %v592
  %v609 = vpack.c.b16 %v593, %v593
  %626 = vst [vmem:[%s5] sm:$0xf] %v594
  %627 = vst [vmem:[%s5 + $0x4] sm:$0xf] %v595
  %628 = vst [vmem:[%s5 + $0x8] sm:$0xf] %v596
  %629 = vst [vmem:[%s5 + $0xc] sm:$0xf] %v597
  %630 = vst [vmem:[%s5 + $0x10] sm:$0xf] %v598
  %631 = vst [vmem:[%s5 + $0x14] sm:$0xf] %v599
  %632 = vst [vmem:[%s5 + $0x18] sm:$0xf] %v600
  %633 = vst [vmem:[%s5 + $0x1c] sm:$0xf] %v601
  %634 = vst [vmem:[%s5 + $0x20] sm:$0xf] %v602
  %635 = vst [vmem:[%s5 + $0x24] sm:$0xf] %v603
  %636 = vst [vmem:[%s5 + $0x28] sm:$0xf] %v604
  %637 = vst [vmem:[%s5 + $0x2c] sm:$0xf] %v605
  %638 = vst [vmem:[%s5 + $0x30] sm:$0xf] %v606
  %639 = vst [vmem:[%s5 + $0x34] sm:$0xf] %v607
  %640 = vst [vmem:[%s5 + $0x38] sm:$0xf] %v608
  %641 = vst [vmem:[%s5 + $0x3c] sm:$0xf] %v609
  // Predicated region
  $region22: #{g22_forward.6} parent=0 // pred_check
    _
  $region23: #{g22_forward.6} parent=0 // pred_check_branch
    %643 = sbr.rel (0) target = $region25
  $region24: #{g22_forward.6} parent=0 // pred_region
    _
  $region25: #{g22_forward.6} parent=0 // pred_fallthru
    _
  // Predicated region
  $region26: #{g22_forward.6} parent=0 // pred_check
    _
  $region27: #{g22_forward.6} parent=0 // pred_check_branch
    %645 = sbr.rel (0) target = $region29
  $region28: #{g22_forward.6} parent=0 // pred_region
    _
  $region29: #{g22_forward.6} parent=0 // pred_fallthru
    _

// kernel: g22_forward.8
$region0: #{g22_forward.8}
  #allocation0 [shape = 'u32[]', space=smem, size = 0x4, offset = 0x4, fixed_abs, tag = 'smem constant byte address 0x4 - core index']
  #allocation1 [shape = 'u32[144,128]{1,0:T(1,128)}', space=vmem, size = 0x12000, scoped, tag = 'internal scratch']
  %s0 = inlined_call_operand.vmem [shape: bf16[32,1152], index: 0, kind: input, shape index: {}]
  %s1 = inlined_call_operand.vmem [shape: bf16[1152,128], index: 1, kind: input, shape index: {}]
  %s2 = inlined_call_operand.vmem [shape: f32[1,128], index: 2, kind: input, shape index: {}]
  %s3 = inlined_call_operand.vmem [shape: f32[1,128], index: 3, kind: input, shape index: {}]
  %s4 = inlined_call_operand.vmem [shape: f32[128,128], index: 4, kind: input, shape index: {}]
  %s5 = inlined_call_operand.vmem [shape: bf16[32,128], index: 5, kind: output, shape index: {}]
  %s6 = sld [smem:[#allocation0]]
  $region30: #{g22_forward.8} parent=0
    _
  %s8 = ssub.s32 1, %s6
  %s9 = scalar_select 0, %s8, %s6
  // Predicated region
  $region2: #{g22_forward.8} parent=0 // pred_check
    _
  $region3: #{g22_forward.8} parent=0 // pred_check_branch
    %11 = sbr.rel (0) target = $region5
  $region4: #{g22_forward.8} parent=0 // pred_region
    _
  $region5: #{g22_forward.8} parent=0 // pred_fallthru
    _
  // Predicated region
  $region6: #{g22_forward.8} parent=0 // pred_check
    _
  $region7: #{g22_forward.8} parent=0 // pred_check_branch
    %13 = sbr.rel (0) target = $region9
  $region8: #{g22_forward.8} parent=0 // pred_region
    _
  $region9: #{g22_forward.8} parent=0 // pred_fallthru
    _
  // Predicated region
  $region10: #{g22_forward.8} parent=0 // pred_check
    _
  $region11: #{g22_forward.8} parent=0 // pred_check_branch
    %15 = sbr.rel (0) target = $region13
  $region12: #{g22_forward.8} parent=0 // pred_region
    _
  $region13: #{g22_forward.8} parent=0 // pred_fallthru
    _
  // Predicated region
  $region14: #{g22_forward.8} parent=0 // pred_check
    _
  $region15: #{g22_forward.8} parent=0 // pred_check_branch
    %17 = sbr.rel (0) target = $region17
  $region16: #{g22_forward.8} parent=0 // pred_region
    _
  $region17: #{g22_forward.8} parent=0 // pred_fallthru
    _
  // Predicated region
  $region18: #{g22_forward.8} parent=0 // pred_check
    _
  $region19: #{g22_forward.8} parent=0 // pred_check_branch
    %19 = sbr.rel (0) target = $region21
  $region20: #{g22_forward.8} parent=0 // pred_region
    _
  $region21: #{g22_forward.8} parent=0 // pred_fallthru
    _
  %v21 = vld [vmem:[%s0] sm:$0xff]
  %v22 = vld [vmem:[%s0 + $0x8] sm:$0xff]
  %v23 = vld [vmem:[%s0 + $0x10] sm:$0xff]
  %v24 = vld [vmem:[%s0 + $0x18] sm:$0xff]
  %v25 = vld [vmem:[%s0 + $0x20] sm:$0xf]
  %v26 = vld [vmem:[%s0 + $0x24] sm:$0xff]
  %v27 = vld [vmem:[%s0 + $0x2c] sm:$0xff]
  %v28 = vld [vmem:[%s0 + $0x34] sm:$0xff]
  %v29 = vld [vmem:[%s0 + $0x3c] sm:$0xff]
  %v30 = vld [vmem:[%s0 + $0x44] sm:$0xf]
  %v31 = vld [vmem:[%s0 + $0x48] sm:$0xff]
  %v32 = vld [vmem:[%s0 + $0x50] sm:$0xff]
  %v33 = vld [vmem:[%s0 + $0x58] sm:$0xff]
  %v34 = vld [vmem:[%s0 + $0x60] sm:$0xff]
  %v35 = vld [vmem:[%s0 + $0x68] sm:$0xf]
  %v36 = vld [vmem:[%s0 + $0x6c] sm:$0xff]
  %v37 = vld [vmem:[%s0 + $0x74] sm:$0xff]
  %v38 = vld [vmem:[%s0 + $0x7c] sm:$0xff]
  %v39 = vld [vmem:[%s0 + $0x84] sm:$0xff]
  %v40 = vld [vmem:[%s0 + $0x8c] sm:$0xf]
  %v41 = vld [vmem:[%s1] sm:$0xf]
  %v42 = vld [vmem:[%s1 + $0x4] sm:$0xf]
  %v43 = vld [vmem:[%s1 + $0x8] sm:$0xf]
  %v44 = vld [vmem:[%s1 + $0xc] sm:$0xf]
  %v45 = vld [vmem:[%s1 + $0x10] sm:$0xf]
  %v46 = vld [vmem:[%s1 + $0x14] sm:$0xf]
  %v47 = vld [vmem:[%s1 + $0x18] sm:$0xf]
  %v48 = vld [vmem:[%s1 + $0x1c] sm:$0xf]
  %v49 = vld [vmem:[%s1 + $0x20] sm:$0xf]
  %v50 = vld [vmem:[%s1 + $0x24] sm:$0xf]
  %v51 = vld [vmem:[%s1 + $0x28] sm:$0xf]
  %v52 = vld [vmem:[%s1 + $0x2c] sm:$0xf]
  %v53 = vld [vmem:[%s1 + $0x30] sm:$0xf]
  %v54 = vld [vmem:[%s1 + $0x34] sm:$0xf]
  %v55 = vld [vmem:[%s1 + $0x38] sm:$0xf]
  %v56 = vld [vmem:[%s1 + $0x3c] sm:$0xf]
  %v57 = vld [vmem:[%s1 + $0x40] sm:$0xf]
  %v58 = vld [vmem:[%s1 + $0x44] sm:$0xf]
  %v59 = vld [vmem:[%s1 + $0x48] sm:$0xf]
  %v60 = vld [vmem:[%s1 + $0x4c] sm:$0xf]
  %v61 = vld [vmem:[%s1 + $0x50] sm:$0xf]
  %v62 = vld [vmem:[%s1 + $0x54] sm:$0xf]
  %v63 = vld [vmem:[%s1 + $0x58] sm:$0xf]
  %v64 = vld [vmem:[%s1 + $0x5c] sm:$0xf]
  %v65 = vld [vmem:[%s1 + $0x60] sm:$0xf]
  %v66 = vld [vmem:[%s1 + $0x64] sm:$0xf]
  %v67 = vld [vmem:[%s1 + $0x68] sm:$0xf]
  %v68 = vld [vmem:[%s1 + $0x6c] sm:$0xf]
  %v69 = vld [vmem:[%s1 + $0x70] sm:$0xf]
  %v70 = vld [vmem:[%s1 + $0x74] sm:$0xf]
  %v71 = vld [vmem:[%s1 + $0x78] sm:$0xf]
  %v72 = vld [vmem:[%s1 + $0x7c] sm:$0xf]
  %v73 = vld [vmem:[%s1 + $0x80] sm:$0xf]
  %v74 = vld [vmem:[%s1 + $0x84] sm:$0xf]
  %v75 = vld [vmem:[%s1 + $0x88] sm:$0xf]
  %v76 = vld [vmem:[%s1 + $0x8c] sm:$0xf]
  %v77 = vld [vmem:[%s1 + $0x90] sm:$0xf]
  %v78 = vld [vmem:[%s1 + $0x94] sm:$0xf]
  %v79 = vld [vmem:[%s1 + $0x98] sm:$0xf]
  %v80 = vld [vmem:[%s1 + $0x9c] sm:$0xf]
  %v81 = vld [vmem:[%s1 + $0xa0] sm:$0xf]
  %v82 = vld [vmem:[%s1 + $0xa4] sm:$0xf]
  %v83 = vld [vmem:[%s1 + $0xa8] sm:$0xf]
  %v84 = vld [vmem:[%s1 + $0xac] sm:$0xf]
  %v85 = vld [vmem:[%s1 + $0xb0] sm:$0xf]
  %v86 = vld [vmem:[%s1 + $0xb4] sm:$0xf]
  %v87 = vld [vmem:[%s1 + $0xb8] sm:$0xf]
  %v88 = vld [vmem:[%s1 + $0xbc] sm:$0xf]
  %v89 = vld [vmem:[%s1 + $0xc0] sm:$0xf]
  %v90 = vld [vmem:[%s1 + $0xc4] sm:$0xf]
  %v91 = vld [vmem:[%s1 + $0xc8] sm:$0xf]
  %v92 = vld [vmem:[%s1 + $0xcc] sm:$0xf]
  %v93 = vld [vmem:[%s1 + $0xd0] sm:$0xf]
  %v94 = vld [vmem:[%s1 + $0xd4] sm:$0xf]
  %v95 = vld [vmem:[%s1 + $0xd8] sm:$0xf]
  %v96 = vld [vmem:[%s1 + $0xdc] sm:$0xf]
  %v97 = vld [vmem:[%s1 + $0xe0] sm:$0xf]
  %v98 = vld [vmem:[%s1 + $0xe4] sm:$0xf]
  %v99 = vld [vmem:[%s1 + $0xe8] sm:$0xf]
  %v100 = vld [vmem:[%s1 + $0xec] sm:$0xf]
  %v101 = vld [vmem:[%s1 + $0xf0] sm:$0xf]
  %v102 = vld [vmem:[%s1 + $0xf4] sm:$0xf]
  %v103 = vld [vmem:[%s1 + $0xf8] sm:$0xf]
  %v104 = vld [vmem:[%s1 + $0xfc] sm:$0xf]
  %v105 = vld [vmem:[%s1 + $0x100] sm:$0xf]
  %v106 = vld [vmem:[%s1 + $0x104] sm:$0xf]
  %v107 = vld [vmem:[%s1 + $0x108] sm:$0xf]
  %v108 = vld [vmem:[%s1 + $0x10c] sm:$0xf]
  %v109 = vld [vmem:[%s1 + $0x110] sm:$0xf]
  %v110 = vld [vmem:[%s1 + $0x114] sm:$0xf]
  %v111 = vld [vmem:[%s1 + $0x118] sm:$0xf]
  %v112 = vld [vmem:[%s1 + $0x11c] sm:$0xf]
  %v113 = vld [vmem:[%s1 + $0x120] sm:$0xf]
  %v114 = vld [vmem:[%s1 + $0x124] sm:$0xf]
  %v115 = vld [vmem:[%s1 + $0x128] sm:$0xf]
  %v116 = vld [vmem:[%s1 + $0x12c] sm:$0xf]
  %v117 = vld [vmem:[%s1 + $0x130] sm:$0xf]
  %v118 = vld [vmem:[%s1 + $0x134] sm:$0xf]
  %v119 = vld [vmem:[%s1 + $0x138] sm:$0xf]
  %v120 = vld [vmem:[%s1 + $0x13c] sm:$0xf]
  %v121 = vld [vmem:[%s1 + $0x140] sm:$0xf]
  %v122 = vld [vmem:[%s1 + $0x144] sm:$0xf]
  %v123 = vld [vmem:[%s1 + $0x148] sm:$0xf]
  %v124 = vld [vmem:[%s1 + $0x14c] sm:$0xf]
  %v125 = vld [vmem:[%s1 + $0x150] sm:$0xf]
  %v126 = vld [vmem:[%s1 + $0x154] sm:$0xf]
  %v127 = vld [vmem:[%s1 + $0x158] sm:$0xf]
  %v128 = vld [vmem:[%s1 + $0x15c] sm:$0xf]
  %v129 = vld [vmem:[%s1 + $0x160] sm:$0xf]
  %v130 = vld [vmem:[%s1 + $0x164] sm:$0xf]
  %v131 = vld [vmem:[%s1 + $0x168] sm:$0xf]
  %v132 = vld [vmem:[%s1 + $0x16c] sm:$0xf]
  %v133 = vld [vmem:[%s1 + $0x170] sm:$0xf]
  %v134 = vld [vmem:[%s1 + $0x174] sm:$0xf]
  %v135 = vld [vmem:[%s1 + $0x178] sm:$0xf]
  %v136 = vld [vmem:[%s1 + $0x17c] sm:$0xf]
  %v137 = vld [vmem:[%s1 + $0x180] sm:$0xf]
  %v138 = vld [vmem:[%s1 + $0x184] sm:$0xf]
  %v139 = vld [vmem:[%s1 + $0x188] sm:$0xf]
  %v140 = vld [vmem:[%s1 + $0x18c] sm:$0xf]
  %v141 = vld [vmem:[%s1 + $0x190] sm:$0xf]
  %v142 = vld [vmem:[%s1 + $0x194] sm:$0xf]
  %v143 = vld [vmem:[%s1 + $0x198] sm:$0xf]
  %v144 = vld [vmem:[%s1 + $0x19c] sm:$0xf]
  %v145 = vld [vmem:[%s1 + $0x1a0] sm:$0xf]
  %v146 = vld [vmem:[%s1 + $0x1a4] sm:$0xf]
  %v147 = vld [vmem:[%s1 + $0x1a8] sm:$0xf]
  %v148 = vld [vmem:[%s1 + $0x1ac] sm:$0xf]
  %v149 = vld [vmem:[%s1 + $0x1b0] sm:$0xf]
  %v150 = vld [vmem:[%s1 + $0x1b4] sm:$0xf]
  %v151 = vld [vmem:[%s1 + $0x1b8] sm:$0xf]
  %v152 = vld [vmem:[%s1 + $0x1bc] sm:$0xf]
  %v153 = vld [vmem:[%s1 + $0x1c0] sm:$0xf]
  %v154 = vld [vmem:[%s1 + $0x1c4] sm:$0xf]
  %v155 = vld [vmem:[%s1 + $0x1c8] sm:$0xf]
  %v156 = vld [vmem:[%s1 + $0x1cc] sm:$0xf]
  %v157 = vld [vmem:[%s1 + $0x1d0] sm:$0xf]
  %v158 = vld [vmem:[%s1 + $0x1d4] sm:$0xf]
  %v159 = vld [vmem:[%s1 + $0x1d8] sm:$0xf]
  %v160 = vld [vmem:[%s1 + $0x1dc] sm:$0xf]
  %v161 = vld [vmem:[%s1 + $0x1e0] sm:$0xf]
  %v162 = vld [vmem:[%s1 + $0x1e4] sm:$0xf]
  %v163 = vld [vmem:[%s1 + $0x1e8] sm:$0xf]
  %v164 = vld [vmem:[%s1 + $0x1ec] sm:$0xf]
  %v165 = vld [vmem:[%s1 + $0x1f0] sm:$0xf]
  %v166 = vld [vmem:[%s1 + $0x1f4] sm:$0xf]
  %v167 = vld [vmem:[%s1 + $0x1f8] sm:$0xf]
  %v168 = vld [vmem:[%s1 + $0x1fc] sm:$0xf]
  %v169 = vld [vmem:[%s1 + $0x200] sm:$0xf]
  %v170 = vld [vmem:[%s1 + $0x204] sm:$0xf]
  %v171 = vld [vmem:[%s1 + $0x208] sm:$0xf]
  %v172 = vld [vmem:[%s1 + $0x20c] sm:$0xf]
  %v173 = vld [vmem:[%s1 + $0x210] sm:$0xf]
  %v174 = vld [vmem:[%s1 + $0x214] sm:$0xf]
  %v175 = vld [vmem:[%s1 + $0x218] sm:$0xf]
  %v176 = vld [vmem:[%s1 + $0x21c] sm:$0xf]
  %v177 = vld [vmem:[%s1 + $0x220] sm:$0xf]
  %v178 = vld [vmem:[%s1 + $0x224] sm:$0xf]
  %v179 = vld [vmem:[%s1 + $0x228] sm:$0xf]
  %v180 = vld [vmem:[%s1 + $0x22c] sm:$0xf]
  %v181 = vld [vmem:[%s1 + $0x230] sm:$0xf]
  %v182 = vld [vmem:[%s1 + $0x234] sm:$0xf]
  %v183 = vld [vmem:[%s1 + $0x238] sm:$0xf]
  %v184 = vld [vmem:[%s1 + $0x23c] sm:$0xf]
  %v205 = vunpack.c.l.b16 %v21
  %v206 = vunpack.c.h.b16 %v21
  %v207 = vunpack.c.l.b16 %v22
  %v208 = vunpack.c.h.b16 %v22
  %v209 = vunpack.c.l.b16 %v23
  %v210 = vunpack.c.h.b16 %v23
  %v211 = vunpack.c.l.b16 %v24
  %v212 = vunpack.c.h.b16 %v24
  %v213 = vunpack.c.l.b16 %v25
  %v214 = vunpack.c.l.b16 %v26
  %v215 = vunpack.c.h.b16 %v26
  %v216 = vunpack.c.l.b16 %v27
  %v217 = vunpack.c.h.b16 %v27
  %v218 = vunpack.c.l.b16 %v28
  %v219 = vunpack.c.h.b16 %v28
  %v220 = vunpack.c.l.b16 %v29
  %v221 = vunpack.c.h.b16 %v29
  %v222 = vunpack.c.l.b16 %v30
  %v223 = vunpack.c.l.b16 %v31
  %v224 = vunpack.c.h.b16 %v31
  %v225 = vunpack.c.l.b16 %v32
  %v226 = vunpack.c.h.b16 %v32
  %v227 = vunpack.c.l.b16 %v33
  %v228 = vunpack.c.h.b16 %v33
  %v229 = vunpack.c.l.b16 %v34
  %v230 = vunpack.c.h.b16 %v34
  %v231 = vunpack.c.l.b16 %v35
  %v232 = vunpack.c.l.b16 %v36
  %v233 = vunpack.c.h.b16 %v36
  %v234 = vunpack.c.l.b16 %v37
  %v235 = vunpack.c.h.b16 %v37
  %v236 = vunpack.c.l.b16 %v38
  %v237 = vunpack.c.h.b16 %v38
  %v238 = vunpack.c.l.b16 %v39
  %v239 = vunpack.c.h.b16 %v39
  %v240 = vunpack.c.l.b16 %v40
  %v241 = vpack.c.b16 %v214, %v205
  %v242 = vpack.c.b16 %v215, %v206
  %v243 = vpack.c.b16 %v216, %v207
  %v244 = vpack.c.b16 %v217, %v208
  %v245 = vpack.c.b16 %v218, %v209
  %v246 = vpack.c.b16 %v219, %v210
  %v247 = vpack.c.b16 %v220, %v211
  %v248 = vpack.c.b16 %v221, %v212
  %v249 = vpack.c.b16 %v222, %v213
  %v250 = vpack.c.b16 %v232, %v223
  %v251 = vpack.c.b16 %v233, %v224
  %v252 = vpack.c.b16 %v234, %v225
  %v253 = vpack.c.b16 %v235, %v226
  %v254 = vpack.c.b16 %v236, %v227
  %v255 = vpack.c.b16 %v237, %v228
  %v256 = vpack.c.b16 %v238, %v229
  %v257 = vpack.c.b16 %v239, %v230
  %v258 = vpack.c.b16 %v240, %v231
  %v421 = vunpack.c.l.b16 %v41
  %v422 = vunpack.c.l.b16 %v42
  %v423 = vunpack.c.l.b16 %v43
  %v424 = vunpack.c.l.b16 %v44
  %v425 = vunpack.c.l.b16 %v45
  %v426 = vunpack.c.l.b16 %v46
  %v427 = vunpack.c.l.b16 %v47
  %v428 = vunpack.c.l.b16 %v48
  %v429 = vunpack.c.l.b16 %v49
  %v430 = vunpack.c.l.b16 %v50
  %v431 = vunpack.c.l.b16 %v51
  %v432 = vunpack.c.l.b16 %v52
  %v433 = vunpack.c.l.b16 %v53
  %v434 = vunpack.c.l.b16 %v54
  %v435 = vunpack.c.l.b16 %v55
  %v436 = vunpack.c.l.b16 %v56
  %v437 = vunpack.c.l.b16 %v57
  %v438 = vunpack.c.l.b16 %v58
  %v439 = vunpack.c.l.b16 %v59
  %v440 = vunpack.c.l.b16 %v60
  %v441 = vunpack.c.l.b16 %v61
  %v442 = vunpack.c.l.b16 %v62
  %v443 = vunpack.c.l.b16 %v63
  %v444 = vunpack.c.l.b16 %v64
  %v445 = vunpack.c.l.b16 %v65
  %v446 = vunpack.c.l.b16 %v66
  %v447 = vunpack.c.l.b16 %v67
  %v448 = vunpack.c.l.b16 %v68
  %v449 = vunpack.c.l.b16 %v69
  %v450 = vunpack.c.l.b16 %v70
  %v451 = vunpack.c.l.b16 %v71
  %v452 = vunpack.c.l.b16 %v72
  %v453 = vunpack.c.l.b16 %v73
  %v454 = vunpack.c.l.b16 %v74
  %v455 = vunpack.c.l.b16 %v75
  %v456 = vunpack.c.l.b16 %v76
  %v457 = vunpack.c.l.b16 %v77
  %v458 = vunpack.c.l.b16 %v78
  %v459 = vunpack.c.l.b16 %v79
  %v460 = vunpack.c.l.b16 %v80
  %v461 = vunpack.c.l.b16 %v81
  %v462 = vunpack.c.l.b16 %v82
  %v463 = vunpack.c.l.b16 %v83
  %v464 = vunpack.c.l.b16 %v84
  %v465 = vunpack.c.l.b16 %v85
  %v466 = vunpack.c.l.b16 %v86
  %v467 = vunpack.c.l.b16 %v87
  %v468 = vunpack.c.l.b16 %v88
  %v469 = vunpack.c.l.b16 %v89
  %v470 = vunpack.c.l.b16 %v90
  %v471 = vunpack.c.l.b16 %v91
  %v472 = vunpack.c.l.b16 %v92
  %v473 = vunpack.c.l.b16 %v93
  %v474 = vunpack.c.l.b16 %v94
  %v475 = vunpack.c.l.b16 %v95
  %v476 = vunpack.c.l.b16 %v96
  %v477 = vunpack.c.l.b16 %v97
  %v478 = vunpack.c.l.b16 %v98
  %v479 = vunpack.c.l.b16 %v99
  %v480 = vunpack.c.l.b16 %v100
  %v481 = vunpack.c.l.b16 %v101
  %v482 = vunpack.c.l.b16 %v102
  %v483 = vunpack.c.l.b16 %v103
  %v484 = vunpack.c.l.b16 %v104
  %v485 = vunpack.c.l.b16 %v105
  %v486 = vunpack.c.l.b16 %v106
  %v487 = vunpack.c.l.b16 %v107
  %v488 = vunpack.c.l.b16 %v108
  %v489 = vunpack.c.l.b16 %v109
  %v490 = vunpack.c.l.b16 %v110
  %v491 = vunpack.c.l.b16 %v111
  %v492 = vunpack.c.l.b16 %v112
  %v493 = vunpack.c.l.b16 %v113
  %v494 = vunpack.c.l.b16 %v114
  %v495 = vunpack.c.l.b16 %v115
  %v496 = vunpack.c.l.b16 %v116
  %v497 = vunpack.c.l.b16 %v117
  %v498 = vunpack.c.l.b16 %v118
  %v499 = vunpack.c.l.b16 %v119
  %v500 = vunpack.c.l.b16 %v120
  %v501 = vunpack.c.l.b16 %v121
  %v502 = vunpack.c.l.b16 %v122
  %v503 = vunpack.c.l.b16 %v123
  %v504 = vunpack.c.l.b16 %v124
  %v505 = vunpack.c.l.b16 %v125
  %v506 = vunpack.c.l.b16 %v126
  %v507 = vunpack.c.l.b16 %v127
  %v508 = vunpack.c.l.b16 %v128
  %v509 = vunpack.c.l.b16 %v129
  %v510 = vunpack.c.l.b16 %v130
  %v511 = vunpack.c.l.b16 %v131
  %v512 = vunpack.c.l.b16 %v132
  %v513 = vunpack.c.l.b16 %v133
  %v514 = vunpack.c.l.b16 %v134
  %v515 = vunpack.c.l.b16 %v135
  %v516 = vunpack.c.l.b16 %v136
  %v517 = vunpack.c.l.b16 %v137
  %v518 = vunpack.c.l.b16 %v138
  %v519 = vunpack.c.l.b16 %v139
  %v520 = vunpack.c.l.b16 %v140
  %v521 = vunpack.c.l.b16 %v141
  %v522 = vunpack.c.l.b16 %v142
  %v523 = vunpack.c.l.b16 %v143
  %v524 = vunpack.c.l.b16 %v144
  %v525 = vunpack.c.l.b16 %v145
  %v526 = vunpack.c.l.b16 %v146
  %v527 = vunpack.c.l.b16 %v147
  %v528 = vunpack.c.l.b16 %v148
  %v529 = vunpack.c.l.b16 %v149
  %v530 = vunpack.c.l.b16 %v150
  %v531 = vunpack.c.l.b16 %v151
  %v532 = vunpack.c.l.b16 %v152
  %v533 = vunpack.c.l.b16 %v153
  %v534 = vunpack.c.l.b16 %v154
  %v535 = vunpack.c.l.b16 %v155
  %v536 = vunpack.c.l.b16 %v156
  %v537 = vunpack.c.l.b16 %v157
  %v538 = vunpack.c.l.b16 %v158
  %v539 = vunpack.c.l.b16 %v159
  %v540 = vunpack.c.l.b16 %v160
  %v541 = vunpack.c.l.b16 %v161
  %v542 = vunpack.c.l.b16 %v162
  %v543 = vunpack.c.l.b16 %v163
  %v544 = vunpack.c.l.b16 %v164
  %v545 = vunpack.c.l.b16 %v165
  %v546 = vunpack.c.l.b16 %v166
  %v547 = vunpack.c.l.b16 %v167
  %v548 = vunpack.c.l.b16 %v168
  %v549 = vunpack.c.l.b16 %v169
  %v550 = vunpack.c.l.b16 %v170
  %v551 = vunpack.c.l.b16 %v171
  %v552 = vunpack.c.l.b16 %v172
  %v553 = vunpack.c.l.b16 %v173
  %v554 = vunpack.c.l.b16 %v174
  %v555 = vunpack.c.l.b16 %v175
  %v556 = vunpack.c.l.b16 %v176
  %v557 = vunpack.c.l.b16 %v177
  %v558 = vunpack.c.l.b16 %v178
  %v559 = vunpack.c.l.b16 %v179
  %v560 = vunpack.c.l.b16 %v180
  %v561 = vunpack.c.l.b16 %v181
  %v562 = vunpack.c.l.b16 %v182
  %v563 = vunpack.c.l.b16 %v183
  %v564 = vunpack.c.l.b16 %v184
  %v565 = vpack.c.b16 %v422, %v421
  %v566 = vpack.c.b16 %v424, %v423
  %v567 = vpack.c.b16 %v426, %v425
  %v568 = vpack.c.b16 %v428, %v427
  %v569 = vpack.c.b16 %v430, %v429
  %v570 = vpack.c.b16 %v432, %v431
  %v571 = vpack.c.b16 %v434, %v433
  %v572 = vpack.c.b16 %v436, %v435
  %v573 = vpack.c.b16 %v438, %v437
  %v574 = vpack.c.b16 %v440, %v439
  %v575 = vpack.c.b16 %v442, %v441
  %v576 = vpack.c.b16 %v444, %v443
  %v577 = vpack.c.b16 %v446, %v445
  %v578 = vpack.c.b16 %v448, %v447
  %v579 = vpack.c.b16 %v450, %v449
  %v580 = vpack.c.b16 %v452, %v451
  %v581 = vpack.c.b16 %v454, %v453
  %v582 = vpack.c.b16 %v456, %v455
  %v583 = vpack.c.b16 %v458, %v457
  %v584 = vpack.c.b16 %v460, %v459
  %v585 = vpack.c.b16 %v462, %v461
  %v586 = vpack.c.b16 %v464, %v463
  %v587 = vpack.c.b16 %v466, %v465
  %v588 = vpack.c.b16 %v468, %v467
  %v589 = vpack.c.b16 %v470, %v469
  %v590 = vpack.c.b16 %v472, %v471
  %v591 = vpack.c.b16 %v474, %v473
  %v592 = vpack.c.b16 %v476, %v475
  %v593 = vpack.c.b16 %v478, %v477
  %v594 = vpack.c.b16 %v480, %v479
  %v595 = vpack.c.b16 %v482, %v481
  %v596 = vpack.c.b16 %v484, %v483
  %v597 = vpack.c.b16 %v486, %v485
  %v598 = vpack.c.b16 %v488, %v487
  %v599 = vpack.c.b16 %v490, %v489
  %v600 = vpack.c.b16 %v492, %v491
  %v601 = vpack.c.b16 %v494, %v493
  %v602 = vpack.c.b16 %v496, %v495
  %v603 = vpack.c.b16 %v498, %v497
  %v604 = vpack.c.b16 %v500, %v499
  %v605 = vpack.c.b16 %v502, %v501
  %v606 = vpack.c.b16 %v504, %v503
  %v607 = vpack.c.b16 %v506, %v505
  %v608 = vpack.c.b16 %v508, %v507
  %v609 = vpack.c.b16 %v510, %v509
  %v610 = vpack.c.b16 %v512, %v511
  %v611 = vpack.c.b16 %v514, %v513
  %v612 = vpack.c.b16 %v516, %v515
  %v613 = vpack.c.b16 %v518, %v517
  %v614 = vpack.c.b16 %v520, %v519
  %v615 = vpack.c.b16 %v522, %v521
  %v616 = vpack.c.b16 %v524, %v523
  %v617 = vpack.c.b16 %v526, %v525
  %v618 = vpack.c.b16 %v528, %v527
  %v619 = vpack.c.b16 %v530, %v529
  %v620 = vpack.c.b16 %v532, %v531
  %v621 = vpack.c.b16 %v534, %v533
  %v622 = vpack.c.b16 %v536, %v535
  %v623 = vpack.c.b16 %v538, %v537
  %v624 = vpack.c.b16 %v540, %v539
  %v625 = vpack.c.b16 %v542, %v541
  %v626 = vpack.c.b16 %v544, %v543
  %v627 = vpack.c.b16 %v546, %v545
  %v628 = vpack.c.b16 %v548, %v547
  %v629 = vpack.c.b16 %v550, %v549
  %v630 = vpack.c.b16 %v552, %v551
  %v631 = vpack.c.b16 %v554, %v553
  %v632 = vpack.c.b16 %v556, %v555
  %v633 = vpack.c.b16 %v558, %v557
  %v634 = vpack.c.b16 %v560, %v559
  %v635 = vpack.c.b16 %v562, %v561
  %v636 = vpack.c.b16 %v564, %v563
  %709 = vmatprep.subr.bf16.mxu0 0
  %710 = vmatpush1.bf16.msra.mxu0 %v565
  %711 = vmatprep.subr.bf16.mxu0 0
  %712 = vmatpush1.bf16.msra.mxu0 %v566
  %713 = vmatprep.subr.bf16.mxu0 0
  %714 = vmatpush1.bf16.msra.mxu0 %v567
  %715 = vmatprep.subr.bf16.mxu0 0
  %716 = vmatpush1.bf16.msra.mxu0 %v568
  %717 = vmatprep.subr.bf16.mxu0 0
  %718 = vmatpush1.bf16.msra.mxu0 %v569
  %719 = vmatprep.subr.bf16.mxu0 0
  %720 = vmatpush1.bf16.msra.mxu0 %v570
  %721 = vmatprep.subr.bf16.mxu0 0
  %722 = vmatpush1.bf16.msra.mxu0 %v571
  %723 = vmatprep.subr.bf16.mxu0 0
  %724 = vmatpush1.bf16.msra.mxu0 %v572
  %725 = vmatprep.subr.bf16.mxu0 0
  %726 = vmatpush1.bf16.msra.mxu0 %v573
  %727 = vmatprep.subr.bf16.mxu0 0
  %728 = vmatpush1.bf16.msra.mxu0 %v574
  %729 = vmatprep.subr.bf16.mxu0 0
  %730 = vmatpush1.bf16.msra.mxu0 %v575
  %731 = vmatprep.subr.bf16.mxu0 0
  %732 = vmatpush1.bf16.msra.mxu0 %v576
  %733 = vmatprep.subr.bf16.mxu0 0
  %734 = vmatpush1.bf16.msra.mxu0 %v577
  %735 = vmatprep.subr.bf16.mxu0 0
  %736 = vmatpush1.bf16.msra.mxu0 %v578
  %737 = vmatprep.subr.bf16.mxu0 0
  %738 = vmatpush1.bf16.msra.mxu0 %v579
  %739 = vmatprep.subr.bf16.mxu0 0
  %740 = vmatpush1.bf16.msra.mxu0 %v580
  %741 = vmatprep.mubr.bf16.mxu0 %v242
  %742 = vmatmul.mubr.bf16.gmra.mrb[0].mxu0 %v241
  %v743 = vpop.f32.mrb[0].mxu0
  %v744 = vadd.f32 0.0, %v743
  %v745 = vpop.f32.mrb[0].mxu0
  %v746 = vpop.f32.mrb[0].mxu0
  %v747 = vadd.f32 0.0, %v746
  %v748 = vpop.f32.mrb[0].mxu0
  %749 = vmatprep.mubr.bf16.mxu0 %v251
  %750 = vmatmul.mubr.bf16.gmra.mrb[0].mxu0 %v250
  %v751 = vpop.f32.mrb[0].mxu0
  %v752 = vadd.f32 0.0, %v751
  %v753 = vpop.f32.mrb[0].mxu0
  %v754 = vpop.f32.mrb[0].mxu0
  %v755 = vadd.f32 0.0, %v754
  %v756 = vpop.f32.mrb[0].mxu0
  %757 = vdwg.mxu0
  %758 = vmatprep.subr.bf16.mxu0 0
  %759 = vmatpush1.bf16.msra.mxu0 %v581
  %760 = vmatprep.subr.bf16.mxu0 0
  %761 = vmatpush1.bf16.msra.mxu0 %v582
  %762 = vmatprep.subr.bf16.mxu0 0
  %763 = vmatpush1.bf16.msra.mxu0 %v583
  %764 = vmatprep.subr.bf16.mxu0 0
  %765 = vmatpush1.bf16.msra.mxu0 %v584
  %766 = vmatprep.subr.bf16.mxu0 0
  %767 = vmatpush1.bf16.msra.mxu0 %v585
  %768 = vmatprep.subr.bf16.mxu0 0
  %769 = vmatpush1.bf16.msra.mxu0 %v586
  %770 = vmatprep.subr.bf16.mxu0 0
  %771 = vmatpush1.bf16.msra.mxu0 %v587
  %772 = vmatprep.subr.bf16.mxu0 0
  %773 = vmatpush1.bf16.msra.mxu0 %v588
  %774 = vmatprep.subr.bf16.mxu0 0
  %775 = vmatpush1.bf16.msra.mxu0 %v589
  %776 = vmatprep.subr.bf16.mxu0 0
  %777 = vmatpush1.bf16.msra.mxu0 %v590
  %778 = vmatprep.subr.bf16.mxu0 0
  %779 = vmatpush1.bf16.msra.mxu0 %v591
  %780 = vmatprep.subr.bf16.mxu0 0
  %781 = vmatpush1.bf16.msra.mxu0 %v592
  %782 = vmatprep.subr.bf16.mxu0 0
  %783 = vmatpush1.bf16.msra.mxu0 %v593
  %784 = vmatprep.subr.bf16.mxu0 0
  %785 = vmatpush1.bf16.msra.mxu0 %v594
  %786 = vmatprep.subr.bf16.mxu0 0
  %787 = vmatpush1.bf16.msra.mxu0 %v595
  %788 = vmatprep.subr.bf16.mxu0 0
  %789 = vmatpush1.bf16.msra.mxu0 %v596
  %790 = vmatprep.mubr.bf16.mxu0 %v244
  %791 = vmatmul.mubr.bf16.gmra.mrb[0].mxu0 %v243
  %v792 = vpop.f32.mrb[0].mxu0
  %v793 = vadd.f32 %v744, %v792
  %v794 = vpop.f32.mrb[0].mxu0
  %v795 = vpop.f32.mrb[0].mxu0
  %v796 = vadd.f32 %v747, %v795
  %v797 = vpop.f32.mrb[0].mxu0
  %798 = vmatprep.mubr.bf16.mxu0 %v253
  %799 = vmatmul.mubr.bf16.gmra.mrb[0].mxu0 %v252
  %v800 = vpop.f32.mrb[0].mxu0
  %v801 = vadd.f32 %v752, %v800
  %v802 = vpop.f32.mrb[0].mxu0
  %v803 = vpop.f32.mrb[0].mxu0
  %v804 = vadd.f32 %v755, %v803
  %v805 = vpop.f32.mrb[0].mxu0
  %806 = vdwg.mxu0
  %807 = vmatprep.subr.bf16.mxu0 0
  %808 = vmatpush1.bf16.msra.mxu0 %v597
  %809 = vmatprep.subr.bf16.mxu0 0
  %810 = vmatpush1.bf16.msra.mxu0 %v598
  %811 = vmatprep.subr.bf16.mxu0 0
  %812 = vmatpush1.bf16.msra.mxu0 %v599
  %813 = vmatprep.subr.bf16.mxu0 0
  %814 = vmatpush1.bf16.msra.mxu0 %v600
  %815 = vmatprep.subr.bf16.mxu0 0
  %816 = vmatpush1.bf16.msra.mxu0 %v601
  %817 = vmatprep.subr.bf16.mxu0 0
  %818 = vmatpush1.bf16.msra.mxu0 %v602
  %819 = vmatprep.subr.bf16.mxu0 0
  %820 = vmatpush1.bf16.msra.mxu0 %v603
  %821 = vmatprep.subr.bf16.mxu0 0
  %822 = vmatpush1.bf16.msra.mxu0 %v604
  %823 = vmatprep.subr.bf16.mxu0 0
  %824 = vmatpush1.bf16.msra.mxu0 %v605
  %825 = vmatprep.subr.bf16.mxu0 0
  %826 = vmatpush1.bf16.msra.mxu0 %v606
  %827 = vmatprep.subr.bf16.mxu0 0
  %828 = vmatpush1.bf16.msra.mxu0 %v607
  %829 = vmatprep.subr.bf16.mxu0 0
  %830 = vmatpush1.bf16.msra.mxu0 %v608
  %831 = vmatprep.subr.bf16.mxu0 0
  %832 = vmatpush1.bf16.msra.mxu0 %v609
  %833 = vmatprep.subr.bf16.mxu0 0
  %834 = vmatpush1.bf16.msra.mxu0 %v610
  %835 = vmatprep.subr.bf16.mxu0 0
  %836 = vmatpush1.bf16.msra.mxu0 %v611
  %837 = vmatprep.subr.bf16.mxu0 0
  %838 = vmatpush1.bf16.msra.mxu0 %v612
  %839 = vmatprep.mubr.bf16.mxu0 %v246
  %840 = vmatmul.mubr.bf16.gmra.mrb[0].mxu0 %v245
  %v841 = vpop.f32.mrb[0].mxu0
  %v842 = vadd.f32 %v793, %v841
  %v843 = vpop.f32.mrb[0].mxu0
  %v844 = vpop.f32.mrb[0].mxu0
  %v845 = vadd.f32 %v796, %v844
  %v846 = vpop.f32.mrb[0].mxu0
  %847 = vmatprep.mubr.bf16.mxu0 %v255
  %848 = vmatmul.mubr.bf16.gmra.mrb[0].mxu0 %v254
  %v849 = vpop.f32.mrb[0].mxu0
  %v850 = vadd.f32 %v801, %v849
  %v851 = vpop.f32.mrb[0].mxu0
  %v852 = vpop.f32.mrb[0].mxu0
  %v853 = vadd.f32 %v804, %v852
  %v854 = vpop.f32.mrb[0].mxu0
  %855 = vdwg.mxu0
  %856 = vmatprep.subr.bf16.mxu0 0
  %857 = vmatpush1.bf16.msra.mxu0 %v613
  %858 = vmatprep.subr.bf16.mxu0 0
  %859 = vmatpush1.bf16.msra.mxu0 %v614
  %860 = vmatprep.subr.bf16.mxu0 0
  %861 = vmatpush1.bf16.msra.mxu0 %v615
  %862 = vmatprep.subr.bf16.mxu0 0
  %863 = vmatpush1.bf16.msra.mxu0 %v616
  %864 = vmatprep.subr.bf16.mxu0 0
  %865 = vmatpush1.bf16.msra.mxu0 %v617
  %866 = vmatprep.subr.bf16.mxu0 0
  %867 = vmatpush1.bf16.msra.mxu0 %v618
  %868 = vmatprep.subr.bf16.mxu0 0
  %869 = vmatpush1.bf16.msra.mxu0 %v619
  %870 = vmatprep.subr.bf16.mxu0 0
  %871 = vmatpush1.bf16.msra.mxu0 %v620
  %872 = vmatprep.subr.bf16.mxu0 0
  %873 = vmatpush1.bf16.msra.mxu0 %v621
  %874 = vmatprep.subr.bf16.mxu0 0
  %875 = vmatpush1.bf16.msra.mxu0 %v622
  %876 = vmatprep.subr.bf16.mxu0 0
  %877 = vmatpush1.bf16.msra.mxu0 %v623
  %878 = vmatprep.subr.bf16.mxu0 0
  %879 = vmatpush1.bf16.msra.mxu0 %v624
  %880 = vmatprep.subr.bf16.mxu0 0
  %881 = vmatpush1.bf16.msra.mxu0 %v625
  %882 = vmatprep.subr.bf16.mxu0 0
  %883 = vmatpush1.bf16.msra.mxu0 %v626
  %884 = vmatprep.subr.bf16.mxu0 0
  %885 = vmatpush1.bf16.msra.mxu0 %v627
  %886 = vmatprep.subr.bf16.mxu0 0
  %887 = vmatpush1.bf16.msra.mxu0 %v628
  %888 = vmatprep.mubr.bf16.mxu0 %v248
  %889 = vmatmul.mubr.bf16.gmra.mrb[0].mxu0 %v247
  %v890 = vpop.f32.mrb[0].mxu0
  %v891 = vadd.f32 %v842, %v890
  %v892 = vpop.f32.mrb[0].mxu0
  %v893 = vpop.f32.mrb[0].mxu0
  %v894 = vadd.f32 %v845, %v893
  %v895 = vpop.f32.mrb[0].mxu0
  %896 = vmatprep.mubr.bf16.mxu0 %v257
  %897 = vmatmul.mubr.bf16.gmra.mrb[0].mxu0 %v256
  %v898 = vpop.f32.mrb[0].mxu0
  %v899 = vadd.f32 %v850, %v898
  %v900 = vpop.f32.mrb[0].mxu0
  %v901 = vpop.f32.mrb[0].mxu0
  %v902 = vadd.f32 %v853, %v901
  %v903 = vpop.f32.mrb[0].mxu0
  %904 = vdwg.mxu0
  %905 = vmatprep.subr.bf16.mxu0 0
  %906 = vmatpush1.bf16.msra.mxu0 %v629
  %907 = vmatprep.subr.bf16.mxu0 0
  %908 = vmatpush1.bf16.msra.mxu0 %v630
  %909 = vmatprep.subr.bf16.mxu0 0
  %910 = vmatpush1.bf16.msra.mxu0 %v631
  %911 = vmatprep.subr.bf16.mxu0 0
  %912 = vmatpush1.bf16.msra.mxu0 %v632
  %913 = vmatprep.subr.bf16.mxu0 0
  %914 = vmatpush1.bf16.msra.mxu0 %v633
  %915 = vmatprep.subr.bf16.mxu0 0
  %916 = vmatpush1.bf16.msra.mxu0 %v634
  %917 = vmatprep.subr.bf16.mxu0 0
  %918 = vmatpush1.bf16.msra.mxu0 %v635
  %919 = vmatprep.subr.bf16.mxu0 0
  %920 = vmatpush1.bf16.msra.mxu0 %v636
  %921 = vmatprep.subr.bf16.mxu0 0
  %922 = vmatpush1.bf16.msra.mxu0 0
  %923 = vmatprep.subr.bf16.mxu0 0
  %924 = vmatpush1.bf16.msra.mxu0 0
  %925 = vmatprep.subr.bf16.mxu0 0
  %926 = vmatpush1.bf16.msra.mxu0 0
  %927 = vmatprep.subr.bf16.mxu0 0
  %928 = vmatpush1.bf16.msra.mxu0 0
  %929 = vmatprep.subr.bf16.mxu0 0
  %930 = vmatpush1.bf16.msra.mxu0 0
  %931 = vmatprep.subr.bf16.mxu0 0
  %932 = vmatpush1.bf16.msra.mxu0 0
  %933 = vmatprep.subr.bf16.mxu0 0
  %934 = vmatpush1.bf16.msra.mxu0 0
  %935 = vmatprep.subr.bf16.mxu0 0
  %936 = vmatpush1.bf16.msra.mxu0 0
  %937 = vmatprep.mubr.bf16.mxu0 0
  %938 = vmatmul.mubr.bf16.gmra.mrb[0].mxu0 %v249
  %v939 = vpop.f32.mrb[0].mxu0
  %v940 = vadd.f32 %v891, %v939
  %v941 = vpop.f32.mrb[0].mxu0
  %v942 = vpop.f32.mrb[0].mxu0
  %v943 = vadd.f32 %v894, %v942
  %v944 = vpop.f32.mrb[0].mxu0
  %945 = vmatprep.mubr.bf16.mxu0 0
  %946 = vmatmul.mubr.bf16.gmra.mrb[0].mxu0 %v258
  %v947 = vpop.f32.mrb[0].mxu0
  %v948 = vadd.f32 %v899, %v947
  %v949 = vpop.f32.mrb[0].mxu0
  %v950 = vpop.f32.mrb[0].mxu0
  %v951 = vadd.f32 %v902, %v950
  %v952 = vpop.f32.mrb[0].mxu0
  %953 = vdwg.mxu0
  %v954 = vadd.f32 %v940, %v943
  %v955 = vadd.f32 %v954, %v948
  %v956 = vadd.f32 %v955, %v951
  %v957 = vrot.slane %v956, 4
  %v958 = vadd.f32 %v956, %v957
  %v959 = vrot.slane %v958, 2
  %v960 = vadd.f32 %v958, %v959
  %v961 = vrot.slane %v960, 1
  %v962 = vadd.f32 %v960, %v961
  %v963 = vmul.f32 %v940, %v940
  %v964 = vmul.f32 %v943, %v943
  %v965 = vmul.f32 %v948, %v948
  %v966 = vmul.f32 %v951, %v951
  %v967 = vadd.f32 %v963, %v964
  %v968 = vadd.f32 %v967, %v965
  %v969 = vadd.f32 %v968, %v966
  %v970 = vrot.slane %v969, 4
  %v971 = vadd.f32 %v969, %v970
  %v972 = vrot.slane %v971, 2
  %v973 = vadd.f32 %v971, %v972
  %v974 = vrot.slane %v973, 1
  %v975 = vadd.f32 %v973, %v974
  %v976 = vld [vmem:[%s4] sm:$0xff]
  %v977 = vld [vmem:[%s4 + $0x8] sm:$0xff]
  %v978 = vld [vmem:[%s4 + $0x10] sm:$0xff]
  %v979 = vld [vmem:[%s4 + $0x18] sm:$0xff]
  %v980 = vld [vmem:[%s4 + $0x20] sm:$0xff]
  %v981 = vld [vmem:[%s4 + $0x28] sm:$0xff]
  %v982 = vld [vmem:[%s4 + $0x30] sm:$0xff]
  %v983 = vld [vmem:[%s4 + $0x38] sm:$0xff]
  %v984 = vld [vmem:[%s4 + $0x40] sm:$0xff]
  %v985 = vld [vmem:[%s4 + $0x48] sm:$0xff]
  %v986 = vld [vmem:[%s4 + $0x50] sm:$0xff]
  %v987 = vld [vmem:[%s4 + $0x58] sm:$0xff]
  %v988 = vld [vmem:[%s4 + $0x60] sm:$0xff]
  %v989 = vld [vmem:[%s4 + $0x68] sm:$0xff]
  %v990 = vld [vmem:[%s4 + $0x70] sm:$0xff]
  %v991 = vld [vmem:[%s4 + $0x78] sm:$0xff]
  %992 = vmatprep.subr.mxu0 0.0
  %993 = vmatpush1.msra.mxu0 %v976
  %994 = vmatprep.subr.mxu0 0.0
  %995 = vmatpush1.msra.mxu0 %v977
  %996 = vmatprep.subr.mxu0 0.0
  %997 = vmatpush1.msra.mxu0 %v978
  %998 = vmatprep.subr.mxu0 0.0
  %999 = vmatpush1.msra.mxu0 %v979
  %1000 = vmatprep.subr.mxu0 0.0
  %1001 = vmatpush1.msra.mxu0 %v980
  %1002 = vmatprep.subr.mxu0 0.0
  %1003 = vmatpush1.msra.mxu0 %v981
  %1004 = vmatprep.subr.mxu0 0.0
  %1005 = vmatpush1.msra.mxu0 %v982
  %1006 = vmatprep.subr.mxu0 0.0
  %1007 = vmatpush1.msra.mxu0 %v983
  %1008 = vmatprep.subr.mxu0 0.0
  %1009 = vmatpush1.msra.mxu0 %v984
  %1010 = vmatprep.subr.mxu0 0.0
  %1011 = vmatpush1.msra.mxu0 %v985
  %1012 = vmatprep.subr.mxu0 0.0
  %1013 = vmatpush1.msra.mxu0 %v986
  %1014 = vmatprep.subr.mxu0 0.0
  %1015 = vmatpush1.msra.mxu0 %v987
  %1016 = vmatprep.subr.mxu0 0.0
  %1017 = vmatpush1.msra.mxu0 %v988
  %1018 = vmatprep.subr.mxu0 0.0
  %1019 = vmatpush1.msra.mxu0 %v989
  %1020 = vmatprep.subr.mxu0 0.0
  %1021 = vmatpush1.msra.mxu0 %v990
  %1022 = vmatprep.subr.mxu0 0.0
  %1023 = vmatpush1.msra.mxu0 %v991
  %1024 = vmatprep.subr.mxu0 0.0
  %1025 = vmatpush1.msra.mxu0 0.0
  %1026 = vmatprep.subr.mxu0 0.0
  %1027 = vmatpush1.msra.mxu0 0.0
  %1028 = vmatprep.subr.mxu0 0.0
  %1029 = vmatpush1.msra.mxu0 0.0
  %1030 = vmatprep.subr.mxu0 0.0
  %1031 = vmatpush1.msra.mxu0 0.0
  %1032 = vmatprep.subr.mxu0 0.0
  %1033 = vmatpush1.msra.mxu0 0.0
  %1034 = vmatprep.subr.mxu0 0.0
  %1035 = vmatpush1.msra.mxu0 0.0
  %1036 = vmatprep.subr.mxu0 0.0
  %1037 = vmatpush1.msra.mxu0 0.0
  %1038 = vmatprep.subr.mxu0 0.0
  %1039 = vmatpush1.msra.mxu0 0.0
  %1040 = vmatprep.subr.mxu0 0.0
  %1041 = vmatpush1.msra.mxu0 0.0
  %1042 = vmatprep.subr.mxu0 0.0
  %1043 = vmatpush1.msra.mxu0 0.0
  %1044 = vmatprep.subr.mxu0 0.0
  %1045 = vmatpush1.msra.mxu0 0.0
  %1046 = vmatprep.subr.mxu0 0.0
  %1047 = vmatpush1.msra.mxu0 0.0
  %1048 = vmatprep.subr.mxu0 0.0
  %1049 = vmatpush1.msra.mxu0 0.0
  %1050 = vmatprep.subr.mxu0 0.0
  %1051 = vmatpush1.msra.mxu0 0.0
  %1052 = vmatprep.subr.mxu0 0.0
  %1053 = vmatpush1.msra.mxu0 0.0
  %1054 = vmatprep.subr.mxu0 0.0
  %1055 = vmatpush1.msra.mxu0 0.0
  %1056 = vmatprep.mubr.f32.mxu0 0.0
  %1057 = vmatmul.mubr.f32.gmra.mrb[0].mxu0 %v962
  %v1058 = vpop.f32.mrb[0].mxu0
  %v1059 = vadd.f32 0.0, %v1058
  %v1060 = vpop.f32.mrb[0].mxu0
  %1061 = vdwg.mxu0
  %1062 = vmatprep.subr.mxu0 0.0
  %1063 = vmatpush1.msra.mxu0 %v976
  %1064 = vmatprep.subr.mxu0 0.0
  %1065 = vmatpush1.msra.mxu0 %v977
  %1066 = vmatprep.subr.mxu0 0.0
  %1067 = vmatpush1.msra.mxu0 %v978
  %1068 = vmatprep.subr.mxu0 0.0
  %1069 = vmatpush1.msra.mxu0 %v979
  %1070 = vmatprep.subr.mxu0 0.0
  %1071 = vmatpush1.msra.mxu0 %v980
  %1072 = vmatprep.subr.mxu0 0.0
  %1073 = vmatpush1.msra.mxu0 %v981
  %1074 = vmatprep.subr.mxu0 0.0
  %1075 = vmatpush1.msra.mxu0 %v982
  %1076 = vmatprep.subr.mxu0 0.0
  %1077 = vmatpush1.msra.mxu0 %v983
  %1078 = vmatprep.subr.mxu0 0.0
  %1079 = vmatpush1.msra.mxu0 %v984
  %1080 = vmatprep.subr.mxu0 0.0
  %1081 = vmatpush1.msra.mxu0 %v985
  %1082 = vmatprep.subr.mxu0 0.0
  %1083 = vmatpush1.msra.mxu0 %v986
  %1084 = vmatprep.subr.mxu0 0.0
  %1085 = vmatpush1.msra.mxu0 %v987
  %1086 = vmatprep.subr.mxu0 0.0
  %1087 = vmatpush1.msra.mxu0 %v988
  %1088 = vmatprep.subr.mxu0 0.0
  %1089 = vmatpush1.msra.mxu0 %v989
  %1090 = vmatprep.subr.mxu0 0.0
  %1091 = vmatpush1.msra.mxu0 %v990
  %1092 = vmatprep.subr.mxu0 0.0
  %1093 = vmatpush1.msra.mxu0 %v991
  %1094 = vmatprep.subr.mxu0 0.0
  %1095 = vmatpush1.msra.mxu0 0.0
  %1096 = vmatprep.subr.mxu0 0.0
  %1097 = vmatpush1.msra.mxu0 0.0
  %1098 = vmatprep.subr.mxu0 0.0
  %1099 = vmatpush1.msra.mxu0 0.0
  %1100 = vmatprep.subr.mxu0 0.0
  %1101 = vmatpush1.msra.mxu0 0.0
  %1102 = vmatprep.subr.mxu0 0.0
  %1103 = vmatpush1.msra.mxu0 0.0
  %1104 = vmatprep.subr.mxu0 0.0
  %1105 = vmatpush1.msra.mxu0 0.0
  %1106 = vmatprep.subr.mxu0 0.0
  %1107 = vmatpush1.msra.mxu0 0.0
  %1108 = vmatprep.subr.mxu0 0.0
  %1109 = vmatpush1.msra.mxu0 0.0
  %1110 = vmatprep.subr.mxu0 0.0
  %1111 = vmatpush1.msra.mxu0 0.0
  %1112 = vmatprep.subr.mxu0 0.0
  %1113 = vmatpush1.msra.mxu0 0.0
  %1114 = vmatprep.subr.mxu0 0.0
  %1115 = vmatpush1.msra.mxu0 0.0
  %1116 = vmatprep.subr.mxu0 0.0
  %1117 = vmatpush1.msra.mxu0 0.0
  %1118 = vmatprep.subr.mxu0 0.0
  %1119 = vmatpush1.msra.mxu0 0.0
  %1120 = vmatprep.subr.mxu0 0.0
  %1121 = vmatpush1.msra.mxu0 0.0
  %1122 = vmatprep.subr.mxu0 0.0
  %1123 = vmatpush1.msra.mxu0 0.0
  %1124 = vmatprep.subr.mxu0 0.0
  %1125 = vmatpush1.msra.mxu0 0.0
  %1126 = vmatprep.mubr.f32.mxu0 0.0
  %1127 = vmatmul.mubr.f32.gmra.mrb[0].mxu0 %v975
  %v1128 = vpop.f32.mrb[0].mxu0
  %v1129 = vadd.f32 0.0, %v1128
  %v1130 = vpop.f32.mrb[0].mxu0
  %1131 = vdwg.mxu0
  %v1132 = vmul.f32 %v1059, %v1059
  %v1133 = vsub.f32 %v1129, %v1132
  %v1134 = vmax.f32 %v1133, 0.0
  %v1135 = vld [vmem:[%s2] sm:$0x1]
  %v1136 = vadd.f32 %v1134, 1e-05
  %v1137 = vrsqrt.pop %v1136
  %v1138 = vmul.f32 %v1135, %v1137
  %v1139 = vld [vmem:[%s3] sm:$0x1]
  %v1140 = vmul.f32 %v1059, %v1138
  %v1141 = vsub.f32 %v1139, %v1140
  %v1143 = vlaneseq
  %v1144 = vshrl.u32 %v1143, 7
  %v1145 = vsub.s32 0, %v1144
  %v1146 = vrot.slane %v1138, %v1145
  %v1148 = vmul.f32 %v940, %v1146
  %v1149 = vmul.f32 %v943, %v1146
  %v1150 = vmul.f32 %v948, %v1146
  %v1151 = vmul.f32 %v951, %v1146
  %v1153 = vlaneseq
  %v1154 = vshrl.u32 %v1153, 7
  %v1155 = vsub.s32 0, %v1154
  %v1156 = vrot.slane %v1141, %v1155
  %v1158 = vadd.f32 %v1148, %v1156
  %v1159 = vadd.f32 %v1149, %v1156
  %v1160 = vadd.f32 %v1150, %v1156
  %v1161 = vadd.f32 %v1151, %v1156
  %vm1162 = vcmp.ge.f32.partialorder %v1158, 0.0
  %vm1163 = vcmp.ge.f32.partialorder %v1159, 0.0
  %vm1164 = vcmp.ge.f32.partialorder %v1160, 0.0
  %vm1165 = vcmp.ge.f32.partialorder %v1161, 0.0
  %v1166 = vmul.f32 %v1158, 0.05
  %v1167 = vmul.f32 %v1159, 0.05
  %v1168 = vmul.f32 %v1160, 0.05
  %v1169 = vmul.f32 %v1161, 0.05
  %v1170 = vsel %vm1162, %v1158, %v1166
  %v1171 = vsel %vm1163, %v1159, %v1167
  %v1172 = vsel %vm1164, %v1160, %v1168
  %v1173 = vsel %vm1165, %v1161, %v1169
  %v1174 = vpack.c.bf16 %v1171, %v1170
  %v1175 = vpack.c.bf16 %v1173, %v1172
  %v1178 = vunpack.c.l.b16 %v1174
  %v1179 = vunpack.c.h.b16 %v1174
  %v1180 = vunpack.c.l.b16 %v1175
  %v1181 = vunpack.c.h.b16 %v1175
  %v1182 = vpack.c.b16 %v1178, %v1178
  %v1183 = vpack.c.b16 %v1179, %v1179
  %v1184 = vpack.c.b16 %v1180, %v1180
  %v1185 = vpack.c.b16 %v1181, %v1181
  %1190 = vst [vmem:[%s5] sm:$0xf] %v1182
  %1191 = vst [vmem:[%s5 + $0x4] sm:$0xf] %v1183
  %1192 = vst [vmem:[%s5 + $0x8] sm:$0xf] %v1184
  %1193 = vst [vmem:[%s5 + $0xc] sm:$0xf] %v1185
  // Predicated region
  $region22: #{g22_forward.8} parent=0 // pred_check
    _
  $region23: #{g22_forward.8} parent=0 // pred_check_branch
    %1195 = sbr.rel (0) target = $region25
  $region24: #{g22_forward.8} parent=0 // pred_region
    _
  $region25: #{g22_forward.8} parent=0 // pred_fallthru
    _
  // Predicated region
  $region26: #{g22_forward.8} parent=0 // pred_check
    _
  $region27: #{g22_forward.8} parent=0 // pred_check_branch
    %1197 = sbr.rel (0) target = $region29
  $region28: #{g22_forward.8} parent=0 // pred_region
    _
  $region29: #{g22_forward.8} parent=0 // pred_fallthru
    _

// kernel: g22_forward.7
$region0: #{g22_forward.7}
  #allocation0 [shape = 'u32[]', space=smem, size = 0x4, offset = 0x4, fixed_abs, tag = 'smem constant byte address 0x4 - core index']
  #allocation1 [shape = 'u32[144,128]{1,0:T(1,128)}', space=vmem, size = 0x12000, scoped, tag = 'internal scratch']
  %s0 = inlined_call_operand.vmem [shape: bf16[32,2048], index: 0, kind: input, shape index: {}]
  %s1 = inlined_call_operand.vmem [shape: bf16[2048,128], index: 1, kind: input, shape index: {}]
  %s2 = inlined_call_operand.vmem [shape: f32[1,128], index: 2, kind: input, shape index: {}]
  %s3 = inlined_call_operand.vmem [shape: f32[1,128], index: 3, kind: input, shape index: {}]
  %s4 = inlined_call_operand.vmem [shape: f32[128,128], index: 4, kind: input, shape index: {}]
  %s5 = inlined_call_operand.vmem [shape: bf16[32,128], index: 5, kind: output, shape index: {}]
  %s6 = sld [smem:[#allocation0]]
  $region30: #{g22_forward.7} parent=0
    _
  %s8 = ssub.s32 1, %s6
  %s9 = scalar_select 0, %s8, %s6
  // Predicated region
  $region2: #{g22_forward.7} parent=0 // pred_check
    _
  $region3: #{g22_forward.7} parent=0 // pred_check_branch
    %11 = sbr.rel (0) target = $region5
  $region4: #{g22_forward.7} parent=0 // pred_region
    _
  $region5: #{g22_forward.7} parent=0 // pred_fallthru
    _
  // Predicated region
  $region6: #{g22_forward.7} parent=0 // pred_check
    _
  $region7: #{g22_forward.7} parent=0 // pred_check_branch
    %13 = sbr.rel (0) target = $region9
  $region8: #{g22_forward.7} parent=0 // pred_region
    _
  $region9: #{g22_forward.7} parent=0 // pred_fallthru
    _
  // Predicated region
  $region10: #{g22_forward.7} parent=0 // pred_check
    _
  $region11: #{g22_forward.7} parent=0 // pred_check_branch
    %15 = sbr.rel (0) target = $region13
  $region12: #{g22_forward.7} parent=0 // pred_region
    _
  $region13: #{g22_forward.7} parent=0 // pred_fallthru
    _
  // Predicated region
  $region14: #{g22_forward.7} parent=0 // pred_check
    _
  $region15: #{g22_forward.7} parent=0 // pred_check_branch
    %17 = sbr.rel (0) target = $region17
  $region16: #{g22_forward.7} parent=0 // pred_region
    _
  $region17: #{g22_forward.7} parent=0 // pred_fallthru
    _
  // Predicated region
  $region18: #{g22_forward.7} parent=0 // pred_check
    _
  $region19: #{g22_forward.7} parent=0 // pred_check_branch
    %19 = sbr.rel (0) target = $region21
  $region20: #{g22_forward.7} parent=0 // pred_region
    _
  $region21: #{g22_forward.7} parent=0 // pred_fallthru
    _
  %v21 = vld [vmem:[%s0] sm:$0xff]
  %v22 = vld [vmem:[%s0 + $0x8] sm:$0xff]
  %v23 = vld [vmem:[%s0 + $0x10] sm:$0xff]
  %v24 = vld [vmem:[%s0 + $0x18] sm:$0xff]
  %v25 = vld [vmem:[%s0 + $0x20] sm:$0xff]
  %v26 = vld [vmem:[%s0 + $0x28] sm:$0xff]
  %v27 = vld [vmem:[%s0 + $0x30] sm:$0xff]
  %v28 = vld [vmem:[%s0 + $0x38] sm:$0xff]
  %v29 = vld [vmem:[%s0 + $0x40] sm:$0xff]
  %v30 = vld [vmem:[%s0 + $0x48] sm:$0xff]
  %v31 = vld [vmem:[%s0 + $0x50] sm:$0xff]
  %v32 = vld [vmem:[%s0 + $0x58] sm:$0xff]
  %v33 = vld [vmem:[%s0 + $0x60] sm:$0xff]
  %v34 = vld [vmem:[%s0 + $0x68] sm:$0xff]
  %v35 = vld [vmem:[%s0 + $0x70] sm:$0xff]
  %v36 = vld [vmem:[%s0 + $0x78] sm:$0xff]
  %v37 = vld [vmem:[%s0 + $0x80] sm:$0xff]
  %v38 = vld [vmem:[%s0 + $0x88] sm:$0xff]
  %v39 = vld [vmem:[%s0 + $0x90] sm:$0xff]
  %v40 = vld [vmem:[%s0 + $0x98] sm:$0xff]
  %v41 = vld [vmem:[%s0 + $0xa0] sm:$0xff]
  %v42 = vld [vmem:[%s0 + $0xa8] sm:$0xff]
  %v43 = vld [vmem:[%s0 + $0xb0] sm:$0xff]
  %v44 = vld [vmem:[%s0 + $0xb8] sm:$0xff]
  %v45 = vld [vmem:[%s0 + $0xc0] sm:$0xff]
  %v46 = vld [vmem:[%s0 + $0xc8] sm:$0xff]
  %v47 = vld [vmem:[%s0 + $0xd0] sm:$0xff]
  %v48 = vld [vmem:[%s0 + $0xd8] sm:$0xff]
  %v49 = vld [vmem:[%s0 + $0xe0] sm:$0xff]
  %v50 = vld [vmem:[%s0 + $0xe8] sm:$0xff]
  %v51 = vld [vmem:[%s0 + $0xf0] sm:$0xff]
  %v52 = vld [vmem:[%s0 + $0xf8] sm:$0xff]
  %v53 = vld [vmem:[%s1] sm:$0xf]
  %v54 = vld [vmem:[%s1 + $0x4] sm:$0xf]
  %v55 = vld [vmem:[%s1 + $0x8] sm:$0xf]
  %v56 = vld [vmem:[%s1 + $0xc] sm:$0xf]
  %v57 = vld [vmem:[%s1 + $0x10] sm:$0xf]
  %v58 = vld [vmem:[%s1 + $0x14] sm:$0xf]
  %v59 = vld [vmem:[%s1 + $0x18] sm:$0xf]
  %v60 = vld [vmem:[%s1 + $0x1c] sm:$0xf]
  %v61 = vld [vmem:[%s1 + $0x20] sm:$0xf]
  %v62 = vld [vmem:[%s1 + $0x24] sm:$0xf]
  %v63 = vld [vmem:[%s1 + $0x28] sm:$0xf]
  %v64 = vld [vmem:[%s1 + $0x2c] sm:$0xf]
  %v65 = vld [vmem:[%s1 + $0x30] sm:$0xf]
  %v66 = vld [vmem:[%s1 + $0x34] sm:$0xf]
  %v67 = vld [vmem:[%s1 + $0x38] sm:$0xf]
  %v68 = vld [vmem:[%s1 + $0x3c] sm:$0xf]
  %v69 = vld [vmem:[%s1 + $0x40] sm:$0xf]
  %v70 = vld [vmem:[%s1 + $0x44] sm:$0xf]
  %v71 = vld [vmem:[%s1 + $0x48] sm:$0xf]
  %v72 = vld [vmem:[%s1 + $0x4c] sm:$0xf]
  %v73 = vld [vmem:[%s1 + $0x50] sm:$0xf]
  %v74 = vld [vmem:[%s1 + $0x54] sm:$0xf]
  %v75 = vld [vmem:[%s1 + $0x58] sm:$0xf]
  %v76 = vld [vmem:[%s1 + $0x5c] sm:$0xf]
  %v77 = vld [vmem:[%s1 + $0x60] sm:$0xf]
  %v78 = vld [vmem:[%s1 + $0x64] sm:$0xf]
  %v79 = vld [vmem:[%s1 + $0x68] sm:$0xf]
  %v80 = vld [vmem:[%s1 + $0x6c] sm:$0xf]
  %v81 = vld [vmem:[%s1 + $0x70] sm:$0xf]
  %v82 = vld [vmem:[%s1 + $0x74] sm:$0xf]
  %v83 = vld [vmem:[%s1 + $0x78] sm:$0xf]
  %v84 = vld [vmem:[%s1 + $0x7c] sm:$0xf]
  %v85 = vld [vmem:[%s1 + $0x80] sm:$0xf]
  %v86 = vld [vmem:[%s1 + $0x84] sm:$0xf]
  %v87 = vld [vmem:[%s1 + $0x88] sm:$0xf]
  %v88 = vld [vmem:[%s1 + $0x8c] sm:$0xf]
  %v89 = vld [vmem:[%s1 + $0x90] sm:$0xf]
  %v90 = vld [vmem:[%s1 + $0x94] sm:$0xf]
  %v91 = vld [vmem:[%s1 + $0x98] sm:$0xf]
  %v92 = vld [vmem:[%s1 + $0x9c] sm:$0xf]
  %v93 = vld [vmem:[%s1 + $0xa0] sm:$0xf]
  %v94 = vld [vmem:[%s1 + $0xa4] sm:$0xf]
  %v95 = vld [vmem:[%s1 + $0xa8] sm:$0xf]
  %v96 = vld [vmem:[%s1 + $0xac] sm:$0xf]
  %v97 = vld [vmem:[%s1 + $0xb0] sm:$0xf]
  %v98 = vld [vmem:[%s1 + $0xb4] sm:$0xf]
  %v99 = vld [vmem:[%s1 + $0xb8] sm:$0xf]
  %v100 = vld [vmem:[%s1 + $0xbc] sm:$0xf]
  %v101 = vld [vmem:[%s1 + $0xc0] sm:$0xf]
  %v102 = vld [vmem:[%s1 + $0xc4] sm:$0xf]
  %v103 = vld [vmem:[%s1 + $0xc8] sm:$0xf]
  %v104 = vld [vmem:[%s1 + $0xcc] sm:$0xf]
  %v105 = vld [vmem:[%s1 + $0xd0] sm:$0xf]
  %v106 = vld [vmem:[%s1 + $0xd4] sm:$0xf]
  %v107 = vld [vmem:[%s1 + $0xd8] sm:$0xf]
  %v108 = vld [vmem:[%s1 + $0xdc] sm:$0xf]
  %v109 = vld [vmem:[%s1 + $0xe0] sm:$0xf]
  %v110 = vld [vmem:[%s1 + $0xe4] sm:$0xf]
  %v111 = vld [vmem:[%s1 + $0xe8] sm:$0xf]
  %v112 = vld [vmem:[%s1 + $0xec] sm:$0xf]
  %v113 = vld [vmem:[%s1 + $0xf0] sm:$0xf]
  %v114 = vld [vmem:[%s1 + $0xf4] sm:$0xf]
  %v115 = vld [vmem:[%s1 + $0xf8] sm:$0xf]
  %v116 = vld [vmem:[%s1 + $0xfc] sm:$0xf]
  %v117 = vld [vmem:[%s1 + $0x100] sm:$0xf]
  %v118 = vld [vmem:[%s1 + $0x104] sm:$0xf]
  %v119 = vld [vmem:[%s1 + $0x108] sm:$0xf]
  %v120 = vld [vmem:[%s1 + $0x10c] sm:$0xf]
  %v121 = vld [vmem:[%s1 + $0x110] sm:$0xf]
  %v122 = vld [vmem:[%s1 + $0x114] sm:$0xf]
  %v123 = vld [vmem:[%s1 + $0x118] sm:$0xf]
  %v124 = vld [vmem:[%s1 + $0x11c] sm:$0xf]
  %v125 = vld [vmem:[%s1 + $0x120] sm:$0xf]
  %v126 = vld [vmem:[%s1 + $0x124] sm:$0xf]
  %v127 = vld [vmem:[%s1 + $0x128] sm:$0xf]
  %v128 = vld [vmem:[%s1 + $0x12c] sm:$0xf]
  %v129 = vld [vmem:[%s1 + $0x130] sm:$0xf]
  %v130 = vld [vmem:[%s1 + $0x134] sm:$0xf]
  %v131 = vld [vmem:[%s1 + $0x138] sm:$0xf]
  %v132 = vld [vmem:[%s1 + $0x13c] sm:$0xf]
  %v133 = vld [vmem:[%s1 + $0x140] sm:$0xf]
  %v134 = vld [vmem:[%s1 + $0x144] sm:$0xf]
  %v135 = vld [vmem:[%s1 + $0x148] sm:$0xf]
  %v136 = vld [vmem:[%s1 + $0x14c] sm:$0xf]
  %v137 = vld [vmem:[%s1 + $0x150] sm:$0xf]
  %v138 = vld [vmem:[%s1 + $0x154] sm:$0xf]
  %v139 = vld [vmem:[%s1 + $0x158] sm:$0xf]
  %v140 = vld [vmem:[%s1 + $0x15c] sm:$0xf]
  %v141 = vld [vmem:[%s1 + $0x160] sm:$0xf]
  %v142 = vld [vmem:[%s1 + $0x164] sm:$0xf]
  %v143 = vld [vmem:[%s1 + $0x168] sm:$0xf]
  %v144 = vld [vmem:[%s1 + $0x16c] sm:$0xf]
  %v145 = vld [vmem:[%s1 + $0x170] sm:$0xf]
  %v146 = vld [vmem:[%s1 + $0x174] sm:$0xf]
  %v147 = vld [vmem:[%s1 + $0x178] sm:$0xf]
  %v148 = vld [vmem:[%s1 + $0x17c] sm:$0xf]
  %v149 = vld [vmem:[%s1 + $0x180] sm:$0xf]
  %v150 = vld [vmem:[%s1 + $0x184] sm:$0xf]
  %v151 = vld [vmem:[%s1 + $0x188] sm:$0xf]
  %v152 = vld [vmem:[%s1 + $0x18c] sm:$0xf]
  %v153 = vld [vmem:[%s1 + $0x190] sm:$0xf]
  %v154 = vld [vmem:[%s1 + $0x194] sm:$0xf]
  %v155 = vld [vmem:[%s1 + $0x198] sm:$0xf]
  %v156 = vld [vmem:[%s1 + $0x19c] sm:$0xf]
  %v157 = vld [vmem:[%s1 + $0x1a0] sm:$0xf]
  %v158 = vld [vmem:[%s1 + $0x1a4] sm:$0xf]
  %v159 = vld [vmem:[%s1 + $0x1a8] sm:$0xf]
  %v160 = vld [vmem:[%s1 + $0x1ac] sm:$0xf]
  %v161 = vld [vmem:[%s1 + $0x1b0] sm:$0xf]
  %v162 = vld [vmem:[%s1 + $0x1b4] sm:$0xf]
  %v163 = vld [vmem:[%s1 + $0x1b8] sm:$0xf]
  %v164 = vld [vmem:[%s1 + $0x1bc] sm:$0xf]
  %v165 = vld [vmem:[%s1 + $0x1c0] sm:$0xf]
  %v166 = vld [vmem:[%s1 + $0x1c4] sm:$0xf]
  %v167 = vld [vmem:[%s1 + $0x1c8] sm:$0xf]
  %v168 = vld [vmem:[%s1 + $0x1cc] sm:$0xf]
  %v169 = vld [vmem:[%s1 + $0x1d0] sm:$0xf]
  %v170 = vld [vmem:[%s1 + $0x1d4] sm:$0xf]
  %v171 = vld [vmem:[%s1 + $0x1d8] sm:$0xf]
  %v172 = vld [vmem:[%s1 + $0x1dc] sm:$0xf]
  %v173 = vld [vmem:[%s1 + $0x1e0] sm:$0xf]
  %v174 = vld [vmem:[%s1 + $0x1e4] sm:$0xf]
  %v175 = vld [vmem:[%s1 + $0x1e8] sm:$0xf]
  %v176 = vld [vmem:[%s1 + $0x1ec] sm:$0xf]
  %v177 = vld [vmem:[%s1 + $0x1f0] sm:$0xf]
  %v178 = vld [vmem:[%s1 + $0x1f4] sm:$0xf]
  %v179 = vld [vmem:[%s1 + $0x1f8] sm:$0xf]
  %v180 = vld [vmem:[%s1 + $0x1fc] sm:$0xf]
  %v181 = vld [vmem:[%s1 + $0x200] sm:$0xf]
  %v182 = vld [vmem:[%s1 + $0x204] sm:$0xf]
  %v183 = vld [vmem:[%s1 + $0x208] sm:$0xf]
  %v184 = vld [vmem:[%s1 + $0x20c] sm:$0xf]
  %v185 = vld [vmem:[%s1 + $0x210] sm:$0xf]
  %v186 = vld [vmem:[%s1 + $0x214] sm:$0xf]
  %v187 = vld [vmem:[%s1 + $0x218] sm:$0xf]
  %v188 = vld [vmem:[%s1 + $0x21c] sm:$0xf]
  %v189 = vld [vmem:[%s1 + $0x220] sm:$0xf]
  %v190 = vld [vmem:[%s1 + $0x224] sm:$0xf]
  %v191 = vld [vmem:[%s1 + $0x228] sm:$0xf]
  %v192 = vld [vmem:[%s1 + $0x22c] sm:$0xf]
  %v193 = vld [vmem:[%s1 + $0x230] sm:$0xf]
  %v194 = vld [vmem:[%s1 + $0x234] sm:$0xf]
  %v195 = vld [vmem:[%s1 + $0x238] sm:$0xf]
  %v196 = vld [vmem:[%s1 + $0x23c] sm:$0xf]
  %v197 = vld [vmem:[%s1 + $0x240] sm:$0xf]
  %v198 = vld [vmem:[%s1 + $0x244] sm:$0xf]
  %v199 = vld [vmem:[%s1 + $0x248] sm:$0xf]
  %v200 = vld [vmem:[%s1 + $0x24c] sm:$0xf]
  %v201 = vld [vmem:[%s1 + $0x250] sm:$0xf]
  %v202 = vld [vmem:[%s1 + $0x254] sm:$0xf]
  %v203 = vld [vmem:[%s1 + $0x258] sm:$0xf]
  %v204 = vld [vmem:[%s1 + $0x25c] sm:$0xf]
  %v205 = vld [vmem:[%s1 + $0x260] sm:$0xf]
  %v206 = vld [vmem:[%s1 + $0x264] sm:$0xf]
  %v207 = vld [vmem:[%s1 + $0x268] sm:$0xf]
  %v208 = vld [vmem:[%s1 + $0x26c] sm:$0xf]
  %v209 = vld [vmem:[%s1 + $0x270] sm:$0xf]
  %v210 = vld [vmem:[%s1 + $0x274] sm:$0xf]
  %v211 = vld [vmem:[%s1 + $0x278] sm:$0xf]
  %v212 = vld [vmem:[%s1 + $0x27c] sm:$0xf]
  %v213 = vld [vmem:[%s1 + $0x280] sm:$0xf]
  %v214 = vld [vmem:[%s1 + $0x284] sm:$0xf]
  %v215 = vld [vmem:[%s1 + $0x288] sm:$0xf]
  %v216 = vld [vmem:[%s1 + $0x28c] sm:$0xf]
  %v217 = vld [vmem:[%s1 + $0x290] sm:$0xf]
  %v218 = vld [vmem:[%s1 + $0x294] sm:$0xf]
  %v219 = vld [vmem:[%s1 + $0x298] sm:$0xf]
  %v220 = vld [vmem:[%s1 + $0x29c] sm:$0xf]
  %v221 = vld [vmem:[%s1 + $0x2a0] sm:$0xf]
  %v222 = vld [vmem:[%s1 + $0x2a4] sm:$0xf]
  %v223 = vld [vmem:[%s1 + $0x2a8] sm:$0xf]
  %v224 = vld [vmem:[%s1 + $0x2ac] sm:$0xf]
  %v225 = vld [vmem:[%s1 + $0x2b0] sm:$0xf]
  %v226 = vld [vmem:[%s1 + $0x2b4] sm:$0xf]
  %v227 = vld [vmem:[%s1 + $0x2b8] sm:$0xf]
  %v228 = vld [vmem:[%s1 + $0x2bc] sm:$0xf]
  %v229 = vld [vmem:[%s1 + $0x2c0] sm:$0xf]
  %v230 = vld [vmem:[%s1 + $0x2c4] sm:$0xf]
  %v231 = vld [vmem:[%s1 + $0x2c8] sm:$0xf]
  %v232 = vld [vmem:[%s1 + $0x2cc] sm:$0xf]
  %v233 = vld [vmem:[%s1 + $0x2d0] sm:$0xf]
  %v234 = vld [vmem:[%s1 + $0x2d4] sm:$0xf]
  %v235 = vld [vmem:[%s1 + $0x2d8] sm:$0xf]
  %v236 = vld [vmem:[%s1 + $0x2dc] sm:$0xf]
  %v237 = vld [vmem:[%s1 + $0x2e0] sm:$0xf]
  %v238 = vld [vmem:[%s1 + $0x2e4] sm:$0xf]
  %v239 = vld [vmem:[%s1 + $0x2e8] sm:$0xf]
  %v240 = vld [vmem:[%s1 + $0x2ec] sm:$0xf]
  %v241 = vld [vmem:[%s1 + $0x2f0] sm:$0xf]
  %v242 = vld [vmem:[%s1 + $0x2f4] sm:$0xf]
  %v243 = vld [vmem:[%s1 + $0x2f8] sm:$0xf]
  %v244 = vld [vmem:[%s1 + $0x2fc] sm:$0xf]
  %v245 = vld [vmem:[%s1 + $0x300] sm:$0xf]
  %v246 = vld [vmem:[%s1 + $0x304] sm:$0xf]
  %v247 = vld [vmem:[%s1 + $0x308] sm:$0xf]
  %v248 = vld [vmem:[%s1 + $0x30c] sm:$0xf]
  %v249 = vld [vmem:[%s1 + $0x310] sm:$0xf]
  %v250 = vld [vmem:[%s1 + $0x314] sm:$0xf]
  %v251 = vld [vmem:[%s1 + $0x318] sm:$0xf]
  %v252 = vld [vmem:[%s1 + $0x31c] sm:$0xf]
  %v253 = vld [vmem:[%s1 + $0x320] sm:$0xf]
  %v254 = vld [vmem:[%s1 + $0x324] sm:$0xf]
  %v255 = vld [vmem:[%s1 + $0x328] sm:$0xf]
  %v256 = vld [vmem:[%s1 + $0x32c] sm:$0xf]
  %v257 = vld [vmem:[%s1 + $0x330] sm:$0xf]
  %v258 = vld [vmem:[%s1 + $0x334] sm:$0xf]
  %v259 = vld [vmem:[%s1 + $0x338] sm:$0xf]
  %v260 = vld [vmem:[%s1 + $0x33c] sm:$0xf]
  %v261 = vld [vmem:[%s1 + $0x340] sm:$0xf]
  %v262 = vld [vmem:[%s1 + $0x344] sm:$0xf]
  %v263 = vld [vmem:[%s1 + $0x348] sm:$0xf]
  %v264 = vld [vmem:[%s1 + $0x34c] sm:$0xf]
  %v265 = vld [vmem:[%s1 + $0x350] sm:$0xf]
  %v266 = vld [vmem:[%s1 + $0x354] sm:$0xf]
  %v267 = vld [vmem:[%s1 + $0x358] sm:$0xf]
  %v268 = vld [vmem:[%s1 + $0x35c] sm:$0xf]
  %v269 = vld [vmem:[%s1 + $0x360] sm:$0xf]
  %v270 = vld [vmem:[%s1 + $0x364] sm:$0xf]
  %v271 = vld [vmem:[%s1 + $0x368] sm:$0xf]
  %v272 = vld [vmem:[%s1 + $0x36c] sm:$0xf]
  %v273 = vld [vmem:[%s1 + $0x370] sm:$0xf]
  %v274 = vld [vmem:[%s1 + $0x374] sm:$0xf]
  %v275 = vld [vmem:[%s1 + $0x378] sm:$0xf]
  %v276 = vld [vmem:[%s1 + $0x37c] sm:$0xf]
  %v277 = vld [vmem:[%s1 + $0x380] sm:$0xf]
  %v278 = vld [vmem:[%s1 + $0x384] sm:$0xf]
  %v279 = vld [vmem:[%s1 + $0x388] sm:$0xf]
  %v280 = vld [vmem:[%s1 + $0x38c] sm:$0xf]
  %v281 = vld [vmem:[%s1 + $0x390] sm:$0xf]
  %v282 = vld [vmem:[%s1 + $0x394] sm:$0xf]
  %v283 = vld [vmem:[%s1 + $0x398] sm:$0xf]
  %v284 = vld [vmem:[%s1 + $0x39c] sm:$0xf]
  %v285 = vld [vmem:[%s1 + $0x3a0] sm:$0xf]
  %v286 = vld [vmem:[%s1 + $0x3a4] sm:$0xf]
  %v287 = vld [vmem:[%s1 + $0x3a8] sm:$0xf]
  %v288 = vld [vmem:[%s1 + $0x3ac] sm:$0xf]
  %v289 = vld [vmem:[%s1 + $0x3b0] sm:$0xf]
  %v290 = vld [vmem:[%s1 + $0x3b4] sm:$0xf]
  %v291 = vld [vmem:[%s1 + $0x3b8] sm:$0xf]
  %v292 = vld [vmem:[%s1 + $0x3bc] sm:$0xf]
  %v293 = vld [vmem:[%s1 + $0x3c0] sm:$0xf]
  %v294 = vld [vmem:[%s1 + $0x3c4] sm:$0xf]
  %v295 = vld [vmem:[%s1 + $0x3c8] sm:$0xf]
  %v296 = vld [vmem:[%s1 + $0x3cc] sm:$0xf]
  %v297 = vld [vmem:[%s1 + $0x3d0] sm:$0xf]
  %v298 = vld [vmem:[%s1 + $0x3d4] sm:$0xf]
  %v299 = vld [vmem:[%s1 + $0x3d8] sm:$0xf]
  %v300 = vld [vmem:[%s1 + $0x3dc] sm:$0xf]
  %v301 = vld [vmem:[%s1 + $0x3e0] sm:$0xf]
  %v302 = vld [vmem:[%s1 + $0x3e4] sm:$0xf]
  %v303 = vld [vmem:[%s1 + $0x3e8] sm:$0xf]
  %v304 = vld [vmem:[%s1 + $0x3ec] sm:$0xf]
  %v305 = vld [vmem:[%s1 + $0x3f0] sm:$0xf]
  %v306 = vld [vmem:[%s1 + $0x3f4] sm:$0xf]
  %v307 = vld [vmem:[%s1 + $0x3f8] sm:$0xf]
  %v308 = vld [vmem:[%s1 + $0x3fc] sm:$0xf]
  %v341 = vunpack.c.l.b16 %v21
  %v342 = vunpack.c.h.b16 %v21
  %v343 = vunpack.c.l.b16 %v22
  %v344 = vunpack.c.h.b16 %v22
  %v345 = vunpack.c.l.b16 %v23
  %v346 = vunpack.c.h.b16 %v23
  %v347 = vunpack.c.l.b16 %v24
  %v348 = vunpack.c.h.b16 %v24
  %v349 = vunpack.c.l.b16 %v25
  %v350 = vunpack.c.h.b16 %v25
  %v351 = vunpack.c.l.b16 %v26
  %v352 = vunpack.c.h.b16 %v26
  %v353 = vunpack.c.l.b16 %v27
  %v354 = vunpack.c.h.b16 %v27
  %v355 = vunpack.c.l.b16 %v28
  %v356 = vunpack.c.h.b16 %v28
  %v357 = vunpack.c.l.b16 %v29
  %v358 = vunpack.c.h.b16 %v29
  %v359 = vunpack.c.l.b16 %v30
  %v360 = vunpack.c.h.b16 %v30
  %v361 = vunpack.c.l.b16 %v31
  %v362 = vunpack.c.h.b16 %v31
  %v363 = vunpack.c.l.b16 %v32
  %v364 = vunpack.c.h.b16 %v32
  %v365 = vunpack.c.l.b16 %v33
  %v366 = vunpack.c.h.b16 %v33
  %v367 = vunpack.c.l.b16 %v34
  %v368 = vunpack.c.h.b16 %v34
  %v369 = vunpack.c.l.b16 %v35
  %v370 = vunpack.c.h.b16 %v35
  %v371 = vunpack.c.l.b16 %v36
  %v372 = vunpack.c.h.b16 %v36
  %v373 = vunpack.c.l.b16 %v37
  %v374 = vunpack.c.h.b16 %v37
  %v375 = vunpack.c.l.b16 %v38
  %v376 = vunpack.c.h.b16 %v38
  %v377 = vunpack.c.l.b16 %v39
  %v378 = vunpack.c.h.b16 %v39
  %v379 = vunpack.c.l.b16 %v40
  %v380 = vunpack.c.h.b16 %v40
  %v381 = vunpack.c.l.b16 %v41
  %v382 = vunpack.c.h.b16 %v41
  %v383 = vunpack.c.l.b16 %v42
  %v384 = vunpack.c.h.b16 %v42
  %v385 = vunpack.c.l.b16 %v43
  %v386 = vunpack.c.h.b16 %v43
  %v387 = vunpack.c.l.b16 %v44
  %v388 = vunpack.c.h.b16 %v44
  %v389 = vunpack.c.l.b16 %v45
  %v390 = vunpack.c.h.b16 %v45
  %v391 = vunpack.c.l.b16 %v46
  %v392 = vunpack.c.h.b16 %v46
  %v393 = vunpack.c.l.b16 %v47
  %v394 = vunpack.c.h.b16 %v47
  %v395 = vunpack.c.l.b16 %v48
  %v396 = vunpack.c.h.b16 %v48
  %v397 = vunpack.c.l.b16 %v49
  %v398 = vunpack.c.h.b16 %v49
  %v399 = vunpack.c.l.b16 %v50
  %v400 = vunpack.c.h.b16 %v50
  %v401 = vunpack.c.l.b16 %v51
  %v402 = vunpack.c.h.b16 %v51
  %v403 = vunpack.c.l.b16 %v52
  %v404 = vunpack.c.h.b16 %v52
  %v405 = vpack.c.b16 %v357, %v341
  %v406 = vpack.c.b16 %v358, %v342
  %v407 = vpack.c.b16 %v359, %v343
  %v408 = vpack.c.b16 %v360, %v344
  %v409 = vpack.c.b16 %v361, %v345
  %v410 = vpack.c.b16 %v362, %v346
  %v411 = vpack.c.b16 %v363, %v347
  %v412 = vpack.c.b16 %v364, %v348
  %v413 = vpack.c.b16 %v365, %v349
  %v414 = vpack.c.b16 %v366, %v350
  %v415 = vpack.c.b16 %v367, %v351
  %v416 = vpack.c.b16 %v368, %v352
  %v417 = vpack.c.b16 %v369, %v353
  %v418 = vpack.c.b16 %v370, %v354
  %v419 = vpack.c.b16 %v371, %v355
  %v420 = vpack.c.b16 %v372, %v356
  %v421 = vpack.c.b16 %v389, %v373
  %v422 = vpack.c.b16 %v390, %v374
  %v423 = vpack.c.b16 %v391, %v375
  %v424 = vpack.c.b16 %v392, %v376
  %v425 = vpack.c.b16 %v393, %v377
  %v426 = vpack.c.b16 %v394, %v378
  %v427 = vpack.c.b16 %v395, %v379
  %v428 = vpack.c.b16 %v396, %v380
  %v429 = vpack.c.b16 %v397, %v381
  %v430 = vpack.c.b16 %v398, %v382
  %v431 = vpack.c.b16 %v399, %v383
  %v432 = vpack.c.b16 %v400, %v384
  %v433 = vpack.c.b16 %v401, %v385
  %v434 = vpack.c.b16 %v402, %v386
  %v435 = vpack.c.b16 %v403, %v387
  %v436 = vpack.c.b16 %v404, %v388
  %v725 = vunpack.c.l.b16 %v53
  %v726 = vunpack.c.l.b16 %v54
  %v727 = vunpack.c.l.b16 %v55
  %v728 = vunpack.c.l.b16 %v56
  %v729 = vunpack.c.l.b16 %v57
  %v730 = vunpack.c.l.b16 %v58
  %v731 = vunpack.c.l.b16 %v59
  %v732 = vunpack.c.l.b16 %v60
  %v733 = vunpack.c.l.b16 %v61
  %v734 = vunpack.c.l.b16 %v62
  %v735 = vunpack.c.l.b16 %v63
  %v736 = vunpack.c.l.b16 %v64
  %v737 = vunpack.c.l.b16 %v65
  %v738 = vunpack.c.l.b16 %v66
  %v739 = vunpack.c.l.b16 %v67
  %v740 = vunpack.c.l.b16 %v68
  %v741 = vunpack.c.l.b16 %v69
  %v742 = vunpack.c.l.b16 %v70
  %v743 = vunpack.c.l.b16 %v71
  %v744 = vunpack.c.l.b16 %v72
  %v745 = vunpack.c.l.b16 %v73
  %v746 = vunpack.c.l.b16 %v74
  %v747 = vunpack.c.l.b16 %v75
  %v748 = vunpack.c.l.b16 %v76
  %v749 = vunpack.c.l.b16 %v77
  %v750 = vunpack.c.l.b16 %v78
  %v751 = vunpack.c.l.b16 %v79
  %v752 = vunpack.c.l.b16 %v80
  %v753 = vunpack.c.l.b16 %v81
  %v754 = vunpack.c.l.b16 %v82
  %v755 = vunpack.c.l.b16 %v83
  %v756 = vunpack.c.l.b16 %v84
  %v757 = vunpack.c.l.b16 %v85
  %v758 = vunpack.c.l.b16 %v86
  %v759 = vunpack.c.l.b16 %v87
  %v760 = vunpack.c.l.b16 %v88
  %v761 = vunpack.c.l.b16 %v89
  %v762 = vunpack.c.l.b16 %v90
  %v763 = vunpack.c.l.b16 %v91
  %v764 = vunpack.c.l.b16 %v92
  %v765 = vunpack.c.l.b16 %v93
  %v766 = vunpack.c.l.b16 %v94
  %v767 = vunpack.c.l.b16 %v95
  %v768 = vunpack.c.l.b16 %v96
  %v769 = vunpack.c.l.b16 %v97
  %v770 = vunpack.c.l.b16 %v98
  %v771 = vunpack.c.l.b16 %v99
  %v772 = vunpack.c.l.b16 %v100
  %v773 = vunpack.c.l.b16 %v101
  %v774 = vunpack.c.l.b16 %v102
  %v775 = vunpack.c.l.b16 %v103
  %v776 = vunpack.c.l.b16 %v104
  %v777 = vunpack.c.l.b16 %v105
  %v778 = vunpack.c.l.b16 %v106
  %v779 = vunpack.c.l.b16 %v107
  %v780 = vunpack.c.l.b16 %v108
  %v781 = vunpack.c.l.b16 %v109
  %v782 = vunpack.c.l.b16 %v110
  %v783 = vunpack.c.l.b16 %v111
  %v784 = vunpack.c.l.b16 %v112
  %v785 = vunpack.c.l.b16 %v113
  %v786 = vunpack.c.l.b16 %v114
  %v787 = vunpack.c.l.b16 %v115
  %v788 = vunpack.c.l.b16 %v116
  %v789 = vunpack.c.l.b16 %v117
  %v790 = vunpack.c.l.b16 %v118
  %v791 = vunpack.c.l.b16 %v119
  %v792 = vunpack.c.l.b16 %v120
  %v793 = vunpack.c.l.b16 %v121
  %v794 = vunpack.c.l.b16 %v122
  %v795 = vunpack.c.l.b16 %v123
  %v796 = vunpack.c.l.b16 %v124
  %v797 = vunpack.c.l.b16 %v125
  %v798 = vunpack.c.l.b16 %v126
  %v799 = vunpack.c.l.b16 %v127
  %v800 = vunpack.c.l.b16 %v128
  %v801 = vunpack.c.l.b16 %v129
  %v802 = vunpack.c.l.b16 %v130
  %v803 = vunpack.c.l.b16 %v131
  %v804 = vunpack.c.l.b16 %v132
  %v805 = vunpack.c.l.b16 %v133
  %v806 = vunpack.c.l.b16 %v134
  %v807 = vunpack.c.l.b16 %v135
  %v808 = vunpack.c.l.b16 %v136
  %v809 = vunpack.c.l.b16 %v137
  %v810 = vunpack.c.l.b16 %v138
  %v811 = vunpack.c.l.b16 %v139
  %v812 = vunpack.c.l.b16 %v140
  %v813 = vunpack.c.l.b16 %v141
  %v814 = vunpack.c.l.b16 %v142
  %v815 = vunpack.c.l.b16 %v143
  %v816 = vunpack.c.l.b16 %v144
  %v817 = vunpack.c.l.b16 %v145
  %v818 = vunpack.c.l.b16 %v146
  %v819 = vunpack.c.l.b16 %v147
  %v820 = vunpack.c.l.b16 %v148
  %v821 = vunpack.c.l.b16 %v149
  %v822 = vunpack.c.l.b16 %v150
  %v823 = vunpack.c.l.b16 %v151
  %v824 = vunpack.c.l.b16 %v152
  %v825 = vunpack.c.l.b16 %v153
  %v826 = vunpack.c.l.b16 %v154
  %v827 = vunpack.c.l.b16 %v155
  %v828 = vunpack.c.l.b16 %v156
  %v829 = vunpack.c.l.b16 %v157
  %v830 = vunpack.c.l.b16 %v158
  %v831 = vunpack.c.l.b16 %v159
  %v832 = vunpack.c.l.b16 %v160
  %v833 = vunpack.c.l.b16 %v161
  %v834 = vunpack.c.l.b16 %v162
  %v835 = vunpack.c.l.b16 %v163
  %v836 = vunpack.c.l.b16 %v164
  %v837 = vunpack.c.l.b16 %v165
  %v838 = vunpack.c.l.b16 %v166
  %v839 = vunpack.c.l.b16 %v167
  %v840 = vunpack.c.l.b16 %v168
  %v841 = vunpack.c.l.b16 %v169
  %v842 = vunpack.c.l.b16 %v170
  %v843 = vunpack.c.l.b16 %v171
  %v844 = vunpack.c.l.b16 %v172
  %v845 = vunpack.c.l.b16 %v173
  %v846 = vunpack.c.l.b16 %v174
  %v847 = vunpack.c.l.b16 %v175
  %v848 = vunpack.c.l.b16 %v176
  %v849 = vunpack.c.l.b16 %v177
  %v850 = vunpack.c.l.b16 %v178
  %v851 = vunpack.c.l.b16 %v179
  %v852 = vunpack.c.l.b16 %v180
  %v853 = vunpack.c.l.b16 %v181
  %v854 = vunpack.c.l.b16 %v182
  %v855 = vunpack.c.l.b16 %v183
  %v856 = vunpack.c.l.b16 %v184
  %v857 = vunpack.c.l.b16 %v185
  %v858 = vunpack.c.l.b16 %v186
  %v859 = vunpack.c.l.b16 %v187
  %v860 = vunpack.c.l.b16 %v188
  %v861 = vunpack.c.l.b16 %v189
  %v862 = vunpack.c.l.b16 %v190
  %v863 = vunpack.c.l.b16 %v191
  %v864 = vunpack.c.l.b16 %v192
  %v865 = vunpack.c.l.b16 %v193
  %v866 = vunpack.c.l.b16 %v194
  %v867 = vunpack.c.l.b16 %v195
  %v868 = vunpack.c.l.b16 %v196
  %v869 = vunpack.c.l.b16 %v197
  %v870 = vunpack.c.l.b16 %v198
  %v871 = vunpack.c.l.b16 %v199
  %v872 = vunpack.c.l.b16 %v200
  %v873 = vunpack.c.l.b16 %v201
  %v874 = vunpack.c.l.b16 %v202
  %v875 = vunpack.c.l.b16 %v203
  %v876 = vunpack.c.l.b16 %v204
  %v877 = vunpack.c.l.b16 %v205
  %v878 = vunpack.c.l.b16 %v206
  %v879 = vunpack.c.l.b16 %v207
  %v880 = vunpack.c.l.b16 %v208
  %v881 = vunpack.c.l.b16 %v209
  %v882 = vunpack.c.l.b16 %v210
  %v883 = vunpack.c.l.b16 %v211
  %v884 = vunpack.c.l.b16 %v212
  %v885 = vunpack.c.l.b16 %v213
  %v886 = vunpack.c.l.b16 %v214
  %v887 = vunpack.c.l.b16 %v215
  %v888 = vunpack.c.l.b16 %v216
  %v889 = vunpack.c.l.b16 %v217
  %v890 = vunpack.c.l.b16 %v218
  %v891 = vunpack.c.l.b16 %v219
  %v892 = vunpack.c.l.b16 %v220
  %v893 = vunpack.c.l.b16 %v221
  %v894 = vunpack.c.l.b16 %v222
  %v895 = vunpack.c.l.b16 %v223
  %v896 = vunpack.c.l.b16 %v224
  %v897 = vunpack.c.l.b16 %v225
  %v898 = vunpack.c.l.b16 %v226
  %v899 = vunpack.c.l.b16 %v227
  %v900 = vunpack.c.l.b16 %v228
  %v901 = vunpack.c.l.b16 %v229
  %v902 = vunpack.c.l.b16 %v230
  %v903 = vunpack.c.l.b16 %v231
  %v904 = vunpack.c.l.b16 %v232
  %v905 = vunpack.c.l.b16 %v233
  %v906 = vunpack.c.l.b16 %v234
  %v907 = vunpack.c.l.b16 %v235
  %v908 = vunpack.c.l.b16 %v236
  %v909 = vunpack.c.l.b16 %v237
  %v910 = vunpack.c.l.b16 %v238
  %v911 = vunpack.c.l.b16 %v239
  %v912 = vunpack.c.l.b16 %v240
  %v913 = vunpack.c.l.b16 %v241
  %v914 = vunpack.c.l.b16 %v242
  %v915 = vunpack.c.l.b16 %v243
  %v916 = vunpack.c.l.b16 %v244
  %v917 = vunpack.c.l.b16 %v245
  %v918 = vunpack.c.l.b16 %v246
  %v919 = vunpack.c.l.b16 %v247
  %v920 = vunpack.c.l.b16 %v248
  %v921 = vunpack.c.l.b16 %v249
  %v922 = vunpack.c.l.b16 %v250
  %v923 = vunpack.c.l.b16 %v251
  %v924 = vunpack.c.l.b16 %v252
  %v925 = vunpack.c.l.b16 %v253
  %v926 = vunpack.c.l.b16 %v254
  %v927 = vunpack.c.l.b16 %v255
  %v928 = vunpack.c.l.b16 %v256
  %v929 = vunpack.c.l.b16 %v257
  %v930 = vunpack.c.l.b16 %v258
  %v931 = vunpack.c.l.b16 %v259
  %v932 = vunpack.c.l.b16 %v260
  %v933 = vunpack.c.l.b16 %v261
  %v934 = vunpack.c.l.b16 %v262
  %v935 = vunpack.c.l.b16 %v263
  %v936 = vunpack.c.l.b16 %v264
  %v937 = vunpack.c.l.b16 %v265
  %v938 = vunpack.c.l.b16 %v266
  %v939 = vunpack.c.l.b16 %v267
  %v940 = vunpack.c.l.b16 %v268
  %v941 = vunpack.c.l.b16 %v269
  %v942 = vunpack.c.l.b16 %v270
  %v943 = vunpack.c.l.b16 %v271
  %v944 = vunpack.c.l.b16 %v272
  %v945 = vunpack.c.l.b16 %v273
  %v946 = vunpack.c.l.b16 %v274
  %v947 = vunpack.c.l.b16 %v275
  %v948 = vunpack.c.l.b16 %v276
  %v949 = vunpack.c.l.b16 %v277
  %v950 = vunpack.c.l.b16 %v278
  %v951 = vunpack.c.l.b16 %v279
  %v952 = vunpack.c.l.b16 %v280
  %v953 = vunpack.c.l.b16 %v281
  %v954 = vunpack.c.l.b16 %v282
  %v955 = vunpack.c.l.b16 %v283
  %v956 = vunpack.c.l.b16 %v284
  %v957 = vunpack.c.l.b16 %v285
  %v958 = vunpack.c.l.b16 %v286
  %v959 = vunpack.c.l.b16 %v287
  %v960 = vunpack.c.l.b16 %v288
  %v961 = vunpack.c.l.b16 %v289
  %v962 = vunpack.c.l.b16 %v290
  %v963 = vunpack.c.l.b16 %v291
  %v964 = vunpack.c.l.b16 %v292
  %v965 = vunpack.c.l.b16 %v293
  %v966 = vunpack.c.l.b16 %v294
  %v967 = vunpack.c.l.b16 %v295
  %v968 = vunpack.c.l.b16 %v296
  %v969 = vunpack.c.l.b16 %v297
  %v970 = vunpack.c.l.b16 %v298
  %v971 = vunpack.c.l.b16 %v299
  %v972 = vunpack.c.l.b16 %v300
  %v973 = vunpack.c.l.b16 %v301
  %v974 = vunpack.c.l.b16 %v302
  %v975 = vunpack.c.l.b16 %v303
  %v976 = vunpack.c.l.b16 %v304
  %v977 = vunpack.c.l.b16 %v305
  %v978 = vunpack.c.l.b16 %v306
  %v979 = vunpack.c.l.b16 %v307
  %v980 = vunpack.c.l.b16 %v308
  %v981 = vpack.c.b16 %v726, %v725
  %v982 = vpack.c.b16 %v728, %v727
  %v983 = vpack.c.b16 %v730, %v729
  %v984 = vpack.c.b16 %v732, %v731
  %v985 = vpack.c.b16 %v734, %v733
  %v986 = vpack.c.b16 %v736, %v735
  %v987 = vpack.c.b16 %v738, %v737
  %v988 = vpack.c.b16 %v740, %v739
  %v989 = vpack.c.b16 %v742, %v741
  %v990 = vpack.c.b16 %v744, %v743
  %v991 = vpack.c.b16 %v746, %v745
  %v992 = vpack.c.b16 %v748, %v747
  %v993 = vpack.c.b16 %v750, %v749
  %v994 = vpack.c.b16 %v752, %v751
  %v995 = vpack.c.b16 %v754, %v753
  %v996 = vpack.c.b16 %v756, %v755
  %v997 = vpack.c.b16 %v758, %v757
  %v998 = vpack.c.b16 %v760, %v759
  %v999 = vpack.c.b16 %v762, %v761
  %v1000 = vpack.c.b16 %v764, %v763
  %v1001 = vpack.c.b16 %v766, %v765
  %v1002 = vpack.c.b16 %v768, %v767
  %v1003 = vpack.c.b16 %v770, %v769
  %v1004 = vpack.c.b16 %v772, %v771
  %v1005 = vpack.c.b16 %v774, %v773
  %v1006 = vpack.c.b16 %v776, %v775
  %v1007 = vpack.c.b16 %v778, %v777
  %v1008 = vpack.c.b16 %v780, %v779
  %v1009 = vpack.c.b16 %v782, %v781
  %v1010 = vpack.c.b16 %v784, %v783
  %v1011 = vpack.c.b16 %v786, %v785
  %v1012 = vpack.c.b16 %v788, %v787
  %v1013 = vpack.c.b16 %v790, %v789
  %v1014 = vpack.c.b16 %v792, %v791
  %v1015 = vpack.c.b16 %v794, %v793
  %v1016 = vpack.c.b16 %v796, %v795
  %v1017 = vpack.c.b16 %v798, %v797
  %v1018 = vpack.c.b16 %v800, %v799
  %v1019 = vpack.c.b16 %v802, %v801
  %v1020 = vpack.c.b16 %v804, %v803
  %v1021 = vpack.c.b16 %v806, %v805
  %v1022 = vpack.c.b16 %v808, %v807
  %v1023 = vpack.c.b16 %v810, %v809
  %v1024 = vpack.c.b16 %v812, %v811
  %v1025 = vpack.c.b16 %v814, %v813
  %v1026 = vpack.c.b16 %v816, %v815
  %v1027 = vpack.c.b16 %v818, %v817
  %v1028 = vpack.c.b16 %v820, %v819
  %v1029 = vpack.c.b16 %v822, %v821
  %v1030 = vpack.c.b16 %v824, %v823
  %v1031 = vpack.c.b16 %v826, %v825
  %v1032 = vpack.c.b16 %v828, %v827
  %v1033 = vpack.c.b16 %v830, %v829
  %v1034 = vpack.c.b16 %v832, %v831
  %v1035 = vpack.c.b16 %v834, %v833
  %v1036 = vpack.c.b16 %v836, %v835
  %v1037 = vpack.c.b16 %v838, %v837
  %v1038 = vpack.c.b16 %v840, %v839
  %v1039 = vpack.c.b16 %v842, %v841
  %v1040 = vpack.c.b16 %v844, %v843
  %v1041 = vpack.c.b16 %v846, %v845
  %v1042 = vpack.c.b16 %v848, %v847
  %v1043 = vpack.c.b16 %v850, %v849
  %v1044 = vpack.c.b16 %v852, %v851
  %v1045 = vpack.c.b16 %v854, %v853
  %v1046 = vpack.c.b16 %v856, %v855
  %v1047 = vpack.c.b16 %v858, %v857
  %v1048 = vpack.c.b16 %v860, %v859
  %v1049 = vpack.c.b16 %v862, %v861
  %v1050 = vpack.c.b16 %v864, %v863
  %v1051 = vpack.c.b16 %v866, %v865
  %v1052 = vpack.c.b16 %v868, %v867
  %v1053 = vpack.c.b16 %v870, %v869
  %v1054 = vpack.c.b16 %v872, %v871
  %v1055 = vpack.c.b16 %v874, %v873
  %v1056 = vpack.c.b16 %v876, %v875
  %v1057 = vpack.c.b16 %v878, %v877
  %v1058 = vpack.c.b16 %v880, %v879
  %v1059 = vpack.c.b16 %v882, %v881
  %v1060 = vpack.c.b16 %v884, %v883
  %v1061 = vpack.c.b16 %v886, %v885
  %v1062 = vpack.c.b16 %v888, %v887
  %v1063 = vpack.c.b16 %v890, %v889
  %v1064 = vpack.c.b16 %v892, %v891
  %v1065 = vpack.c.b16 %v894, %v893
  %v1066 = vpack.c.b16 %v896, %v895
  %v1067 = vpack.c.b16 %v898, %v897
  %v1068 = vpack.c.b16 %v900, %v899
  %v1069 = vpack.c.b16 %v902, %v901
  %v1070 = vpack.c.b16 %v904, %v903
  %v1071 = vpack.c.b16 %v906, %v905
  %v1072 = vpack.c.b16 %v908, %v907
  %v1073 = vpack.c.b16 %v910, %v909
  %v1074 = vpack.c.b16 %v912, %v911
  %v1075 = vpack.c.b16 %v914, %v913
  %v1076 = vpack.c.b16 %v916, %v915
  %v1077 = vpack.c.b16 %v918, %v917
  %v1078 = vpack.c.b16 %v920, %v919
  %v1079 = vpack.c.b16 %v922, %v921
  %v1080 = vpack.c.b16 %v924, %v923
  %v1081 = vpack.c.b16 %v926, %v925
  %v1082 = vpack.c.b16 %v928, %v927
  %v1083 = vpack.c.b16 %v930, %v929
  %v1084 = vpack.c.b16 %v932, %v931
  %v1085 = vpack.c.b16 %v934, %v933
  %v1086 = vpack.c.b16 %v936, %v935
  %v1087 = vpack.c.b16 %v938, %v937
  %v1088 = vpack.c.b16 %v940, %v939
  %v1089 = vpack.c.b16 %v942, %v941
  %v1090 = vpack.c.b16 %v944, %v943
  %v1091 = vpack.c.b16 %v946, %v945
  %v1092 = vpack.c.b16 %v948, %v947
  %v1093 = vpack.c.b16 %v950, %v949
  %v1094 = vpack.c.b16 %v952, %v951
  %v1095 = vpack.c.b16 %v954, %v953
  %v1096 = vpack.c.b16 %v956, %v955
  %v1097 = vpack.c.b16 %v958, %v957
  %v1098 = vpack.c.b16 %v960, %v959
  %v1099 = vpack.c.b16 %v962, %v961
  %v1100 = vpack.c.b16 %v964, %v963
  %v1101 = vpack.c.b16 %v966, %v965
  %v1102 = vpack.c.b16 %v968, %v967
  %v1103 = vpack.c.b16 %v970, %v969
  %v1104 = vpack.c.b16 %v972, %v971
  %v1105 = vpack.c.b16 %v974, %v973
  %v1106 = vpack.c.b16 %v976, %v975
  %v1107 = vpack.c.b16 %v978, %v977
  %v1108 = vpack.c.b16 %v980, %v979
  %1237 = vmatprep.subr.bf16.mxu0 0
  %1238 = vmatpush1.bf16.msra.mxu0 %v981
  %1239 = vmatprep.subr.bf16.mxu0 0
  %1240 = vmatpush1.bf16.msra.mxu0 %v982
  %1241 = vmatprep.subr.bf16.mxu0 0
  %1242 = vmatpush1.bf16.msra.mxu0 %v983
  %1243 = vmatprep.subr.bf16.mxu0 0
  %1244 = vmatpush1.bf16.msra.mxu0 %v984
  %1245 = vmatprep.subr.bf16.mxu0 0
  %1246 = vmatpush1.bf16.msra.mxu0 %v985
  %1247 = vmatprep.subr.bf16.mxu0 0
  %1248 = vmatpush1.bf16.msra.mxu0 %v986
  %1249 = vmatprep.subr.bf16.mxu0 0
  %1250 = vmatpush1.bf16.msra.mxu0 %v987
  %1251 = vmatprep.subr.bf16.mxu0 0
  %1252 = vmatpush1.bf16.msra.mxu0 %v988
  %1253 = vmatprep.subr.bf16.mxu0 0
  %1254 = vmatpush1.bf16.msra.mxu0 %v989
  %1255 = vmatprep.subr.bf16.mxu0 0
  %1256 = vmatpush1.bf16.msra.mxu0 %v990
  %1257 = vmatprep.subr.bf16.mxu0 0
  %1258 = vmatpush1.bf16.msra.mxu0 %v991
  %1259 = vmatprep.subr.bf16.mxu0 0
  %1260 = vmatpush1.bf16.msra.mxu0 %v992
  %1261 = vmatprep.subr.bf16.mxu0 0
  %1262 = vmatpush1.bf16.msra.mxu0 %v993
  %1263 = vmatprep.subr.bf16.mxu0 0
  %1264 = vmatpush1.bf16.msra.mxu0 %v994
  %1265 = vmatprep.subr.bf16.mxu0 0
  %1266 = vmatpush1.bf16.msra.mxu0 %v995
  %1267 = vmatprep.subr.bf16.mxu0 0
  %1268 = vmatpush1.bf16.msra.mxu0 %v996
  %1269 = vmatprep.mubr.bf16.mxu0 %v406
  %1270 = vmatmul.mubr.bf16.gmra.mrb[0].mxu0 %v405
  %v1271 = vpop.f32.mrb[0].mxu0
  %v1272 = vadd.f32 0.0, %v1271
  %v1273 = vpop.f32.mrb[0].mxu0
  %v1274 = vpop.f32.mrb[0].mxu0
  %v1275 = vadd.f32 0.0, %v1274
  %v1276 = vpop.f32.mrb[0].mxu0
  %1277 = vmatprep.mubr.bf16.mxu0 %v422
  %1278 = vmatmul.mubr.bf16.gmra.mrb[0].mxu0 %v421
  %v1279 = vpop.f32.mrb[0].mxu0
  %v1280 = vadd.f32 0.0, %v1279
  %v1281 = vpop.f32.mrb[0].mxu0
  %v1282 = vpop.f32.mrb[0].mxu0
  %v1283 = vadd.f32 0.0, %v1282
  %v1284 = vpop.f32.mrb[0].mxu0
  %1285 = vdwg.mxu0
  %1286 = vmatprep.subr.bf16.mxu0 0
  %1287 = vmatpush1.bf16.msra.mxu0 %v997
  %1288 = vmatprep.subr.bf16.mxu0 0
  %1289 = vmatpush1.bf16.msra.mxu0 %v998
  %1290 = vmatprep.subr.bf16.mxu0 0
  %1291 = vmatpush1.bf16.msra.mxu0 %v999
  %1292 = vmatprep.subr.bf16.mxu0 0
  %1293 = vmatpush1.bf16.msra.mxu0 %v1000
  %1294 = vmatprep.subr.bf16.mxu0 0
  %1295 = vmatpush1.bf16.msra.mxu0 %v1001
  %1296 = vmatprep.subr.bf16.mxu0 0
  %1297 = vmatpush1.bf16.msra.mxu0 %v1002
  %1298 = vmatprep.subr.bf16.mxu0 0
  %1299 = vmatpush1.bf16.msra.mxu0 %v1003
  %1300 = vmatprep.subr.bf16.mxu0 0
  %1301 = vmatpush1.bf16.msra.mxu0 %v1004
  %1302 = vmatprep.subr.bf16.mxu0 0
  %1303 = vmatpush1.bf16.msra.mxu0 %v1005
  %1304 = vmatprep.subr.bf16.mxu0 0
  %1305 = vmatpush1.bf16.msra.mxu0 %v1006
  %1306 = vmatprep.subr.bf16.mxu0 0
  %1307 = vmatpush1.bf16.msra.mxu0 %v1007
  %1308 = vmatprep.subr.bf16.mxu0 0
  %1309 = vmatpush1.bf16.msra.mxu0 %v1008
  %1310 = vmatprep.subr.bf16.mxu0 0
  %1311 = vmatpush1.bf16.msra.mxu0 %v1009
  %1312 = vmatprep.subr.bf16.mxu0 0
  %1313 = vmatpush1.bf16.msra.mxu0 %v1010
  %1314 = vmatprep.subr.bf16.mxu0 0
  %1315 = vmatpush1.bf16.msra.mxu0 %v1011
  %1316 = vmatprep.subr.bf16.mxu0 0
  %1317 = vmatpush1.bf16.msra.mxu0 %v1012
  %1318 = vmatprep.mubr.bf16.mxu0 %v408
  %1319 = vmatmul.mubr.bf16.gmra.mrb[0].mxu0 %v407
  %v1320 = vpop.f32.mrb[0].mxu0
  %v1321 = vadd.f32 %v1272, %v1320
  %v1322 = vpop.f32.mrb[0].mxu0
  %v1323 = vpop.f32.mrb[0].mxu0
  %v1324 = vadd.f32 %v1275, %v1323
  %v1325 = vpop.f32.mrb[0].mxu0
  %1326 = vmatprep.mubr.bf16.mxu0 %v424
  %1327 = vmatmul.mubr.bf16.gmra.mrb[0].mxu0 %v423
  %v1328 = vpop.f32.mrb[0].mxu0
  %v1329 = vadd.f32 %v1280, %v1328
  %v1330 = vpop.f32.mrb[0].mxu0
  %v1331 = vpop.f32.mrb[0].mxu0
  %v1332 = vadd.f32 %v1283, %v1331
  %v1333 = vpop.f32.mrb[0].mxu0
  %1334 = vdwg.mxu0
  %1335 = vmatprep.subr.bf16.mxu0 0
  %1336 = vmatpush1.bf16.msra.mxu0 %v1013
  %1337 = vmatprep.subr.bf16.mxu0 0
  %1338 = vmatpush1.bf16.msra.mxu0 %v1014
  %1339 = vmatprep.subr.bf16.mxu0 0
  %1340 = vmatpush1.bf16.msra.mxu0 %v1015
  %1341 = vmatprep.subr.bf16.mxu0 0
  %1342 = vmatpush1.bf16.msra.mxu0 %v1016
  %1343 = vmatprep.subr.bf16.mxu0 0
  %1344 = vmatpush1.bf16.msra.mxu0 %v1017
  %1345 = vmatprep.subr.bf16.mxu0 0
  %1346 = vmatpush1.bf16.msra.mxu0 %v1018
  %1347 = vmatprep.subr.bf16.mxu0 0
  %1348 = vmatpush1.bf16.msra.mxu0 %v1019
  %1349 = vmatprep.subr.bf16.mxu0 0
  %1350 = vmatpush1.bf16.msra.mxu0 %v1020
  %1351 = vmatprep.subr.bf16.mxu0 0
  %1352 = vmatpush1.bf16.msra.mxu0 %v1021
  %1353 = vmatprep.subr.bf16.mxu0 0
  %1354 = vmatpush1.bf16.msra.mxu0 %v1022
  %1355 = vmatprep.subr.bf16.mxu0 0
  %1356 = vmatpush1.bf16.msra.mxu0 %v1023
  %1357 = vmatprep.subr.bf16.mxu0 0
  %1358 = vmatpush1.bf16.msra.mxu0 %v1024
  %1359 = vmatprep.subr.bf16.mxu0 0
  %1360 = vmatpush1.bf16.msra.mxu0 %v1025
  %1361 = vmatprep.subr.bf16.mxu0 0
  %1362 = vmatpush1.bf16.msra.mxu0 %v1026
  %1363 = vmatprep.subr.bf16.mxu0 0
  %1364 = vmatpush1.bf16.msra.mxu0 %v1027
  %1365 = vmatprep.subr.bf16.mxu0 0
  %1366 = vmatpush1.bf16.msra.mxu0 %v1028
  %1367 = vmatprep.mubr.bf16.mxu0 %v410
  %1368 = vmatmul.mubr.bf16.gmra.mrb[0].mxu0 %v409
  %v1369 = vpop.f32.mrb[0].mxu0
  %v1370 = vadd.f32 %v1321, %v1369
  %v1371 = vpop.f32.mrb[0].mxu0
  %v1372 = vpop.f32.mrb[0].mxu0
  %v1373 = vadd.f32 %v1324, %v1372
  %v1374 = vpop.f32.mrb[0].mxu0
  %1375 = vmatprep.mubr.bf16.mxu0 %v426
  %1376 = vmatmul.mubr.bf16.gmra.mrb[0].mxu0 %v425
  %v1377 = vpop.f32.mrb[0].mxu0
  %v1378 = vadd.f32 %v1329, %v1377
  %v1379 = vpop.f32.mrb[0].mxu0
  %v1380 = vpop.f32.mrb[0].mxu0
  %v1381 = vadd.f32 %v1332, %v1380
  %v1382 = vpop.f32.mrb[0].mxu0
  %1383 = vdwg.mxu0
  %1384 = vmatprep.subr.bf16.mxu0 0
  %1385 = vmatpush1.bf16.msra.mxu0 %v1029
  %1386 = vmatprep.subr.bf16.mxu0 0
  %1387 = vmatpush1.bf16.msra.mxu0 %v1030
  %1388 = vmatprep.subr.bf16.mxu0 0
  %1389 = vmatpush1.bf16.msra.mxu0 %v1031
  %1390 = vmatprep.subr.bf16.mxu0 0
  %1391 = vmatpush1.bf16.msra.mxu0 %v1032
  %1392 = vmatprep.subr.bf16.mxu0 0
  %1393 = vmatpush1.bf16.msra.mxu0 %v1033
  %1394 = vmatprep.subr.bf16.mxu0 0
  %1395 = vmatpush1.bf16.msra.mxu0 %v1034
  %1396 = vmatprep.subr.bf16.mxu0 0
  %1397 = vmatpush1.bf16.msra.mxu0 %v1035
  %1398 = vmatprep.subr.bf16.mxu0 0
  %1399 = vmatpush1.bf16.msra.mxu0 %v1036
  %1400 = vmatprep.subr.bf16.mxu0 0
  %1401 = vmatpush1.bf16.msra.mxu0 %v1037
  %1402 = vmatprep.subr.bf16.mxu0 0
  %1403 = vmatpush1.bf16.msra.mxu0 %v1038
  %1404 = vmatprep.subr.bf16.mxu0 0
  %1405 = vmatpush1.bf16.msra.mxu0 %v1039
  %1406 = vmatprep.subr.bf16.mxu0 0
  %1407 = vmatpush1.bf16.msra.mxu0 %v1040
  %1408 = vmatprep.subr.bf16.mxu0 0
  %1409 = vmatpush1.bf16.msra.mxu0 %v1041
  %1410 = vmatprep.subr.bf16.mxu0 0
  %1411 = vmatpush1.bf16.msra.mxu0 %v1042
  %1412 = vmatprep.subr.bf16.mxu0 0
  %1413 = vmatpush1.bf16.msra.mxu0 %v1043
  %1414 = vmatprep.subr.bf16.mxu0 0
  %1415 = vmatpush1.bf16.msra.mxu0 %v1044
  %1416 = vmatprep.mubr.bf16.mxu0 %v412
  %1417 = vmatmul.mubr.bf16.gmra.mrb[0].mxu0 %v411
  %v1418 = vpop.f32.mrb[0].mxu0
  %v1419 = vadd.f32 %v1370, %v1418
  %v1420 = vpop.f32.mrb[0].mxu0
  %v1421 = vpop.f32.mrb[0].mxu0
  %v1422 = vadd.f32 %v1373, %v1421
  %v1423 = vpop.f32.mrb[0].mxu0
  %1424 = vmatprep.mubr.bf16.mxu0 %v428
  %1425 = vmatmul.mubr.bf16.gmra.mrb[0].mxu0 %v427
  %v1426 = vpop.f32.mrb[0].mxu0
  %v1427 = vadd.f32 %v1378, %v1426
  %v1428 = vpop.f32.mrb[0].mxu0
  %v1429 = vpop.f32.mrb[0].mxu0
  %v1430 = vadd.f32 %v1381, %v1429
  %v1431 = vpop.f32.mrb[0].mxu0
  %1432 = vdwg.mxu0
  %1433 = vmatprep.subr.bf16.mxu0 0
  %1434 = vmatpush1.bf16.msra.mxu0 %v1045
  %1435 = vmatprep.subr.bf16.mxu0 0
  %1436 = vmatpush1.bf16.msra.mxu0 %v1046
  %1437 = vmatprep.subr.bf16.mxu0 0
  %1438 = vmatpush1.bf16.msra.mxu0 %v1047
  %1439 = vmatprep.subr.bf16.mxu0 0
  %1440 = vmatpush1.bf16.msra.mxu0 %v1048
  %1441 = vmatprep.subr.bf16.mxu0 0
  %1442 = vmatpush1.bf16.msra.mxu0 %v1049
  %1443 = vmatprep.subr.bf16.mxu0 0
  %1444 = vmatpush1.bf16.msra.mxu0 %v1050
  %1445 = vmatprep.subr.bf16.mxu0 0
  %1446 = vmatpush1.bf16.msra.mxu0 %v1051
  %1447 = vmatprep.subr.bf16.mxu0 0
  %1448 = vmatpush1.bf16.msra.mxu0 %v1052
  %1449 = vmatprep.subr.bf16.mxu0 0
  %1450 = vmatpush1.bf16.msra.mxu0 %v1053
  %1451 = vmatprep.subr.bf16.mxu0 0
  %1452 = vmatpush1.bf16.msra.mxu0 %v1054
  %1453 = vmatprep.subr.bf16.mxu0 0
  %1454 = vmatpush1.bf16.msra.mxu0 %v1055
  %1455 = vmatprep.subr.bf16.mxu0 0
  %1456 = vmatpush1.bf16.msra.mxu0 %v1056
  %1457 = vmatprep.subr.bf16.mxu0 0
  %1458 = vmatpush1.bf16.msra.mxu0 %v1057
  %1459 = vmatprep.subr.bf16.mxu0 0
  %1460 = vmatpush1.bf16.msra.mxu0 %v1058
  %1461 = vmatprep.subr.bf16.mxu0 0
  %1462 = vmatpush1.bf16.msra.mxu0 %v1059
  %1463 = vmatprep.subr.bf16.mxu0 0
  %1464 = vmatpush1.bf16.msra.mxu0 %v1060
  %1465 = vmatprep.mubr.bf16.mxu0 %v414
  %1466 = vmatmul.mubr.bf16.gmra.mrb[0].mxu0 %v413
  %v1467 = vpop.f32.mrb[0].mxu0
  %v1468 = vadd.f32 %v1419, %v1467
  %v1469 = vpop.f32.mrb[0].mxu0
  %v1470 = vpop.f32.mrb[0].mxu0
  %v1471 = vadd.f32 %v1422, %v1470
  %v1472 = vpop.f32.mrb[0].mxu0
  %1473 = vmatprep.mubr.bf16.mxu0 %v430
  %1474 = vmatmul.mubr.bf16.gmra.mrb[0].mxu0 %v429
  %v1475 = vpop.f32.mrb[0].mxu0
  %v1476 = vadd.f32 %v1427, %v1475
  %v1477 = vpop.f32.mrb[0].mxu0
  %v1478 = vpop.f32.mrb[0].mxu0
  %v1479 = vadd.f32 %v1430, %v1478
  %v1480 = vpop.f32.mrb[0].mxu0
  %1481 = vdwg.mxu0
  %1482 = vmatprep.subr.bf16.mxu0 0
  %1483 = vmatpush1.bf16.msra.mxu0 %v1061
  %1484 = vmatprep.subr.bf16.mxu0 0
  %1485 = vmatpush1.bf16.msra.mxu0 %v1062
  %1486 = vmatprep.subr.bf16.mxu0 0
  %1487 = vmatpush1.bf16.msra.mxu0 %v1063
  %1488 = vmatprep.subr.bf16.mxu0 0
  %1489 = vmatpush1.bf16.msra.mxu0 %v1064
  %1490 = vmatprep.subr.bf16.mxu0 0
  %1491 = vmatpush1.bf16.msra.mxu0 %v1065
  %1492 = vmatprep.subr.bf16.mxu0 0
  %1493 = vmatpush1.bf16.msra.mxu0 %v1066
  %1494 = vmatprep.subr.bf16.mxu0 0
  %1495 = vmatpush1.bf16.msra.mxu0 %v1067
  %1496 = vmatprep.subr.bf16.mxu0 0
  %1497 = vmatpush1.bf16.msra.mxu0 %v1068
  %1498 = vmatprep.subr.bf16.mxu0 0
  %1499 = vmatpush1.bf16.msra.mxu0 %v1069
  %1500 = vmatprep.subr.bf16.mxu0 0
  %1501 = vmatpush1.bf16.msra.mxu0 %v1070
  %1502 = vmatprep.subr.bf16.mxu0 0
  %1503 = vmatpush1.bf16.msra.mxu0 %v1071
  %1504 = vmatprep.subr.bf16.mxu0 0
  %1505 = vmatpush1.bf16.msra.mxu0 %v1072
  %1506 = vmatprep.subr.bf16.mxu0 0
  %1507 = vmatpush1.bf16.msra.mxu0 %v1073
  %1508 = vmatprep.subr.bf16.mxu0 0
  %1509 = vmatpush1.bf16.msra.mxu0 %v1074
  %1510 = vmatprep.subr.bf16.mxu0 0
  %1511 = vmatpush1.bf16.msra.mxu0 %v1075
  %1512 = vmatprep.subr.bf16.mxu0 0
  %1513 = vmatpush1.bf16.msra.mxu0 %v1076
  %1514 = vmatprep.mubr.bf16.mxu0 %v416
  %1515 = vmatmul.mubr.bf16.gmra.mrb[0].mxu0 %v415
  %v1516 = vpop.f32.mrb[0].mxu0
  %v1517 = vadd.f32 %v1468, %v1516
  %v1518 = vpop.f32.mrb[0].mxu0
  %v1519 = vpop.f32.mrb[0].mxu0
  %v1520 = vadd.f32 %v1471, %v1519
  %v1521 = vpop.f32.mrb[0].mxu0
  %1522 = vmatprep.mubr.bf16.mxu0 %v432
  %1523 = vmatmul.mubr.bf16.gmra.mrb[0].mxu0 %v431
  %v1524 = vpop.f32.mrb[0].mxu0
  %v1525 = vadd.f32 %v1476, %v1524
  %v1526 = vpop.f32.mrb[0].mxu0
  %v1527 = vpop.f32.mrb[0].mxu0
  %v1528 = vadd.f32 %v1479, %v1527
  %v1529 = vpop.f32.mrb[0].mxu0
  %1530 = vdwg.mxu0
  %1531 = vmatprep.subr.bf16.mxu0 0
  %1532 = vmatpush1.bf16.msra.mxu0 %v1077
  %1533 = vmatprep.subr.bf16.mxu0 0
  %1534 = vmatpush1.bf16.msra.mxu0 %v1078
  %1535 = vmatprep.subr.bf16.mxu0 0
  %1536 = vmatpush1.bf16.msra.mxu0 %v1079
  %1537 = vmatprep.subr.bf16.mxu0 0
  %1538 = vmatpush1.bf16.msra.mxu0 %v1080
  %1539 = vmatprep.subr.bf16.mxu0 0
  %1540 = vmatpush1.bf16.msra.mxu0 %v1081
  %1541 = vmatprep.subr.bf16.mxu0 0
  %1542 = vmatpush1.bf16.msra.mxu0 %v1082
  %1543 = vmatprep.subr.bf16.mxu0 0
  %1544 = vmatpush1.bf16.msra.mxu0 %v1083
  %1545 = vmatprep.subr.bf16.mxu0 0
  %1546 = vmatpush1.bf16.msra.mxu0 %v1084
  %1547 = vmatprep.subr.bf16.mxu0 0
  %1548 = vmatpush1.bf16.msra.mxu0 %v1085
  %1549 = vmatprep.subr.bf16.mxu0 0
  %1550 = vmatpush1.bf16.msra.mxu0 %v1086
  %1551 = vmatprep.subr.bf16.mxu0 0
  %1552 = vmatpush1.bf16.msra.mxu0 %v1087
  %1553 = vmatprep.subr.bf16.mxu0 0
  %1554 = vmatpush1.bf16.msra.mxu0 %v1088
  %1555 = vmatprep.subr.bf16.mxu0 0
  %1556 = vmatpush1.bf16.msra.mxu0 %v1089
  %1557 = vmatprep.subr.bf16.mxu0 0
  %1558 = vmatpush1.bf16.msra.mxu0 %v1090
  %1559 = vmatprep.subr.bf16.mxu0 0
  %1560 = vmatpush1.bf16.msra.mxu0 %v1091
  %1561 = vmatprep.subr.bf16.mxu0 0
  %1562 = vmatpush1.bf16.msra.mxu0 %v1092
  %1563 = vmatprep.mubr.bf16.mxu0 %v418
  %1564 = vmatmul.mubr.bf16.gmra.mrb[0].mxu0 %v417
  %v1565 = vpop.f32.mrb[0].mxu0
  %v1566 = vadd.f32 %v1517, %v1565
  %v1567 = vpop.f32.mrb[0].mxu0
  %v1568 = vpop.f32.mrb[0].mxu0
  %v1569 = vadd.f32 %v1520, %v1568
  %v1570 = vpop.f32.mrb[0].mxu0
  %1571 = vmatprep.mubr.bf16.mxu0 %v434
  %1572 = vmatmul.mubr.bf16.gmra.mrb[0].mxu0 %v433
  %v1573 = vpop.f32.mrb[0].mxu0
  %v1574 = vadd.f32 %v1525, %v1573
  %v1575 = vpop.f32.mrb[0].mxu0
  %v1576 = vpop.f32.mrb[0].mxu0
  %v1577 = vadd.f32 %v1528, %v1576
  %v1578 = vpop.f32.mrb[0].mxu0
  %1579 = vdwg.mxu0
  %1580 = vmatprep.subr.bf16.mxu0 0
  %1581 = vmatpush1.bf16.msra.mxu0 %v1093
  %1582 = vmatprep.subr.bf16.mxu0 0
  %1583 = vmatpush1.bf16.msra.mxu0 %v1094
  %1584 = vmatprep.subr.bf16.mxu0 0
  %1585 = vmatpush1.bf16.msra.mxu0 %v1095
  %1586 = vmatprep.subr.bf16.mxu0 0
  %1587 = vmatpush1.bf16.msra.mxu0 %v1096
  %1588 = vmatprep.subr.bf16.mxu0 0
  %1589 = vmatpush1.bf16.msra.mxu0 %v1097
  %1590 = vmatprep.subr.bf16.mxu0 0
  %1591 = vmatpush1.bf16.msra.mxu0 %v1098
  %1592 = vmatprep.subr.bf16.mxu0 0
  %1593 = vmatpush1.bf16.msra.mxu0 %v1099
  %1594 = vmatprep.subr.bf16.mxu0 0
  %1595 = vmatpush1.bf16.msra.mxu0 %v1100
  %1596 = vmatprep.subr.bf16.mxu0 0
  %1597 = vmatpush1.bf16.msra.mxu0 %v1101
  %1598 = vmatprep.subr.bf16.mxu0 0
  %1599 = vmatpush1.bf16.msra.mxu0 %v1102
  %1600 = vmatprep.subr.bf16.mxu0 0
  %1601 = vmatpush1.bf16.msra.mxu0 %v1103
  %1602 = vmatprep.subr.bf16.mxu0 0
  %1603 = vmatpush1.bf16.msra.mxu0 %v1104
  %1604 = vmatprep.subr.bf16.mxu0 0
  %1605 = vmatpush1.bf16.msra.mxu0 %v1105
  %1606 = vmatprep.subr.bf16.mxu0 0
  %1607 = vmatpush1.bf16.msra.mxu0 %v1106
  %1608 = vmatprep.subr.bf16.mxu0 0
  %1609 = vmatpush1.bf16.msra.mxu0 %v1107
  %1610 = vmatprep.subr.bf16.mxu0 0
  %1611 = vmatpush1.bf16.msra.mxu0 %v1108
  %1612 = vmatprep.mubr.bf16.mxu0 %v420
  %1613 = vmatmul.mubr.bf16.gmra.mrb[0].mxu0 %v419
  %v1614 = vpop.f32.mrb[0].mxu0
  %v1615 = vadd.f32 %v1566, %v1614
  %v1616 = vpop.f32.mrb[0].mxu0
  %v1617 = vpop.f32.mrb[0].mxu0
  %v1618 = vadd.f32 %v1569, %v1617
  %v1619 = vpop.f32.mrb[0].mxu0
  %1620 = vmatprep.mubr.bf16.mxu0 %v436
  %1621 = vmatmul.mubr.bf16.gmra.mrb[0].mxu0 %v435
  %v1622 = vpop.f32.mrb[0].mxu0
  %v1623 = vadd.f32 %v1574, %v1622
  %v1624 = vpop.f32.mrb[0].mxu0
  %v1625 = vpop.f32.mrb[0].mxu0
  %v1626 = vadd.f32 %v1577, %v1625
  %v1627 = vpop.f32.mrb[0].mxu0
  %1628 = vdwg.mxu0
  %v1629 = vadd.f32 %v1615, %v1618
  %v1630 = vadd.f32 %v1629, %v1623
  %v1631 = vadd.f32 %v1630, %v1626
  %v1632 = vrot.slane %v1631, 4
  %v1633 = vadd.f32 %v1631, %v1632
  %v1634 = vrot.slane %v1633, 2
  %v1635 = vadd.f32 %v1633, %v1634
  %v1636 = vrot.slane %v1635, 1
  %v1637 = vadd.f32 %v1635, %v1636
  %v1638 = vmul.f32 %v1615, %v1615
  %v1639 = vmul.f32 %v1618, %v1618
  %v1640 = vmul.f32 %v1623, %v1623
  %v1641 = vmul.f32 %v1626, %v1626
  %v1642 = vadd.f32 %v1638, %v1639
  %v1643 = vadd.f32 %v1642, %v1640
  %v1644 = vadd.f32 %v1643, %v1641
  %v1645 = vrot.slane %v1644, 4
  %v1646 = vadd.f32 %v1644, %v1645
  %v1647 = vrot.slane %v1646, 2
  %v1648 = vadd.f32 %v1646, %v1647
  %v1649 = vrot.slane %v1648, 1
  %v1650 = vadd.f32 %v1648, %v1649
  %v1651 = vld [vmem:[%s4] sm:$0xff]
  %v1652 = vld [vmem:[%s4 + $0x8] sm:$0xff]
  %v1653 = vld [vmem:[%s4 + $0x10] sm:$0xff]
  %v1654 = vld [vmem:[%s4 + $0x18] sm:$0xff]
  %v1655 = vld [vmem:[%s4 + $0x20] sm:$0xff]
  %v1656 = vld [vmem:[%s4 + $0x28] sm:$0xff]
  %v1657 = vld [vmem:[%s4 + $0x30] sm:$0xff]
  %v1658 = vld [vmem:[%s4 + $0x38] sm:$0xff]
  %v1659 = vld [vmem:[%s4 + $0x40] sm:$0xff]
  %v1660 = vld [vmem:[%s4 + $0x48] sm:$0xff]
  %v1661 = vld [vmem:[%s4 + $0x50] sm:$0xff]
  %v1662 = vld [vmem:[%s4 + $0x58] sm:$0xff]
  %v1663 = vld [vmem:[%s4 + $0x60] sm:$0xff]
  %v1664 = vld [vmem:[%s4 + $0x68] sm:$0xff]
  %v1665 = vld [vmem:[%s4 + $0x70] sm:$0xff]
  %v1666 = vld [vmem:[%s4 + $0x78] sm:$0xff]
  %1667 = vmatprep.subr.mxu0 0.0
  %1668 = vmatpush1.msra.mxu0 %v1651
  %1669 = vmatprep.subr.mxu0 0.0
  %1670 = vmatpush1.msra.mxu0 %v1652
  %1671 = vmatprep.subr.mxu0 0.0
  %1672 = vmatpush1.msra.mxu0 %v1653
  %1673 = vmatprep.subr.mxu0 0.0
  %1674 = vmatpush1.msra.mxu0 %v1654
  %1675 = vmatprep.subr.mxu0 0.0
  %1676 = vmatpush1.msra.mxu0 %v1655
  %1677 = vmatprep.subr.mxu0 0.0
  %1678 = vmatpush1.msra.mxu0 %v1656
  %1679 = vmatprep.subr.mxu0 0.0
  %1680 = vmatpush1.msra.mxu0 %v1657
  %1681 = vmatprep.subr.mxu0 0.0
  %1682 = vmatpush1.msra.mxu0 %v1658
  %1683 = vmatprep.subr.mxu0 0.0
  %1684 = vmatpush1.msra.mxu0 %v1659
  %1685 = vmatprep.subr.mxu0 0.0
  %1686 = vmatpush1.msra.mxu0 %v1660
  %1687 = vmatprep.subr.mxu0 0.0
  %1688 = vmatpush1.msra.mxu0 %v1661
  %1689 = vmatprep.subr.mxu0 0.0
  %1690 = vmatpush1.msra.mxu0 %v1662
  %1691 = vmatprep.subr.mxu0 0.0
  %1692 = vmatpush1.msra.mxu0 %v1663
  %1693 = vmatprep.subr.mxu0 0.0
  %1694 = vmatpush1.msra.mxu0 %v1664
  %1695 = vmatprep.subr.mxu0 0.0
  %1696 = vmatpush1.msra.mxu0 %v1665
  %1697 = vmatprep.subr.mxu0 0.0
  %1698 = vmatpush1.msra.mxu0 %v1666
  %1699 = vmatprep.subr.mxu0 0.0
  %1700 = vmatpush1.msra.mxu0 0.0
  %1701 = vmatprep.subr.mxu0 0.0
  %1702 = vmatpush1.msra.mxu0 0.0
  %1703 = vmatprep.subr.mxu0 0.0
  %1704 = vmatpush1.msra.mxu0 0.0
  %1705 = vmatprep.subr.mxu0 0.0
  %1706 = vmatpush1.msra.mxu0 0.0
  %1707 = vmatprep.subr.mxu0 0.0
  %1708 = vmatpush1.msra.mxu0 0.0
  %1709 = vmatprep.subr.mxu0 0.0
  %1710 = vmatpush1.msra.mxu0 0.0
  %1711 = vmatprep.subr.mxu0 0.0
  %1712 = vmatpush1.msra.mxu0 0.0
  %1713 = vmatprep.subr.mxu0 0.0
  %1714 = vmatpush1.msra.mxu0 0.0
  %1715 = vmatprep.subr.mxu0 0.0
  %1716 = vmatpush1.msra.mxu0 0.0
  %1717 = vmatprep.subr.mxu0 0.0
  %1718 = vmatpush1.msra.mxu0 0.0
  %1719 = vmatprep.subr.mxu0 0.0
  %1720 = vmatpush1.msra.mxu0 0.0
  %1721 = vmatprep.subr.mxu0 0.0
  %1722 = vmatpush1.msra.mxu0 0.0
  %1723 = vmatprep.subr.mxu0 0.0
  %1724 = vmatpush1.msra.mxu0 0.0
  %1725 = vmatprep.subr.mxu0 0.0
  %1726 = vmatpush1.msra.mxu0 0.0
  %1727 = vmatprep.subr.mxu0 0.0
  %1728 = vmatpush1.msra.mxu0 0.0
  %1729 = vmatprep.subr.mxu0 0.0
  %1730 = vmatpush1.msra.mxu0 0.0
  %1731 = vmatprep.mubr.f32.mxu0 0.0
  %1732 = vmatmul.mubr.f32.gmra.mrb[0].mxu0 %v1637
  %v1733 = vpop.f32.mrb[0].mxu0
  %v1734 = vadd.f32 0.0, %v1733
  %v1735 = vpop.f32.mrb[0].mxu0
  %1736 = vdwg.mxu0
  %1737 = vmatprep.subr.mxu0 0.0
  %1738 = vmatpush1.msra.mxu0 %v1651
  %1739 = vmatprep.subr.mxu0 0.0
  %1740 = vmatpush1.msra.mxu0 %v1652
  %1741 = vmatprep.subr.mxu0 0.0
  %1742 = vmatpush1.msra.mxu0 %v1653
  %1743 = vmatprep.subr.mxu0 0.0
  %1744 = vmatpush1.msra.mxu0 %v1654
  %1745 = vmatprep.subr.mxu0 0.0
  %1746 = vmatpush1.msra.mxu0 %v1655
  %1747 = vmatprep.subr.mxu0 0.0
  %1748 = vmatpush1.msra.mxu0 %v1656
  %1749 = vmatprep.subr.mxu0 0.0
  %1750 = vmatpush1.msra.mxu0 %v1657
  %1751 = vmatprep.subr.mxu0 0.0
  %1752 = vmatpush1.msra.mxu0 %v1658
  %1753 = vmatprep.subr.mxu0 0.0
  %1754 = vmatpush1.msra.mxu0 %v1659
  %1755 = vmatprep.subr.mxu0 0.0
  %1756 = vmatpush1.msra.mxu0 %v1660
  %1757 = vmatprep.subr.mxu0 0.0
  %1758 = vmatpush1.msra.mxu0 %v1661
  %1759 = vmatprep.subr.mxu0 0.0
  %1760 = vmatpush1.msra.mxu0 %v1662
  %1761 = vmatprep.subr.mxu0 0.0
  %1762 = vmatpush1.msra.mxu0 %v1663
  %1763 = vmatprep.subr.mxu0 0.0
  %1764 = vmatpush1.msra.mxu0 %v1664
  %1765 = vmatprep.subr.mxu0 0.0
  %1766 = vmatpush1.msra.mxu0 %v1665
  %1767 = vmatprep.subr.mxu0 0.0
  %1768 = vmatpush1.msra.mxu0 %v1666
  %1769 = vmatprep.subr.mxu0 0.0
  %1770 = vmatpush1.msra.mxu0 0.0
  %1771 = vmatprep.subr.mxu0 0.0
  %1772 = vmatpush1.msra.mxu0 0.0
  %1773 = vmatprep.subr.mxu0 0.0
  %1774 = vmatpush1.msra.mxu0 0.0
  %1775 = vmatprep.subr.mxu0 0.0
  %1776 = vmatpush1.msra.mxu0 0.0
  %1777 = vmatprep.subr.mxu0 0.0
  %1778 = vmatpush1.msra.mxu0 0.0
  %1779 = vmatprep.subr.mxu0 0.0
  %1780 = vmatpush1.msra.mxu0 0.0
  %1781 = vmatprep.subr.mxu0 0.0
  %1782 = vmatpush1.msra.mxu0 0.0
  %1783 = vmatprep.subr.mxu0 0.0
  %1784 = vmatpush1.msra.mxu0 0.0
  %1785 = vmatprep.subr.mxu0 0.0
  %1786 = vmatpush1.msra.mxu0 0.0
  %1787 = vmatprep.subr.mxu0 0.0
  %1788 = vmatpush1.msra.mxu0 0.0
  %1789 = vmatprep.subr.mxu0 0.0
  %1790 = vmatpush1.msra.mxu0 0.0
  %1791 = vmatprep.subr.mxu0 0.0
  %1792 = vmatpush1.msra.mxu0 0.0
  %1793 = vmatprep.subr.mxu0 0.0
  %1794 = vmatpush1.msra.mxu0 0.0
  %1795 = vmatprep.subr.mxu0 0.0
  %1796 = vmatpush1.msra.mxu0 0.0
  %1797 = vmatprep.subr.mxu0 0.0
  %1798 = vmatpush1.msra.mxu0 0.0
  %1799 = vmatprep.subr.mxu0 0.0
  %1800 = vmatpush1.msra.mxu0 0.0
  %1801 = vmatprep.mubr.f32.mxu0 0.0
  %1802 = vmatmul.mubr.f32.gmra.mrb[0].mxu0 %v1650
  %v1803 = vpop.f32.mrb[0].mxu0
  %v1804 = vadd.f32 0.0, %v1803
  %v1805 = vpop.f32.mrb[0].mxu0
  %1806 = vdwg.mxu0
  %v1807 = vmul.f32 %v1734, %v1734
  %v1808 = vsub.f32 %v1804, %v1807
  %v1809 = vmax.f32 %v1808, 0.0
  %v1810 = vld [vmem:[%s2] sm:$0x1]
  %v1811 = vadd.f32 %v1809, 1e-05
  %v1812 = vrsqrt.pop %v1811
  %v1813 = vmul.f32 %v1810, %v1812
  %v1814 = vld [vmem:[%s3] sm:$0x1]
  %v1815 = vmul.f32 %v1734, %v1813
  %v1816 = vsub.f32 %v1814, %v1815
  %v1818 = vlaneseq
  %v1819 = vshrl.u32 %v1818, 7
  %v1820 = vsub.s32 0, %v1819
  %v1821 = vrot.slane %v1813, %v1820
  %v1823 = vmul.f32 %v1615, %v1821
  %v1824 = vmul.f32 %v1618, %v1821
  %v1825 = vmul.f32 %v1623, %v1821
  %v1826 = vmul.f32 %v1626, %v1821
  %v1828 = vlaneseq
  %v1829 = vshrl.u32 %v1828, 7
  %v1830 = vsub.s32 0, %v1829
  %v1831 = vrot.slane %v1816, %v1830
  %v1833 = vadd.f32 %v1823, %v1831
  %v1834 = vadd.f32 %v1824, %v1831
  %v1835 = vadd.f32 %v1825, %v1831
  %v1836 = vadd.f32 %v1826, %v1831
  %vm1837 = vcmp.ge.f32.partialorder %v1833, 0.0
  %vm1838 = vcmp.ge.f32.partialorder %v1834, 0.0
  %vm1839 = vcmp.ge.f32.partialorder %v1835, 0.0
  %vm1840 = vcmp.ge.f32.partialorder %v1836, 0.0
  %v1841 = vmul.f32 %v1833, 0.05
  %v1842 = vmul.f32 %v1834, 0.05
  %v1843 = vmul.f32 %v1835, 0.05
  %v1844 = vmul.f32 %v1836, 0.05
  %v1845 = vsel %vm1837, %v1833, %v1841
  %v1846 = vsel %vm1838, %v1834, %v1842
  %v1847 = vsel %vm1839, %v1835, %v1843
  %v1848 = vsel %vm1840, %v1836, %v1844
  %v1849 = vpack.c.bf16 %v1846, %v1845
  %v1850 = vpack.c.bf16 %v1848, %v1847
  %v1853 = vunpack.c.l.b16 %v1849
  %v1854 = vunpack.c.h.b16 %v1849
  %v1855 = vunpack.c.l.b16 %v1850
  %v1856 = vunpack.c.h.b16 %v1850
  %v1857 = vpack.c.b16 %v1853, %v1853
  %v1858 = vpack.c.b16 %v1854, %v1854
  %v1859 = vpack.c.b16 %v1855, %v1855
  %v1860 = vpack.c.b16 %v1856, %v1856
  %1865 = vst [vmem:[%s5] sm:$0xf] %v1857
  %1866 = vst [vmem:[%s5 + $0x4] sm:$0xf] %v1858
  %1867 = vst [vmem:[%s5 + $0x8] sm:$0xf] %v1859
  %1868 = vst [vmem:[%s5 + $0xc] sm:$0xf] %v1860
  // Predicated region
  $region22: #{g22_forward.7} parent=0 // pred_check
    _
  $region23: #{g22_forward.7} parent=0 // pred_check_branch
    %1870 = sbr.rel (0) target = $region25
  $region24: #{g22_forward.7} parent=0 // pred_region
    _
  $region25: #{g22_forward.7} parent=0 // pred_fallthru
    _
  // Predicated region
  $region26: #{g22_forward.7} parent=0 // pred_check
    _
  $region27: #{g22_forward.7} parent=0 // pred_check_branch
    %1872 = sbr.rel (0) target = $region29
  $region28: #{g22_forward.7} parent=0 // pred_region
    _
  $region29: #{g22_forward.7} parent=0 // pred_fallthru
    _

// kernel: g22_forward.10
$region0: #{g22_forward.10}
  #allocation0 [shape = 'u32[]', space=smem, size = 0x4, offset = 0x4, fixed_abs, tag = 'smem constant byte address 0x4 - core index']
  #allocation1 [shape = 'u32[144,128]{1,0:T(1,128)}', space=vmem, size = 0x12000, scoped, tag = 'internal scratch']
  %s0 = inlined_call_operand.vmem [shape: bf16[32,1152], index: 0, kind: input, shape index: {}]
  %s1 = inlined_call_operand.vmem [shape: bf16[1152,256], index: 1, kind: input, shape index: {}]
  %s2 = inlined_call_operand.vmem [shape: f32[1,256], index: 2, kind: input, shape index: {}]
  %s3 = inlined_call_operand.vmem [shape: f32[1,256], index: 3, kind: input, shape index: {}]
  %s4 = inlined_call_operand.vmem [shape: f32[256,256], index: 4, kind: input, shape index: {}]
  %s5 = inlined_call_operand.vmem [shape: bf16[32,256], index: 5, kind: output, shape index: {}]
  %s6 = sld [smem:[#allocation0]]
  $region30: #{g22_forward.10} parent=0
    _
  %s8 = ssub.s32 1, %s6
  %s9 = scalar_select 0, %s8, %s6
  // Predicated region
  $region2: #{g22_forward.10} parent=0 // pred_check
    _
  $region3: #{g22_forward.10} parent=0 // pred_check_branch
    %11 = sbr.rel (0) target = $region5
  $region4: #{g22_forward.10} parent=0 // pred_region
    _
  $region5: #{g22_forward.10} parent=0 // pred_fallthru
    _
  // Predicated region
  $region6: #{g22_forward.10} parent=0 // pred_check
    _
  $region7: #{g22_forward.10} parent=0 // pred_check_branch
    %13 = sbr.rel (0) target = $region9
  $region8: #{g22_forward.10} parent=0 // pred_region
    _
  $region9: #{g22_forward.10} parent=0 // pred_fallthru
    _
  // Predicated region
  $region10: #{g22_forward.10} parent=0 // pred_check
    _
  $region11: #{g22_forward.10} parent=0 // pred_check_branch
    %15 = sbr.rel (0) target = $region13
  $region12: #{g22_forward.10} parent=0 // pred_region
    _
  $region13: #{g22_forward.10} parent=0 // pred_fallthru
    _
  // Predicated region
  $region14: #{g22_forward.10} parent=0 // pred_check
    _
  $region15: #{g22_forward.10} parent=0 // pred_check_branch
    %17 = sbr.rel (0) target = $region17
  $region16: #{g22_forward.10} parent=0 // pred_region
    _
  $region17: #{g22_forward.10} parent=0 // pred_fallthru
    _
  // Predicated region
  $region18: #{g22_forward.10} parent=0 // pred_check
    _
  $region19: #{g22_forward.10} parent=0 // pred_check_branch
    %19 = sbr.rel (0) target = $region21
  $region20: #{g22_forward.10} parent=0 // pred_region
    _
  $region21: #{g22_forward.10} parent=0 // pred_fallthru
    _
  %v21 = vld [vmem:[%s0] sm:$0xff]
  %v22 = vld [vmem:[%s0 + $0x8] sm:$0xff]
  %v23 = vld [vmem:[%s0 + $0x10] sm:$0xff]
  %v24 = vld [vmem:[%s0 + $0x18] sm:$0xff]
  %v25 = vld [vmem:[%s0 + $0x20] sm:$0xf]
  %v26 = vld [vmem:[%s0 + $0x24] sm:$0xff]
  %v27 = vld [vmem:[%s0 + $0x2c] sm:$0xff]
  %v28 = vld [vmem:[%s0 + $0x34] sm:$0xff]
  %v29 = vld [vmem:[%s0 + $0x3c] sm:$0xff]
  %v30 = vld [vmem:[%s0 + $0x44] sm:$0xf]
  %v31 = vld [vmem:[%s0 + $0x48] sm:$0xff]
  %v32 = vld [vmem:[%s0 + $0x50] sm:$0xff]
  %v33 = vld [vmem:[%s0 + $0x58] sm:$0xff]
  %v34 = vld [vmem:[%s0 + $0x60] sm:$0xff]
  %v35 = vld [vmem:[%s0 + $0x68] sm:$0xf]
  %v36 = vld [vmem:[%s0 + $0x6c] sm:$0xff]
  %v37 = vld [vmem:[%s0 + $0x74] sm:$0xff]
  %v38 = vld [vmem:[%s0 + $0x7c] sm:$0xff]
  %v39 = vld [vmem:[%s0 + $0x84] sm:$0xff]
  %v40 = vld [vmem:[%s0 + $0x8c] sm:$0xf]
  %v41 = vld [vmem:[%s1] sm:$0xff]
  %v42 = vld [vmem:[%s1 + $0x8] sm:$0xff]
  %v43 = vld [vmem:[%s1 + $0x10] sm:$0xff]
  %v44 = vld [vmem:[%s1 + $0x18] sm:$0xff]
  %v45 = vld [vmem:[%s1 + $0x20] sm:$0xff]
  %v46 = vld [vmem:[%s1 + $0x28] sm:$0xff]
  %v47 = vld [vmem:[%s1 + $0x30] sm:$0xff]
  %v48 = vld [vmem:[%s1 + $0x38] sm:$0xff]
  %v49 = vld [vmem:[%s1 + $0x40] sm:$0xff]
  %v50 = vld [vmem:[%s1 + $0x48] sm:$0xff]
  %v51 = vld [vmem:[%s1 + $0x50] sm:$0xff]
  %v52 = vld [vmem:[%s1 + $0x58] sm:$0xff]
  %v53 = vld [vmem:[%s1 + $0x60] sm:$0xff]
  %v54 = vld [vmem:[%s1 + $0x68] sm:$0xff]
  %v55 = vld [vmem:[%s1 + $0x70] sm:$0xff]
  %v56 = vld [vmem:[%s1 + $0x78] sm:$0xff]
  %v57 = vld [vmem:[%s1 + $0x80] sm:$0xff]
  %v58 = vld [vmem:[%s1 + $0x88] sm:$0xff]
  %v59 = vld [vmem:[%s1 + $0x90] sm:$0xff]
  %v60 = vld [vmem:[%s1 + $0x98] sm:$0xff]
  %v61 = vld [vmem:[%s1 + $0xa0] sm:$0xff]
  %v62 = vld [vmem:[%s1 + $0xa8] sm:$0xff]
  %v63 = vld [vmem:[%s1 + $0xb0] sm:$0xff]
  %v64 = vld [vmem:[%s1 + $0xb8] sm:$0xff]
  %v65 = vld [vmem:[%s1 + $0xc0] sm:$0xff]
  %v66 = vld [vmem:[%s1 + $0xc8] sm:$0xff]
  %v67 = vld [vmem:[%s1 + $0xd0] sm:$0xff]
  %v68 = vld [vmem:[%s1 + $0xd8] sm:$0xff]
  %v69 = vld [vmem:[%s1 + $0xe0] sm:$0xff]
  %v70 = vld [vmem:[%s1 + $0xe8] sm:$0xff]
  %v71 = vld [vmem:[%s1 + $0xf0] sm:$0xff]
  %v72 = vld [vmem:[%s1 + $0xf8] sm:$0xff]
  %v73 = vld [vmem:[%s1 + $0x100] sm:$0xff]
  %v74 = vld [vmem:[%s1 + $0x108] sm:$0xff]
  %v75 = vld [vmem:[%s1 + $0x110] sm:$0xff]
  %v76 = vld [vmem:[%s1 + $0x118] sm:$0xff]
  %v77 = vld [vmem:[%s1 + $0x120] sm:$0xff]
  %v78 = vld [vmem:[%s1 + $0x128] sm:$0xff]
  %v79 = vld [vmem:[%s1 + $0x130] sm:$0xff]
  %v80 = vld [vmem:[%s1 + $0x138] sm:$0xff]
  %v81 = vld [vmem:[%s1 + $0x140] sm:$0xff]
  %v82 = vld [vmem:[%s1 + $0x148] sm:$0xff]
  %v83 = vld [vmem:[%s1 + $0x150] sm:$0xff]
  %v84 = vld [vmem:[%s1 + $0x158] sm:$0xff]
  %v85 = vld [vmem:[%s1 + $0x160] sm:$0xff]
  %v86 = vld [vmem:[%s1 + $0x168] sm:$0xff]
  %v87 = vld [vmem:[%s1 + $0x170] sm:$0xff]
  %v88 = vld [vmem:[%s1 + $0x178] sm:$0xff]
  %v89 = vld [vmem:[%s1 + $0x180] sm:$0xff]
  %v90 = vld [vmem:[%s1 + $0x188] sm:$0xff]
  %v91 = vld [vmem:[%s1 + $0x190] sm:$0xff]
  %v92 = vld [vmem:[%s1 + $0x198] sm:$0xff]
  %v93 = vld [vmem:[%s1 + $0x1a0] sm:$0xff]
  %v94 = vld [vmem:[%s1 + $0x1a8] sm:$0xff]
  %v95 = vld [vmem:[%s1 + $0x1b0] sm:$0xff]
  %v96 = vld [vmem:[%s1 + $0x1b8] sm:$0xff]
  %v97 = vld [vmem:[%s1 + $0x1c0] sm:$0xff]
  %v98 = vld [vmem:[%s1 + $0x1c8] sm:$0xff]
  %v99 = vld [vmem:[%s1 + $0x1d0] sm:$0xff]
  %v100 = vld [vmem:[%s1 + $0x1d8] sm:$0xff]
  %v101 = vld [vmem:[%s1 + $0x1e0] sm:$0xff]
  %v102 = vld [vmem:[%s1 + $0x1e8] sm:$0xff]
  %v103 = vld [vmem:[%s1 + $0x1f0] sm:$0xff]
  %v104 = vld [vmem:[%s1 + $0x1f8] sm:$0xff]
  %v105 = vld [vmem:[%s1 + $0x200] sm:$0xff]
  %v106 = vld [vmem:[%s1 + $0x208] sm:$0xff]
  %v107 = vld [vmem:[%s1 + $0x210] sm:$0xff]
  %v108 = vld [vmem:[%s1 + $0x218] sm:$0xff]
  %v109 = vld [vmem:[%s1 + $0x220] sm:$0xff]
  %v110 = vld [vmem:[%s1 + $0x228] sm:$0xff]
  %v111 = vld [vmem:[%s1 + $0x230] sm:$0xff]
  %v112 = vld [vmem:[%s1 + $0x238] sm:$0xff]
  %v113 = vld [vmem:[%s1 + $0x240] sm:$0xff]
  %v114 = vld [vmem:[%s1 + $0x248] sm:$0xff]
  %v115 = vld [vmem:[%s1 + $0x250] sm:$0xff]
  %v116 = vld [vmem:[%s1 + $0x258] sm:$0xff]
  %v117 = vld [vmem:[%s1 + $0x260] sm:$0xff]
  %v118 = vld [vmem:[%s1 + $0x268] sm:$0xff]
  %v119 = vld [vmem:[%s1 + $0x270] sm:$0xff]
  %v120 = vld [vmem:[%s1 + $0x278] sm:$0xff]
  %v121 = vld [vmem:[%s1 + $0x280] sm:$0xff]
  %v122 = vld [vmem:[%s1 + $0x288] sm:$0xff]
  %v123 = vld [vmem:[%s1 + $0x290] sm:$0xff]
  %v124 = vld [vmem:[%s1 + $0x298] sm:$0xff]
  %v125 = vld [vmem:[%s1 + $0x2a0] sm:$0xff]
  %v126 = vld [vmem:[%s1 + $0x2a8] sm:$0xff]
  %v127 = vld [vmem:[%s1 + $0x2b0] sm:$0xff]
  %v128 = vld [vmem:[%s1 + $0x2b8] sm:$0xff]
  %v129 = vld [vmem:[%s1 + $0x2c0] sm:$0xff]
  %v130 = vld [vmem:[%s1 + $0x2c8] sm:$0xff]
  %v131 = vld [vmem:[%s1 + $0x2d0] sm:$0xff]
  %v132 = vld [vmem:[%s1 + $0x2d8] sm:$0xff]
  %v133 = vld [vmem:[%s1 + $0x2e0] sm:$0xff]
  %v134 = vld [vmem:[%s1 + $0x2e8] sm:$0xff]
  %v135 = vld [vmem:[%s1 + $0x2f0] sm:$0xff]
  %v136 = vld [vmem:[%s1 + $0x2f8] sm:$0xff]
  %v137 = vld [vmem:[%s1 + $0x300] sm:$0xff]
  %v138 = vld [vmem:[%s1 + $0x308] sm:$0xff]
  %v139 = vld [vmem:[%s1 + $0x310] sm:$0xff]
  %v140 = vld [vmem:[%s1 + $0x318] sm:$0xff]
  %v141 = vld [vmem:[%s1 + $0x320] sm:$0xff]
  %v142 = vld [vmem:[%s1 + $0x328] sm:$0xff]
  %v143 = vld [vmem:[%s1 + $0x330] sm:$0xff]
  %v144 = vld [vmem:[%s1 + $0x338] sm:$0xff]
  %v145 = vld [vmem:[%s1 + $0x340] sm:$0xff]
  %v146 = vld [vmem:[%s1 + $0x348] sm:$0xff]
  %v147 = vld [vmem:[%s1 + $0x350] sm:$0xff]
  %v148 = vld [vmem:[%s1 + $0x358] sm:$0xff]
  %v149 = vld [vmem:[%s1 + $0x360] sm:$0xff]
  %v150 = vld [vmem:[%s1 + $0x368] sm:$0xff]
  %v151 = vld [vmem:[%s1 + $0x370] sm:$0xff]
  %v152 = vld [vmem:[%s1 + $0x378] sm:$0xff]
  %v153 = vld [vmem:[%s1 + $0x380] sm:$0xff]
  %v154 = vld [vmem:[%s1 + $0x388] sm:$0xff]
  %v155 = vld [vmem:[%s1 + $0x390] sm:$0xff]
  %v156 = vld [vmem:[%s1 + $0x398] sm:$0xff]
  %v157 = vld [vmem:[%s1 + $0x3a0] sm:$0xff]
  %v158 = vld [vmem:[%s1 + $0x3a8] sm:$0xff]
  %v159 = vld [vmem:[%s1 + $0x3b0] sm:$0xff]
  %v160 = vld [vmem:[%s1 + $0x3b8] sm:$0xff]
  %v161 = vld [vmem:[%s1 + $0x3c0] sm:$0xff]
  %v162 = vld [vmem:[%s1 + $0x3c8] sm:$0xff]
  %v163 = vld [vmem:[%s1 + $0x3d0] sm:$0xff]
  %v164 = vld [vmem:[%s1 + $0x3d8] sm:$0xff]
  %v165 = vld [vmem:[%s1 + $0x3e0] sm:$0xff]
  %v166 = vld [vmem:[%s1 + $0x3e8] sm:$0xff]
  %v167 = vld [vmem:[%s1 + $0x3f0] sm:$0xff]
  %v168 = vld [vmem:[%s1 + $0x3f8] sm:$0xff]
  %v169 = vld [vmem:[%s1 + $0x400] sm:$0xff]
  %v170 = vld [vmem:[%s1 + $0x408] sm:$0xff]
  %v171 = vld [vmem:[%s1 + $0x410] sm:$0xff]
  %v172 = vld [vmem:[%s1 + $0x418] sm:$0xff]
  %v173 = vld [vmem:[%s1 + $0x420] sm:$0xff]
  %v174 = vld [vmem:[%s1 + $0x428] sm:$0xff]
  %v175 = vld [vmem:[%s1 + $0x430] sm:$0xff]
  %v176 = vld [vmem:[%s1 + $0x438] sm:$0xff]
  %v177 = vld [vmem:[%s1 + $0x440] sm:$0xff]
  %v178 = vld [vmem:[%s1 + $0x448] sm:$0xff]
  %v179 = vld [vmem:[%s1 + $0x450] sm:$0xff]
  %v180 = vld [vmem:[%s1 + $0x458] sm:$0xff]
  %v181 = vld [vmem:[%s1 + $0x460] sm:$0xff]
  %v182 = vld [vmem:[%s1 + $0x468] sm:$0xff]
  %v183 = vld [vmem:[%s1 + $0x470] sm:$0xff]
  %v184 = vld [vmem:[%s1 + $0x478] sm:$0xff]
  %v205 = vunpack.c.l.b16 %v21
  %v206 = vunpack.c.h.b16 %v21
  %v207 = vunpack.c.l.b16 %v22
  %v208 = vunpack.c.h.b16 %v22
  %v209 = vunpack.c.l.b16 %v23
  %v210 = vunpack.c.h.b16 %v23
  %v211 = vunpack.c.l.b16 %v24
  %v212 = vunpack.c.h.b16 %v24
  %v213 = vunpack.c.l.b16 %v25
  %v214 = vunpack.c.l.b16 %v26
  %v215 = vunpack.c.h.b16 %v26
  %v216 = vunpack.c.l.b16 %v27
  %v217 = vunpack.c.h.b16 %v27
  %v218 = vunpack.c.l.b16 %v28
  %v219 = vunpack.c.h.b16 %v28
  %v220 = vunpack.c.l.b16 %v29
  %v221 = vunpack.c.h.b16 %v29
  %v222 = vunpack.c.l.b16 %v30
  %v223 = vunpack.c.l.b16 %v31
  %v224 = vunpack.c.h.b16 %v31
  %v225 = vunpack.c.l.b16 %v32
  %v226 = vunpack.c.h.b16 %v32
  %v227 = vunpack.c.l.b16 %v33
  %v228 = vunpack.c.h.b16 %v33
  %v229 = vunpack.c.l.b16 %v34
  %v230 = vunpack.c.h.b16 %v34
  %v231 = vunpack.c.l.b16 %v35
  %v232 = vunpack.c.l.b16 %v36
  %v233 = vunpack.c.h.b16 %v36
  %v234 = vunpack.c.l.b16 %v37
  %v235 = vunpack.c.h.b16 %v37
  %v236 = vunpack.c.l.b16 %v38
  %v237 = vunpack.c.h.b16 %v38
  %v238 = vunpack.c.l.b16 %v39
  %v239 = vunpack.c.h.b16 %v39
  %v240 = vunpack.c.l.b16 %v40
  %v241 = vpack.c.b16 %v214, %v205
  %v242 = vpack.c.b16 %v215, %v206
  %v243 = vpack.c.b16 %v216, %v207
  %v244 = vpack.c.b16 %v217, %v208
  %v245 = vpack.c.b16 %v218, %v209
  %v246 = vpack.c.b16 %v219, %v210
  %v247 = vpack.c.b16 %v220, %v211
  %v248 = vpack.c.b16 %v221, %v212
  %v249 = vpack.c.b16 %v222, %v213
  %v250 = vpack.c.b16 %v232, %v223
  %v251 = vpack.c.b16 %v233, %v224
  %v252 = vpack.c.b16 %v234, %v225
  %v253 = vpack.c.b16 %v235, %v226
  %v254 = vpack.c.b16 %v236, %v227
  %v255 = vpack.c.b16 %v237, %v228
  %v256 = vpack.c.b16 %v238, %v229
  %v257 = vpack.c.b16 %v239, %v230
  %v258 = vpack.c.b16 %v240, %v231
  %v421 = vunpack.c.l.b16 %v41
  %v422 = vunpack.c.h.b16 %v41
  %v423 = vunpack.c.l.b16 %v42
  %v424 = vunpack.c.h.b16 %v42
  %v425 = vunpack.c.l.b16 %v43
  %v426 = vunpack.c.h.b16 %v43
  %v427 = vunpack.c.l.b16 %v44
  %v428 = vunpack.c.h.b16 %v44
  %v429 = vunpack.c.l.b16 %v45
  %v430 = vunpack.c.h.b16 %v45
  %v431 = vunpack.c.l.b16 %v46
  %v432 = vunpack.c.h.b16 %v46
  %v433 = vunpack.c.l.b16 %v47
  %v434 = vunpack.c.h.b16 %v47
  %v435 = vunpack.c.l.b16 %v48
  %v436 = vunpack.c.h.b16 %v48
  %v437 = vunpack.c.l.b16 %v49
  %v438 = vunpack.c.h.b16 %v49
  %v439 = vunpack.c.l.b16 %v50
  %v440 = vunpack.c.h.b16 %v50
  %v441 = vunpack.c.l.b16 %v51
  %v442 = vunpack.c.h.b16 %v51
  %v443 = vunpack.c.l.b16 %v52
  %v444 = vunpack.c.h.b16 %v52
  %v445 = vunpack.c.l.b16 %v53
  %v446 = vunpack.c.h.b16 %v53
  %v447 = vunpack.c.l.b16 %v54
  %v448 = vunpack.c.h.b16 %v54
  %v449 = vunpack.c.l.b16 %v55
  %v450 = vunpack.c.h.b16 %v55
  %v451 = vunpack.c.l.b16 %v56
  %v452 = vunpack.c.h.b16 %v56
  %v453 = vunpack.c.l.b16 %v57
  %v454 = vunpack.c.h.b16 %v57
  %v455 = vunpack.c.l.b16 %v58
  %v456 = vunpack.c.h.b16 %v58
  %v457 = vunpack.c.l.b16 %v59
  %v458 = vunpack.c.h.b16 %v59
  %v459 = vunpack.c.l.b16 %v60
  %v460 = vunpack.c.h.b16 %v60
  %v461 = vunpack.c.l.b16 %v61
  %v462 = vunpack.c.h.b16 %v61
  %v463 = vunpack.c.l.b16 %v62
  %v464 = vunpack.c.h.b16 %v62
  %v465 = vunpack.c.l.b16 %v63
  %v466 = vunpack.c.h.b16 %v63
  %v467 = vunpack.c.l.b16 %v64
  %v468 = vunpack.c.h.b16 %v64
  %v469 = vunpack.c.l.b16 %v65
  %v470 = vunpack.c.h.b16 %v65
  %v471 = vunpack.c.l.b16 %v66
  %v472 = vunpack.c.h.b16 %v66
  %v473 = vunpack.c.l.b16 %v67
  %v474 = vunpack.c.h.b16 %v67
  %v475 = vunpack.c.l.b16 %v68
  %v476 = vunpack.c.h.b16 %v68
  %v477 = vunpack.c.l.b16 %v69
  %v478 = vunpack.c.h.b16 %v69
  %v479 = vunpack.c.l.b16 %v70
  %v480 = vunpack.c.h.b16 %v70
  %v481 = vunpack.c.l.b16 %v71
  %v482 = vunpack.c.h.b16 %v71
  %v483 = vunpack.c.l.b16 %v72
  %v484 = vunpack.c.h.b16 %v72
  %v485 = vunpack.c.l.b16 %v73
  %v486 = vunpack.c.h.b16 %v73
  %v487 = vunpack.c.l.b16 %v74
  %v488 = vunpack.c.h.b16 %v74
  %v489 = vunpack.c.l.b16 %v75
  %v490 = vunpack.c.h.b16 %v75
  %v491 = vunpack.c.l.b16 %v76
  %v492 = vunpack.c.h.b16 %v76
  %v493 = vunpack.c.l.b16 %v77
  %v494 = vunpack.c.h.b16 %v77
  %v495 = vunpack.c.l.b16 %v78
  %v496 = vunpack.c.h.b16 %v78
  %v497 = vunpack.c.l.b16 %v79
  %v498 = vunpack.c.h.b16 %v79
  %v499 = vunpack.c.l.b16 %v80
  %v500 = vunpack.c.h.b16 %v80
  %v501 = vunpack.c.l.b16 %v81
  %v502 = vunpack.c.h.b16 %v81
  %v503 = vunpack.c.l.b16 %v82
  %v504 = vunpack.c.h.b16 %v82
  %v505 = vunpack.c.l.b16 %v83
  %v506 = vunpack.c.h.b16 %v83
  %v507 = vunpack.c.l.b16 %v84
  %v508 = vunpack.c.h.b16 %v84
  %v509 = vunpack.c.l.b16 %v85
  %v510 = vunpack.c.h.b16 %v85
  %v511 = vunpack.c.l.b16 %v86
  %v512 = vunpack.c.h.b16 %v86
  %v513 = vunpack.c.l.b16 %v87
  %v514 = vunpack.c.h.b16 %v87
  %v515 = vunpack.c.l.b16 %v88
  %v516 = vunpack.c.h.b16 %v88
  %v517 = vunpack.c.l.b16 %v89
  %v518 = vunpack.c.h.b16 %v89
  %v519 = vunpack.c.l.b16 %v90
  %v520 = vunpack.c.h.b16 %v90
  %v521 = vunpack.c.l.b16 %v91
  %v522 = vunpack.c.h.b16 %v91
  %v523 = vunpack.c.l.b16 %v92
  %v524 = vunpack.c.h.b16 %v92
  %v525 = vunpack.c.l.b16 %v93
  %v526 = vunpack.c.h.b16 %v93
  %v527 = vunpack.c.l.b16 %v94
  %v528 = vunpack.c.h.b16 %v94
  %v529 = vunpack.c.l.b16 %v95
  %v530 = vunpack.c.h.b16 %v95
  %v531 = vunpack.c.l.b16 %v96
  %v532 = vunpack.c.h.b16 %v96
  %v533 = vunpack.c.l.b16 %v97
  %v534 = vunpack.c.h.b16 %v97
  %v535 = vunpack.c.l.b16 %v98
  %v536 = vunpack.c.h.b16 %v98
  %v537 = vunpack.c.l.b16 %v99
  %v538 = vunpack.c.h.b16 %v99
  %v539 = vunpack.c.l.b16 %v100
  %v540 = vunpack.c.h.b16 %v100
  %v541 = vunpack.c.l.b16 %v101
  %v542 = vunpack.c.h.b16 %v101
  %v543 = vunpack.c.l.b16 %v102
  %v544 = vunpack.c.h.b16 %v102
  %v545 = vunpack.c.l.b16 %v103
  %v546 = vunpack.c.h.b16 %v103
  %v547 = vunpack.c.l.b16 %v104
  %v548 = vunpack.c.h.b16 %v104
  %v549 = vunpack.c.l.b16 %v105
  %v550 = vunpack.c.h.b16 %v105
  %v551 = vunpack.c.l.b16 %v106
  %v552 = vunpack.c.h.b16 %v106
  %v553 = vunpack.c.l.b16 %v107
  %v554 = vunpack.c.h.b16 %v107
  %v555 = vunpack.c.l.b16 %v108
  %v556 = vunpack.c.h.b16 %v108
  %v557 = vunpack.c.l.b16 %v109
  %v558 = vunpack.c.h.b16 %v109
  %v559 = vunpack.c.l.b16 %v110
  %v560 = vunpack.c.h.b16 %v110
  %v561 = vunpack.c.l.b16 %v111
  %v562 = vunpack.c.h.b16 %v111
  %v563 = vunpack.c.l.b16 %v112
  %v564 = vunpack.c.h.b16 %v112
  %v565 = vunpack.c.l.b16 %v113
  %v566 = vunpack.c.h.b16 %v113
  %v567 = vunpack.c.l.b16 %v114
  %v568 = vunpack.c.h.b16 %v114
  %v569 = vunpack.c.l.b16 %v115
  %v570 = vunpack.c.h.b16 %v115
  %v571 = vunpack.c.l.b16 %v116
  %v572 = vunpack.c.h.b16 %v116
  %v573 = vunpack.c.l.b16 %v117
  %v574 = vunpack.c.h.b16 %v117
  %v575 = vunpack.c.l.b16 %v118
  %v576 = vunpack.c.h.b16 %v118
  %v577 = vunpack.c.l.b16 %v119
  %v578 = vunpack.c.h.b16 %v119
  %v579 = vunpack.c.l.b16 %v120
  %v580 = vunpack.c.h.b16 %v120
  %v581 = vunpack.c.l.b16 %v121
  %v582 = vunpack.c.h.b16 %v121
  %v583 = vunpack.c.l.b16 %v122
  %v584 = vunpack.c.h.b16 %v122
  %v585 = vunpack.c.l.b16 %v123
  %v586 = vunpack.c.h.b16 %v123
  %v587 = vunpack.c.l.b16 %v124
  %v588 = vunpack.c.h.b16 %v124
  %v589 = vunpack.c.l.b16 %v125
  %v590 = vunpack.c.h.b16 %v125
  %v591 = vunpack.c.l.b16 %v126
  %v592 = vunpack.c.h.b16 %v126
  %v593 = vunpack.c.l.b16 %v127
  %v594 = vunpack.c.h.b16 %v127
  %v595 = vunpack.c.l.b16 %v128
  %v596 = vunpack.c.h.b16 %v128
  %v597 = vunpack.c.l.b16 %v129
  %v598 = vunpack.c.h.b16 %v129
  %v599 = vunpack.c.l.b16 %v130
  %v600 = vunpack.c.h.b16 %v130
  %v601 = vunpack.c.l.b16 %v131
  %v602 = vunpack.c.h.b16 %v131
  %v603 = vunpack.c.l.b16 %v132
  %v604 = vunpack.c.h.b16 %v132
  %v605 = vunpack.c.l.b16 %v133
  %v606 = vunpack.c.h.b16 %v133
  %v607 = vunpack.c.l.b16 %v134
  %v608 = vunpack.c.h.b16 %v134
  %v609 = vunpack.c.l.b16 %v135
  %v610 = vunpack.c.h.b16 %v135
  %v611 = vunpack.c.l.b16 %v136
  %v612 = vunpack.c.h.b16 %v136
  %v613 = vunpack.c.l.b16 %v137
  %v614 = vunpack.c.h.b16 %v137
  %v615 = vunpack.c.l.b16 %v138
  %v616 = vunpack.c.h.b16 %v138
  %v617 = vunpack.c.l.b16 %v139
  %v618 = vunpack.c.h.b16 %v139
  %v619 = vunpack.c.l.b16 %v140
  %v620 = vunpack.c.h.b16 %v140
  %v621 = vunpack.c.l.b16 %v141
  %v622 = vunpack.c.h.b16 %v141
  %v623 = vunpack.c.l.b16 %v142
  %v624 = vunpack.c.h.b16 %v142
  %v625 = vunpack.c.l.b16 %v143
  %v626 = vunpack.c.h.b16 %v143
  %v627 = vunpack.c.l.b16 %v144
  %v628 = vunpack.c.h.b16 %v144
  %v629 = vunpack.c.l.b16 %v145
  %v630 = vunpack.c.h.b16 %v145
  %v631 = vunpack.c.l.b16 %v146
  %v632 = vunpack.c.h.b16 %v146
  %v633 = vunpack.c.l.b16 %v147
  %v634 = vunpack.c.h.b16 %v147
  %v635 = vunpack.c.l.b16 %v148
  %v636 = vunpack.c.h.b16 %v148
  %v637 = vunpack.c.l.b16 %v149
  %v638 = vunpack.c.h.b16 %v149
  %v639 = vunpack.c.l.b16 %v150
  %v640 = vunpack.c.h.b16 %v150
  %v641 = vunpack.c.l.b16 %v151
  %v642 = vunpack.c.h.b16 %v151
  %v643 = vunpack.c.l.b16 %v152
  %v644 = vunpack.c.h.b16 %v152
  %v645 = vunpack.c.l.b16 %v153
  %v646 = vunpack.c.h.b16 %v153
  %v647 = vunpack.c.l.b16 %v154
  %v648 = vunpack.c.h.b16 %v154
  %v649 = vunpack.c.l.b16 %v155
  %v650 = vunpack.c.h.b16 %v155
  %v651 = vunpack.c.l.b16 %v156
  %v652 = vunpack.c.h.b16 %v156
  %v653 = vunpack.c.l.b16 %v157
  %v654 = vunpack.c.h.b16 %v157
  %v655 = vunpack.c.l.b16 %v158
  %v656 = vunpack.c.h.b16 %v158
  %v657 = vunpack.c.l.b16 %v159
  %v658 = vunpack.c.h.b16 %v159
  %v659 = vunpack.c.l.b16 %v160
  %v660 = vunpack.c.h.b16 %v160
  %v661 = vunpack.c.l.b16 %v161
  %v662 = vunpack.c.h.b16 %v161
  %v663 = vunpack.c.l.b16 %v162
  %v664 = vunpack.c.h.b16 %v162
  %v665 = vunpack.c.l.b16 %v163
  %v666 = vunpack.c.h.b16 %v163
  %v667 = vunpack.c.l.b16 %v164
  %v668 = vunpack.c.h.b16 %v164
  %v669 = vunpack.c.l.b16 %v165
  %v670 = vunpack.c.h.b16 %v165
  %v671 = vunpack.c.l.b16 %v166
  %v672 = vunpack.c.h.b16 %v166
  %v673 = vunpack.c.l.b16 %v167
  %v674 = vunpack.c.h.b16 %v167
  %v675 = vunpack.c.l.b16 %v168
  %v676 = vunpack.c.h.b16 %v168
  %v677 = vunpack.c.l.b16 %v169
  %v678 = vunpack.c.h.b16 %v169
  %v679 = vunpack.c.l.b16 %v170
  %v680 = vunpack.c.h.b16 %v170
  %v681 = vunpack.c.l.b16 %v171
  %v682 = vunpack.c.h.b16 %v171
  %v683 = vunpack.c.l.b16 %v172
  %v684 = vunpack.c.h.b16 %v172
  %v685 = vunpack.c.l.b16 %v173
  %v686 = vunpack.c.h.b16 %v173
  %v687 = vunpack.c.l.b16 %v174
  %v688 = vunpack.c.h.b16 %v174
  %v689 = vunpack.c.l.b16 %v175
  %v690 = vunpack.c.h.b16 %v175
  %v691 = vunpack.c.l.b16 %v176
  %v692 = vunpack.c.h.b16 %v176
  %v693 = vunpack.c.l.b16 %v177
  %v694 = vunpack.c.h.b16 %v177
  %v695 = vunpack.c.l.b16 %v178
  %v696 = vunpack.c.h.b16 %v178
  %v697 = vunpack.c.l.b16 %v179
  %v698 = vunpack.c.h.b16 %v179
  %v699 = vunpack.c.l.b16 %v180
  %v700 = vunpack.c.h.b16 %v180
  %v701 = vunpack.c.l.b16 %v181
  %v702 = vunpack.c.h.b16 %v181
  %v703 = vunpack.c.l.b16 %v182
  %v704 = vunpack.c.h.b16 %v182
  %v705 = vunpack.c.l.b16 %v183
  %v706 = vunpack.c.h.b16 %v183
  %v707 = vunpack.c.l.b16 %v184
  %v708 = vunpack.c.h.b16 %v184
  %v709 = vpack.c.b16 %v423, %v421
  %v710 = vpack.c.b16 %v424, %v422
  %v711 = vpack.c.b16 %v427, %v425
  %v712 = vpack.c.b16 %v428, %v426
  %v713 = vpack.c.b16 %v431, %v429
  %v714 = vpack.c.b16 %v432, %v430
  %v715 = vpack.c.b16 %v435, %v433
  %v716 = vpack.c.b16 %v436, %v434
  %v717 = vpack.c.b16 %v439, %v437
  %v718 = vpack.c.b16 %v440, %v438
  %v719 = vpack.c.b16 %v443, %v441
  %v720 = vpack.c.b16 %v444, %v442
  %v721 = vpack.c.b16 %v447, %v445
  %v722 = vpack.c.b16 %v448, %v446
  %v723 = vpack.c.b16 %v451, %v449
  %v724 = vpack.c.b16 %v452, %v450
  %v725 = vpack.c.b16 %v455, %v453
  %v726 = vpack.c.b16 %v456, %v454
  %v727 = vpack.c.b16 %v459, %v457
  %v728 = vpack.c.b16 %v460, %v458
  %v729 = vpack.c.b16 %v463, %v461
  %v730 = vpack.c.b16 %v464, %v462
  %v731 = vpack.c.b16 %v467, %v465
  %v732 = vpack.c.b16 %v468, %v466
  %v733 = vpack.c.b16 %v471, %v469
  %v734 = vpack.c.b16 %v472, %v470
  %v735 = vpack.c.b16 %v475, %v473
  %v736 = vpack.c.b16 %v476, %v474
  %v737 = vpack.c.b16 %v479, %v477
  %v738 = vpack.c.b16 %v480, %v478
  %v739 = vpack.c.b16 %v483, %v481
  %v740 = vpack.c.b16 %v484, %v482
  %v741 = vpack.c.b16 %v487, %v485
  %v742 = vpack.c.b16 %v488, %v486
  %v743 = vpack.c.b16 %v491, %v489
  %v744 = vpack.c.b16 %v492, %v490
  %v745 = vpack.c.b16 %v495, %v493
  %v746 = vpack.c.b16 %v496, %v494
  %v747 = vpack.c.b16 %v499, %v497
  %v748 = vpack.c.b16 %v500, %v498
  %v749 = vpack.c.b16 %v503, %v501
  %v750 = vpack.c.b16 %v504, %v502
  %v751 = vpack.c.b16 %v507, %v505
  %v752 = vpack.c.b16 %v508, %v506
  %v753 = vpack.c.b16 %v511, %v509
  %v754 = vpack.c.b16 %v512, %v510
  %v755 = vpack.c.b16 %v515, %v513
  %v756 = vpack.c.b16 %v516, %v514
  %v757 = vpack.c.b16 %v519, %v517
  %v758 = vpack.c.b16 %v520, %v518
  %v759 = vpack.c.b16 %v523, %v521
  %v760 = vpack.c.b16 %v524, %v522
  %v761 = vpack.c.b16 %v527, %v525
  %v762 = vpack.c.b16 %v528, %v526
  %v763 = vpack.c.b16 %v531, %v529
  %v764 = vpack.c.b16 %v532, %v530
  %v765 = vpack.c.b16 %v535, %v533
  %v766 = vpack.c.b16 %v536, %v534
  %v767 = vpack.c.b16 %v539, %v537
  %v768 = vpack.c.b16 %v540, %v538
  %v769 = vpack.c.b16 %v543, %v541
  %v770 = vpack.c.b16 %v544, %v542
  %v771 = vpack.c.b16 %v547, %v545
  %v772 = vpack.c.b16 %v548, %v546
  %v773 = vpack.c.b16 %v551, %v549
  %v774 = vpack.c.b16 %v552, %v550
  %v775 = vpack.c.b16 %v555, %v553
  %v776 = vpack.c.b16 %v556, %v554
  %v777 = vpack.c.b16 %v559, %v557
  %v778 = vpack.c.b16 %v560, %v558
  %v779 = vpack.c.b16 %v563, %v561
  %v780 = vpack.c.b16 %v564, %v562
  %v781 = vpack.c.b16 %v567, %v565
  %v782 = vpack.c.b16 %v568, %v566
  %v783 = vpack.c.b16 %v571, %v569
  %v784 = vpack.c.b16 %v572, %v570
  %v785 = vpack.c.b16 %v575, %v573
  %v786 = vpack.c.b16 %v576, %v574
  %v787 = vpack.c.b16 %v579, %v577
  %v788 = vpack.c.b16 %v580, %v578
  %v789 = vpack.c.b16 %v583, %v581
  %v790 = vpack.c.b16 %v584, %v582
  %v791 = vpack.c.b16 %v587, %v585
  %v792 = vpack.c.b16 %v588, %v586
  %v793 = vpack.c.b16 %v591, %v589
  %v794 = vpack.c.b16 %v592, %v590
  %v795 = vpack.c.b16 %v595, %v593
  %v796 = vpack.c.b16 %v596, %v594
  %v797 = vpack.c.b16 %v599, %v597
  %v798 = vpack.c.b16 %v600, %v598
  %v799 = vpack.c.b16 %v603, %v601
  %v800 = vpack.c.b16 %v604, %v602
  %v801 = vpack.c.b16 %v607, %v605
  %v802 = vpack.c.b16 %v608, %v606
  %v803 = vpack.c.b16 %v611, %v609
  %v804 = vpack.c.b16 %v612, %v610
  %v805 = vpack.c.b16 %v615, %v613
  %v806 = vpack.c.b16 %v616, %v614
  %v807 = vpack.c.b16 %v619, %v617
  %v808 = vpack.c.b16 %v620, %v618
  %v809 = vpack.c.b16 %v623, %v621
  %v810 = vpack.c.b16 %v624, %v622
  %v811 = vpack.c.b16 %v627, %v625
  %v812 = vpack.c.b16 %v628, %v626
  %v813 = vpack.c.b16 %v631, %v629
  %v814 = vpack.c.b16 %v632, %v630
  %v815 = vpack.c.b16 %v635, %v633
  %v816 = vpack.c.b16 %v636, %v634
  %v817 = vpack.c.b16 %v639, %v637
  %v818 = vpack.c.b16 %v640, %v638
  %v819 = vpack.c.b16 %v643, %v641
  %v820 = vpack.c.b16 %v644, %v642
  %v821 = vpack.c.b16 %v647, %v645
  %v822 = vpack.c.b16 %v648, %v646
  %v823 = vpack.c.b16 %v651, %v649
  %v824 = vpack.c.b16 %v652, %v650
  %v825 = vpack.c.b16 %v655, %v653
  %v826 = vpack.c.b16 %v656, %v654
  %v827 = vpack.c.b16 %v659, %v657
  %v828 = vpack.c.b16 %v660, %v658
  %v829 = vpack.c.b16 %v663, %v661
  %v830 = vpack.c.b16 %v664, %v662
  %v831 = vpack.c.b16 %v667, %v665
  %v832 = vpack.c.b16 %v668, %v666
  %v833 = vpack.c.b16 %v671, %v669
  %v834 = vpack.c.b16 %v672, %v670
  %v835 = vpack.c.b16 %v675, %v673
  %v836 = vpack.c.b16 %v676, %v674
  %v837 = vpack.c.b16 %v679, %v677
  %v838 = vpack.c.b16 %v680, %v678
  %v839 = vpack.c.b16 %v683, %v681
  %v840 = vpack.c.b16 %v684, %v682
  %v841 = vpack.c.b16 %v687, %v685
  %v842 = vpack.c.b16 %v688, %v686
  %v843 = vpack.c.b16 %v691, %v689
  %v844 = vpack.c.b16 %v692, %v690
  %v845 = vpack.c.b16 %v695, %v693
  %v846 = vpack.c.b16 %v696, %v694
  %v847 = vpack.c.b16 %v699, %v697
  %v848 = vpack.c.b16 %v700, %v698
  %v849 = vpack.c.b16 %v703, %v701
  %v850 = vpack.c.b16 %v704, %v702
  %v851 = vpack.c.b16 %v707, %v705
  %v852 = vpack.c.b16 %v708, %v706
  %997 = vmatprep.subr.bf16.mxu0 %v710
  %998 = vmatpush1.bf16.msra.mxu0 %v709
  %999 = vmatprep.subr.bf16.mxu0 %v712
  %1000 = vmatpush1.bf16.msra.mxu0 %v711
  %1001 = vmatprep.subr.bf16.mxu0 %v714
  %1002 = vmatpush1.bf16.msra.mxu0 %v713
  %1003 = vmatprep.subr.bf16.mxu0 %v716
  %1004 = vmatpush1.bf16.msra.mxu0 %v715
  %1005 = vmatprep.subr.bf16.mxu0 %v718
  %1006 = vmatpush1.bf16.msra.mxu0 %v717
  %1007 = vmatprep.subr.bf16.mxu0 %v720
  %1008 = vmatpush1.bf16.msra.mxu0 %v719
  %1009 = vmatprep.subr.bf16.mxu0 %v722
  %1010 = vmatpush1.bf16.msra.mxu0 %v721
  %1011 = vmatprep.subr.bf16.mxu0 %v724
  %1012 = vmatpush1.bf16.msra.mxu0 %v723
  %1013 = vmatprep.subr.bf16.mxu0 %v726
  %1014 = vmatpush1.bf16.msra.mxu0 %v725
  %1015 = vmatprep.subr.bf16.mxu0 %v728
  %1016 = vmatpush1.bf16.msra.mxu0 %v727
  %1017 = vmatprep.subr.bf16.mxu0 %v730
  %1018 = vmatpush1.bf16.msra.mxu0 %v729
  %1019 = vmatprep.subr.bf16.mxu0 %v732
  %1020 = vmatpush1.bf16.msra.mxu0 %v731
  %1021 = vmatprep.subr.bf16.mxu0 %v734
  %1022 = vmatpush1.bf16.msra.mxu0 %v733
  %1023 = vmatprep.subr.bf16.mxu0 %v736
  %1024 = vmatpush1.bf16.msra.mxu0 %v735
  %1025 = vmatprep.subr.bf16.mxu0 %v738
  %1026 = vmatpush1.bf16.msra.mxu0 %v737
  %1027 = vmatprep.subr.bf16.mxu0 %v740
  %1028 = vmatpush1.bf16.msra.mxu0 %v739
  %1029 = vmatprep.mubr.bf16.mxu0 %v242
  %1030 = vmatmul.mubr.bf16.gmra.mrb[0].mxu0 %v241
  %v1031 = vpop.f32.mrb[0].mxu0
  %v1032 = vadd.f32 0.0, %v1031
  %v1033 = vpop.f32.mrb[0].mxu0
  %v1034 = vadd.f32 0.0, %v1033
  %v1035 = vpop.f32.mrb[0].mxu0
  %v1036 = vadd.f32 0.0, %v1035
  %v1037 = vpop.f32.mrb[0].mxu0
  %v1038 = vadd.f32 0.0, %v1037
  %1039 = vmatprep.mubr.bf16.mxu0 %v251
  %1040 = vmatmul.mubr.bf16.gmra.mrb[0].mxu0 %v250
  %v1041 = vpop.f32.mrb[0].mxu0
  %v1042 = vadd.f32 0.0, %v1041
  %v1043 = vpop.f32.mrb[0].mxu0
  %v1044 = vadd.f32 0.0, %v1043
  %v1045 = vpop.f32.mrb[0].mxu0
  %v1046 = vadd.f32 0.0, %v1045
  %v1047 = vpop.f32.mrb[0].mxu0
  %v1048 = vadd.f32 0.0, %v1047
  %1049 = vdwg.mxu0
  %1050 = vmatprep.subr.bf16.mxu0 %v742
  %1051 = vmatpush1.bf16.msra.mxu0 %v741
  %1052 = vmatprep.subr.bf16.mxu0 %v744
  %1053 = vmatpush1.bf16.msra.mxu0 %v743
  %1054 = vmatprep.subr.bf16.mxu0 %v746
  %1055 = vmatpush1.bf16.msra.mxu0 %v745
  %1056 = vmatprep.subr.bf16.mxu0 %v748
  %1057 = vmatpush1.bf16.msra.mxu0 %v747
  %1058 = vmatprep.subr.bf16.mxu0 %v750
  %1059 = vmatpush1.bf16.msra.mxu0 %v749
  %1060 = vmatprep.subr.bf16.mxu0 %v752
  %1061 = vmatpush1.bf16.msra.mxu0 %v751
  %1062 = vmatprep.subr.bf16.mxu0 %v754
  %1063 = vmatpush1.bf16.msra.mxu0 %v753
  %1064 = vmatprep.subr.bf16.mxu0 %v756
  %1065 = vmatpush1.bf16.msra.mxu0 %v755
  %1066 = vmatprep.subr.bf16.mxu0 %v758
  %1067 = vmatpush1.bf16.msra.mxu0 %v757
  %1068 = vmatprep.subr.bf16.mxu0 %v760
  %1069 = vmatpush1.bf16.msra.mxu0 %v759
  %1070 = vmatprep.subr.bf16.mxu0 %v762
  %1071 = vmatpush1.bf16.msra.mxu0 %v761
  %1072 = vmatprep.subr.bf16.mxu0 %v764
  %1073 = vmatpush1.bf16.msra.mxu0 %v763
  %1074 = vmatprep.subr.bf16.mxu0 %v766
  %1075 = vmatpush1.bf16.msra.mxu0 %v765
  %1076 = vmatprep.subr.bf16.mxu0 %v768
  %1077 = vmatpush1.bf16.msra.mxu0 %v767
  %1078 = vmatprep.subr.bf16.mxu0 %v770
  %1079 = vmatpush1.bf16.msra.mxu0 %v769
  %1080 = vmatprep.subr.bf16.mxu0 %v772
  %1081 = vmatpush1.bf16.msra.mxu0 %v771
  %1082 = vmatprep.mubr.bf16.mxu0 %v244
  %1083 = vmatmul.mubr.bf16.gmra.mrb[0].mxu0 %v243
  %v1084 = vpop.f32.mrb[0].mxu0
  %v1085 = vadd.f32 %v1032, %v1084
  %v1086 = vpop.f32.mrb[0].mxu0
  %v1087 = vadd.f32 %v1034, %v1086
  %v1088 = vpop.f32.mrb[0].mxu0
  %v1089 = vadd.f32 %v1036, %v1088
  %v1090 = vpop.f32.mrb[0].mxu0
  %v1091 = vadd.f32 %v1038, %v1090
  %1092 = vmatprep.mubr.bf16.mxu0 %v253
  %1093 = vmatmul.mubr.bf16.gmra.mrb[0].mxu0 %v252
  %v1094 = vpop.f32.mrb[0].mxu0
  %v1095 = vadd.f32 %v1042, %v1094
  %v1096 = vpop.f32.mrb[0].mxu0
  %v1097 = vadd.f32 %v1044, %v1096
  %v1098 = vpop.f32.mrb[0].mxu0
  %v1099 = vadd.f32 %v1046, %v1098
  %v1100 = vpop.f32.mrb[0].mxu0
  %v1101 = vadd.f32 %v1048, %v1100
  %1102 = vdwg.mxu0
  %1103 = vmatprep.subr.bf16.mxu0 %v774
  %1104 = vmatpush1.bf16.msra.mxu0 %v773
  %1105 = vmatprep.subr.bf16.mxu0 %v776
  %1106 = vmatpush1.bf16.msra.mxu0 %v775
  %1107 = vmatprep.subr.bf16.mxu0 %v778
  %1108 = vmatpush1.bf16.msra.mxu0 %v777
  %1109 = vmatprep.subr.bf16.mxu0 %v780
  %1110 = vmatpush1.bf16.msra.mxu0 %v779
  %1111 = vmatprep.subr.bf16.mxu0 %v782
  %1112 = vmatpush1.bf16.msra.mxu0 %v781
  %1113 = vmatprep.subr.bf16.mxu0 %v784
  %1114 = vmatpush1.bf16.msra.mxu0 %v783
  %1115 = vmatprep.subr.bf16.mxu0 %v786
  %1116 = vmatpush1.bf16.msra.mxu0 %v785
  %1117 = vmatprep.subr.bf16.mxu0 %v788
  %1118 = vmatpush1.bf16.msra.mxu0 %v787
  %1119 = vmatprep.subr.bf16.mxu0 %v790
  %1120 = vmatpush1.bf16.msra.mxu0 %v789
  %1121 = vmatprep.subr.bf16.mxu0 %v792
  %1122 = vmatpush1.bf16.msra.mxu0 %v791
  %1123 = vmatprep.subr.bf16.mxu0 %v794
  %1124 = vmatpush1.bf16.msra.mxu0 %v793
  %1125 = vmatprep.subr.bf16.mxu0 %v796
  %1126 = vmatpush1.bf16.msra.mxu0 %v795
  %1127 = vmatprep.subr.bf16.mxu0 %v798
  %1128 = vmatpush1.bf16.msra.mxu0 %v797
  %1129 = vmatprep.subr.bf16.mxu0 %v800
  %1130 = vmatpush1.bf16.msra.mxu0 %v799
  %1131 = vmatprep.subr.bf16.mxu0 %v802
  %1132 = vmatpush1.bf16.msra.mxu0 %v801
  %1133 = vmatprep.subr.bf16.mxu0 %v804
  %1134 = vmatpush1.bf16.msra.mxu0 %v803
  %1135 = vmatprep.mubr.bf16.mxu0 %v246
  %1136 = vmatmul.mubr.bf16.gmra.mrb[0].mxu0 %v245
  %v1137 = vpop.f32.mrb[0].mxu0
  %v1138 = vadd.f32 %v1085, %v1137
  %v1139 = vpop.f32.mrb[0].mxu0
  %v1140 = vadd.f32 %v1087, %v1139
  %v1141 = vpop.f32.mrb[0].mxu0
  %v1142 = vadd.f32 %v1089, %v1141
  %v1143 = vpop.f32.mrb[0].mxu0
  %v1144 = vadd.f32 %v1091, %v1143
  %1145 = vmatprep.mubr.bf16.mxu0 %v255
  %1146 = vmatmul.mubr.bf16.gmra.mrb[0].mxu0 %v254
  %v1147 = vpop.f32.mrb[0].mxu0
  %v1148 = vadd.f32 %v1095, %v1147
  %v1149 = vpop.f32.mrb[0].mxu0
  %v1150 = vadd.f32 %v1097, %v1149
  %v1151 = vpop.f32.mrb[0].mxu0
  %v1152 = vadd.f32 %v1099, %v1151
  %v1153 = vpop.f32.mrb[0].mxu0
  %v1154 = vadd.f32 %v1101, %v1153
  %1155 = vdwg.mxu0
  %1156 = vmatprep.subr.bf16.mxu0 %v806
  %1157 = vmatpush1.bf16.msra.mxu0 %v805
  %1158 = vmatprep.subr.bf16.mxu0 %v808
  %1159 = vmatpush1.bf16.msra.mxu0 %v807
  %1160 = vmatprep.subr.bf16.mxu0 %v810
  %1161 = vmatpush1.bf16.msra.mxu0 %v809
  %1162 = vmatprep.subr.bf16.mxu0 %v812
  %1163 = vmatpush1.bf16.msra.mxu0 %v811
  %1164 = vmatprep.subr.bf16.mxu0 %v814
  %1165 = vmatpush1.bf16.msra.mxu0 %v813
  %1166 = vmatprep.subr.bf16.mxu0 %v816
  %1167 = vmatpush1.bf16.msra.mxu0 %v815
  %1168 = vmatprep.subr.bf16.mxu0 %v818
  %1169 = vmatpush1.bf16.msra.mxu0 %v817
  %1170 = vmatprep.subr.bf16.mxu0 %v820
  %1171 = vmatpush1.bf16.msra.mxu0 %v819
  %1172 = vmatprep.subr.bf16.mxu0 %v822
  %1173 = vmatpush1.bf16.msra.mxu0 %v821
  %1174 = vmatprep.subr.bf16.mxu0 %v824
  %1175 = vmatpush1.bf16.msra.mxu0 %v823
  %1176 = vmatprep.subr.bf16.mxu0 %v826
  %1177 = vmatpush1.bf16.msra.mxu0 %v825
  %1178 = vmatprep.subr.bf16.mxu0 %v828
  %1179 = vmatpush1.bf16.msra.mxu0 %v827
  %1180 = vmatprep.subr.bf16.mxu0 %v830
  %1181 = vmatpush1.bf16.msra.mxu0 %v829
  %1182 = vmatprep.subr.bf16.mxu0 %v832
  %1183 = vmatpush1.bf16.msra.mxu0 %v831
  %1184 = vmatprep.subr.bf16.mxu0 %v834
  %1185 = vmatpush1.bf16.msra.mxu0 %v833
  %1186 = vmatprep.subr.bf16.mxu0 %v836
  %1187 = vmatpush1.bf16.msra.mxu0 %v835
  %1188 = vmatprep.mubr.bf16.mxu0 %v248
  %1189 = vmatmul.mubr.bf16.gmra.mrb[0].mxu0 %v247
  %v1190 = vpop.f32.mrb[0].mxu0
  %v1191 = vadd.f32 %v1138, %v1190
  %v1192 = vpop.f32.mrb[0].mxu0
  %v1193 = vadd.f32 %v1140, %v1192
  %v1194 = vpop.f32.mrb[0].mxu0
  %v1195 = vadd.f32 %v1142, %v1194
  %v1196 = vpop.f32.mrb[0].mxu0
  %v1197 = vadd.f32 %v1144, %v1196
  %1198 = vmatprep.mubr.bf16.mxu0 %v257
  %1199 = vmatmul.mubr.bf16.gmra.mrb[0].mxu0 %v256
  %v1200 = vpop.f32.mrb[0].mxu0
  %v1201 = vadd.f32 %v1148, %v1200
  %v1202 = vpop.f32.mrb[0].mxu0
  %v1203 = vadd.f32 %v1150, %v1202
  %v1204 = vpop.f32.mrb[0].mxu0
  %v1205 = vadd.f32 %v1152, %v1204
  %v1206 = vpop.f32.mrb[0].mxu0
  %v1207 = vadd.f32 %v1154, %v1206
  %1208 = vdwg.mxu0
  %1209 = vmatprep.subr.bf16.mxu0 %v838
  %1210 = vmatpush1.bf16.msra.mxu0 %v837
  %1211 = vmatprep.subr.bf16.mxu0 %v840
  %1212 = vmatpush1.bf16.msra.mxu0 %v839
  %1213 = vmatprep.subr.bf16.mxu0 %v842
  %1214 = vmatpush1.bf16.msra.mxu0 %v841
  %1215 = vmatprep.subr.bf16.mxu0 %v844
  %1216 = vmatpush1.bf16.msra.mxu0 %v843
  %1217 = vmatprep.subr.bf16.mxu0 %v846
  %1218 = vmatpush1.bf16.msra.mxu0 %v845
  %1219 = vmatprep.subr.bf16.mxu0 %v848
  %1220 = vmatpush1.bf16.msra.mxu0 %v847
  %1221 = vmatprep.subr.bf16.mxu0 %v850
  %1222 = vmatpush1.bf16.msra.mxu0 %v849
  %1223 = vmatprep.subr.bf16.mxu0 %v852
  %1224 = vmatpush1.bf16.msra.mxu0 %v851
  %1225 = vmatprep.subr.bf16.mxu0 0
  %1226 = vmatpush1.bf16.msra.mxu0 0
  %1227 = vmatprep.subr.bf16.mxu0 0
  %1228 = vmatpush1.bf16.msra.mxu0 0
  %1229 = vmatprep.subr.bf16.mxu0 0
  %1230 = vmatpush1.bf16.msra.mxu0 0
  %1231 = vmatprep.subr.bf16.mxu0 0
  %1232 = vmatpush1.bf16.msra.mxu0 0
  %1233 = vmatprep.subr.bf16.mxu0 0
  %1234 = vmatpush1.bf16.msra.mxu0 0
  %1235 = vmatprep.subr.bf16.mxu0 0
  %1236 = vmatpush1.bf16.msra.mxu0 0
  %1237 = vmatprep.subr.bf16.mxu0 0
  %1238 = vmatpush1.bf16.msra.mxu0 0
  %1239 = vmatprep.subr.bf16.mxu0 0
  %1240 = vmatpush1.bf16.msra.mxu0 0
  %1241 = vmatprep.mubr.bf16.mxu0 0
  %1242 = vmatmul.mubr.bf16.gmra.mrb[0].mxu0 %v249
  %v1243 = vpop.f32.mrb[0].mxu0
  %v1244 = vadd.f32 %v1191, %v1243
  %v1245 = vpop.f32.mrb[0].mxu0
  %v1246 = vadd.f32 %v1193, %v1245
  %v1247 = vpop.f32.mrb[0].mxu0
  %v1248 = vadd.f32 %v1195, %v1247
  %v1249 = vpop.f32.mrb[0].mxu0
  %v1250 = vadd.f32 %v1197, %v1249
  %1251 = vmatprep.mubr.bf16.mxu0 0
  %1252 = vmatmul.mubr.bf16.gmra.mrb[0].mxu0 %v258
  %v1253 = vpop.f32.mrb[0].mxu0
  %v1254 = vadd.f32 %v1201, %v1253
  %v1255 = vpop.f32.mrb[0].mxu0
  %v1256 = vadd.f32 %v1203, %v1255
  %v1257 = vpop.f32.mrb[0].mxu0
  %v1258 = vadd.f32 %v1205, %v1257
  %v1259 = vpop.f32.mrb[0].mxu0
  %v1260 = vadd.f32 %v1207, %v1259
  %1261 = vdwg.mxu0
  %v1262 = vadd.f32 %v1244, %v1248
  %v1263 = vadd.f32 %v1262, %v1254
  %v1264 = vadd.f32 %v1263, %v1258
  %v1265 = vrot.slane %v1264, 4
  %v1266 = vadd.f32 %v1264, %v1265
  %v1267 = vrot.slane %v1266, 2
  %v1268 = vadd.f32 %v1266, %v1267
  %v1269 = vrot.slane %v1268, 1
  %v1270 = vadd.f32 %v1268, %v1269
  %v1271 = vadd.f32 %v1246, %v1250
  %v1272 = vadd.f32 %v1271, %v1256
  %v1273 = vadd.f32 %v1272, %v1260
  %v1274 = vrot.slane %v1273, 4
  %v1275 = vadd.f32 %v1273, %v1274
  %v1276 = vrot.slane %v1275, 2
  %v1277 = vadd.f32 %v1275, %v1276
  %v1278 = vrot.slane %v1277, 1
  %v1279 = vadd.f32 %v1277, %v1278
  %v1280 = vmul.f32 %v1244, %v1244
  %v1281 = vmul.f32 %v1246, %v1246
  %v1282 = vmul.f32 %v1248, %v1248
  %v1283 = vmul.f32 %v1250, %v1250
  %v1284 = vmul.f32 %v1254, %v1254
  %v1285 = vmul.f32 %v1256, %v1256
  %v1286 = vmul.f32 %v1258, %v1258
  %v1287 = vmul.f32 %v1260, %v1260
  %v1288 = vadd.f32 %v1280, %v1282
  %v1289 = vadd.f32 %v1288, %v1284
  %v1290 = vadd.f32 %v1289, %v1286
  %v1291 = vrot.slane %v1290, 4
  %v1292 = vadd.f32 %v1290, %v1291
  %v1293 = vrot.slane %v1292, 2
  %v1294 = vadd.f32 %v1292, %v1293
  %v1295 = vrot.slane %v1294, 1
  %v1296 = vadd.f32 %v1294, %v1295
  %v1297 = vadd.f32 %v1281, %v1283
  %v1298 = vadd.f32 %v1297, %v1285
  %v1299 = vadd.f32 %v1298, %v1287
  %v1300 = vrot.slane %v1299, 4
  %v1301 = vadd.f32 %v1299, %v1300
  %v1302 = vrot.slane %v1301, 2
  %v1303 = vadd.f32 %v1301, %v1302
  %v1304 = vrot.slane %v1303, 1
  %v1305 = vadd.f32 %v1303, %v1304
  %v1306 = vld [vmem:[%s4] sm:$0xff]
  %v1307 = vld [vmem:[%s4 + $0x8] sm:$0xff]
  %v1308 = vld [vmem:[%s4 + $0x10] sm:$0xff]
  %v1309 = vld [vmem:[%s4 + $0x18] sm:$0xff]
  %v1310 = vld [vmem:[%s4 + $0x20] sm:$0xff]
  %v1311 = vld [vmem:[%s4 + $0x28] sm:$0xff]
  %v1312 = vld [vmem:[%s4 + $0x30] sm:$0xff]
  %v1313 = vld [vmem:[%s4 + $0x38] sm:$0xff]
  %v1314 = vld [vmem:[%s4 + $0x40] sm:$0xff]
  %v1315 = vld [vmem:[%s4 + $0x48] sm:$0xff]
  %v1316 = vld [vmem:[%s4 + $0x50] sm:$0xff]
  %v1317 = vld [vmem:[%s4 + $0x58] sm:$0xff]
  %v1318 = vld [vmem:[%s4 + $0x60] sm:$0xff]
  %v1319 = vld [vmem:[%s4 + $0x68] sm:$0xff]
  %v1320 = vld [vmem:[%s4 + $0x70] sm:$0xff]
  %v1321 = vld [vmem:[%s4 + $0x78] sm:$0xff]
  %v1322 = vld [vmem:[%s4 + $0x80] sm:$0xff]
  %v1323 = vld [vmem:[%s4 + $0x88] sm:$0xff]
  %v1324 = vld [vmem:[%s4 + $0x90] sm:$0xff]
  %v1325 = vld [vmem:[%s4 + $0x98] sm:$0xff]
  %v1326 = vld [vmem:[%s4 + $0xa0] sm:$0xff]
  %v1327 = vld [vmem:[%s4 + $0xa8] sm:$0xff]
  %v1328 = vld [vmem:[%s4 + $0xb0] sm:$0xff]
  %v1329 = vld [vmem:[%s4 + $0xb8] sm:$0xff]
  %v1330 = vld [vmem:[%s4 + $0xc0] sm:$0xff]
  %v1331 = vld [vmem:[%s4 + $0xc8] sm:$0xff]
  %v1332 = vld [vmem:[%s4 + $0xd0] sm:$0xff]
  %v1333 = vld [vmem:[%s4 + $0xd8] sm:$0xff]
  %v1334 = vld [vmem:[%s4 + $0xe0] sm:$0xff]
  %v1335 = vld [vmem:[%s4 + $0xe8] sm:$0xff]
  %v1336 = vld [vmem:[%s4 + $0xf0] sm:$0xff]
  %v1337 = vld [vmem:[%s4 + $0xf8] sm:$0xff]
  %v1338 = vld [vmem:[%s4 + $0x100] sm:$0xff]
  %v1339 = vld [vmem:[%s4 + $0x108] sm:$0xff]
  %v1340 = vld [vmem:[%s4 + $0x110] sm:$0xff]
  %v1341 = vld [vmem:[%s4 + $0x118] sm:$0xff]
  %v1342 = vld [vmem:[%s4 + $0x120] sm:$0xff]
  %v1343 = vld [vmem:[%s4 + $0x128] sm:$0xff]
  %v1344 = vld [vmem:[%s4 + $0x130] sm:$0xff]
  %v1345 = vld [vmem:[%s4 + $0x138] sm:$0xff]
  %v1346 = vld [vmem:[%s4 + $0x140] sm:$0xff]
  %v1347 = vld [vmem:[%s4 + $0x148] sm:$0xff]
  %v1348 = vld [vmem:[%s4 + $0x150] sm:$0xff]
  %v1349 = vld [vmem:[%s4 + $0x158] sm:$0xff]
  %v1350 = vld [vmem:[%s4 + $0x160] sm:$0xff]
  %v1351 = vld [vmem:[%s4 + $0x168] sm:$0xff]
  %v1352 = vld [vmem:[%s4 + $0x170] sm:$0xff]
  %v1353 = vld [vmem:[%s4 + $0x178] sm:$0xff]
  %v1354 = vld [vmem:[%s4 + $0x180] sm:$0xff]
  %v1355 = vld [vmem:[%s4 + $0x188] sm:$0xff]
  %v1356 = vld [vmem:[%s4 + $0x190] sm:$0xff]
  %v1357 = vld [vmem:[%s4 + $0x198] sm:$0xff]
  %v1358 = vld [vmem:[%s4 + $0x1a0] sm:$0xff]
  %v1359 = vld [vmem:[%s4 + $0x1a8] sm:$0xff]
  %v1360 = vld [vmem:[%s4 + $0x1b0] sm:$0xff]
  %v1361 = vld [vmem:[%s4 + $0x1b8] sm:$0xff]
  %v1362 = vld [vmem:[%s4 + $0x1c0] sm:$0xff]
  %v1363 = vld [vmem:[%s4 + $0x1c8] sm:$0xff]
  %v1364 = vld [vmem:[%s4 + $0x1d0] sm:$0xff]
  %v1365 = vld [vmem:[%s4 + $0x1d8] sm:$0xff]
  %v1366 = vld [vmem:[%s4 + $0x1e0] sm:$0xff]
  %v1367 = vld [vmem:[%s4 + $0x1e8] sm:$0xff]
  %v1368 = vld [vmem:[%s4 + $0x1f0] sm:$0xff]
  %v1369 = vld [vmem:[%s4 + $0x1f8] sm:$0xff]
  %1370 = vmatprep.subr.mxu0 %v1307
  %1371 = vmatpush1.msra.mxu0 %v1306
  %1372 = vmatprep.subr.mxu0 %v1309
  %1373 = vmatpush1.msra.mxu0 %v1308
  %1374 = vmatprep.subr.mxu0 %v1311
  %1375 = vmatpush1.msra.mxu0 %v1310
  %1376 = vmatprep.subr.mxu0 %v1313
  %1377 = vmatpush1.msra.mxu0 %v1312
  %1378 = vmatprep.subr.mxu0 %v1315
  %1379 = vmatpush1.msra.mxu0 %v1314
  %1380 = vmatprep.subr.mxu0 %v1317
  %1381 = vmatpush1.msra.mxu0 %v1316
  %1382 = vmatprep.subr.mxu0 %v1319
  %1383 = vmatpush1.msra.mxu0 %v1318
  %1384 = vmatprep.subr.mxu0 %v1321
  %1385 = vmatpush1.msra.mxu0 %v1320
  %1386 = vmatprep.subr.mxu0 %v1323
  %1387 = vmatpush1.msra.mxu0 %v1322
  %1388 = vmatprep.subr.mxu0 %v1325
  %1389 = vmatpush1.msra.mxu0 %v1324
  %1390 = vmatprep.subr.mxu0 %v1327
  %1391 = vmatpush1.msra.mxu0 %v1326
  %1392 = vmatprep.subr.mxu0 %v1329
  %1393 = vmatpush1.msra.mxu0 %v1328
  %1394 = vmatprep.subr.mxu0 %v1331
  %1395 = vmatpush1.msra.mxu0 %v1330
  %1396 = vmatprep.subr.mxu0 %v1333
  %1397 = vmatpush1.msra.mxu0 %v1332
  %1398 = vmatprep.subr.mxu0 %v1335
  %1399 = vmatpush1.msra.mxu0 %v1334
  %1400 = vmatprep.subr.mxu0 %v1337
  %1401 = vmatpush1.msra.mxu0 %v1336
  %1402 = vmatprep.subr.mxu0 %v1339
  %1403 = vmatpush1.msra.mxu0 %v1338
  %1404 = vmatprep.subr.mxu0 %v1341
  %1405 = vmatpush1.msra.mxu0 %v1340
  %1406 = vmatprep.subr.mxu0 %v1343
  %1407 = vmatpush1.msra.mxu0 %v1342
  %1408 = vmatprep.subr.mxu0 %v1345
  %1409 = vmatpush1.msra.mxu0 %v1344
  %1410 = vmatprep.subr.mxu0 %v1347
  %1411 = vmatpush1.msra.mxu0 %v1346
  %1412 = vmatprep.subr.mxu0 %v1349
  %1413 = vmatpush1.msra.mxu0 %v1348
  %1414 = vmatprep.subr.mxu0 %v1351
  %1415 = vmatpush1.msra.mxu0 %v1350
  %1416 = vmatprep.subr.mxu0 %v1353
  %1417 = vmatpush1.msra.mxu0 %v1352
  %1418 = vmatprep.subr.mxu0 %v1355
  %1419 = vmatpush1.msra.mxu0 %v1354
  %1420 = vmatprep.subr.mxu0 %v1357
  %1421 = vmatpush1.msra.mxu0 %v1356
  %1422 = vmatprep.subr.mxu0 %v1359
  %1423 = vmatpush1.msra.mxu0 %v1358
  %1424 = vmatprep.subr.mxu0 %v1361
  %1425 = vmatpush1.msra.mxu0 %v1360
  %1426 = vmatprep.subr.mxu0 %v1363
  %1427 = vmatpush1.msra.mxu0 %v1362
  %1428 = vmatprep.subr.mxu0 %v1365
  %1429 = vmatpush1.msra.mxu0 %v1364
  %1430 = vmatprep.subr.mxu0 %v1367
  %1431 = vmatpush1.msra.mxu0 %v1366
  %1432 = vmatprep.subr.mxu0 %v1369
  %1433 = vmatpush1.msra.mxu0 %v1368
  %1434 = vmatprep.mubr.f32.mxu0 %v1279
  %1435 = vmatmul.mubr.f32.gmra.mrb[0].mxu0 %v1270
  %v1436 = vpop.f32.mrb[0].mxu0
  %v1437 = vadd.f32 0.0, %v1436
  %v1438 = vpop.f32.mrb[0].mxu0
  %v1439 = vadd.f32 0.0, %v1438
  %1440 = vdwg.mxu0
  %1441 = vmatprep.subr.mxu0 %v1307
  %1442 = vmatpush1.msra.mxu0 %v1306
  %1443 = vmatprep.subr.mxu0 %v1309
  %1444 = vmatpush1.msra.mxu0 %v1308
  %1445 = vmatprep.subr.mxu0 %v1311
  %1446 = vmatpush1.msra.mxu0 %v1310
  %1447 = vmatprep.subr.mxu0 %v1313
  %1448 = vmatpush1.msra.mxu0 %v1312
  %1449 = vmatprep.subr.mxu0 %v1315
  %1450 = vmatpush1.msra.mxu0 %v1314
  %1451 = vmatprep.subr.mxu0 %v1317
  %1452 = vmatpush1.msra.mxu0 %v1316
  %1453 = vmatprep.subr.mxu0 %v1319
  %1454 = vmatpush1.msra.mxu0 %v1318
  %1455 = vmatprep.subr.mxu0 %v1321
  %1456 = vmatpush1.msra.mxu0 %v1320
  %1457 = vmatprep.subr.mxu0 %v1323
  %1458 = vmatpush1.msra.mxu0 %v1322
  %1459 = vmatprep.subr.mxu0 %v1325
  %1460 = vmatpush1.msra.mxu0 %v1324
  %1461 = vmatprep.subr.mxu0 %v1327
  %1462 = vmatpush1.msra.mxu0 %v1326
  %1463 = vmatprep.subr.mxu0 %v1329
  %1464 = vmatpush1.msra.mxu0 %v1328
  %1465 = vmatprep.subr.mxu0 %v1331
  %1466 = vmatpush1.msra.mxu0 %v1330
  %1467 = vmatprep.subr.mxu0 %v1333
  %1468 = vmatpush1.msra.mxu0 %v1332
  %1469 = vmatprep.subr.mxu0 %v1335
  %1470 = vmatpush1.msra.mxu0 %v1334
  %1471 = vmatprep.subr.mxu0 %v1337
  %1472 = vmatpush1.msra.mxu0 %v1336
  %1473 = vmatprep.subr.mxu0 %v1339
  %1474 = vmatpush1.msra.mxu0 %v1338
  %1475 = vmatprep.subr.mxu0 %v1341
  %1476 = vmatpush1.msra.mxu0 %v1340
  %1477 = vmatprep.subr.mxu0 %v1343
  %1478 = vmatpush1.msra.mxu0 %v1342
  %1479 = vmatprep.subr.mxu0 %v1345
  %1480 = vmatpush1.msra.mxu0 %v1344
  %1481 = vmatprep.subr.mxu0 %v1347
  %1482 = vmatpush1.msra.mxu0 %v1346
  %1483 = vmatprep.subr.mxu0 %v1349
  %1484 = vmatpush1.msra.mxu0 %v1348
  %1485 = vmatprep.subr.mxu0 %v1351
  %1486 = vmatpush1.msra.mxu0 %v1350
  %1487 = vmatprep.subr.mxu0 %v1353
  %1488 = vmatpush1.msra.mxu0 %v1352
  %1489 = vmatprep.subr.mxu0 %v1355
  %1490 = vmatpush1.msra.mxu0 %v1354
  %1491 = vmatprep.subr.mxu0 %v1357
  %1492 = vmatpush1.msra.mxu0 %v1356
  %1493 = vmatprep.subr.mxu0 %v1359
  %1494 = vmatpush1.msra.mxu0 %v1358
  %1495 = vmatprep.subr.mxu0 %v1361
  %1496 = vmatpush1.msra.mxu0 %v1360
  %1497 = vmatprep.subr.mxu0 %v1363
  %1498 = vmatpush1.msra.mxu0 %v1362
  %1499 = vmatprep.subr.mxu0 %v1365
  %1500 = vmatpush1.msra.mxu0 %v1364
  %1501 = vmatprep.subr.mxu0 %v1367
  %1502 = vmatpush1.msra.mxu0 %v1366
  %1503 = vmatprep.subr.mxu0 %v1369
  %1504 = vmatpush1.msra.mxu0 %v1368
  %1505 = vmatprep.mubr.f32.mxu0 %v1305
  %1506 = vmatmul.mubr.f32.gmra.mrb[0].mxu0 %v1296
  %v1507 = vpop.f32.mrb[0].mxu0
  %v1508 = vadd.f32 0.0, %v1507
  %v1509 = vpop.f32.mrb[0].mxu0
  %v1510 = vadd.f32 0.0, %v1509
  %1511 = vdwg.mxu0
  %v1512 = vmul.f32 %v1437, %v1437
  %v1513 = vmul.f32 %v1439, %v1439
  %v1514 = vsub.f32 %v1508, %v1512
  %v1515 = vsub.f32 %v1510, %v1513
  %v1516 = vmax.f32 %v1514, 0.0
  %v1517 = vmax.f32 %v1515, 0.0
  %v1518 = vld [vmem:[%s2] sm:$0x3]
  %v1519 = vadd.f32 %v1516, 1e-05
  %v1520 = vadd.f32 %v1517, 1e-05
  %v1521 = vrsqrt.pop %v1519
  %v1522 = vrsqrt.pop %v1520
  %v1525 = vcombine.low %v1521, %v1522
  %v1527 = vunpack.c.l.s4 1966171168
  %v1528 = vunpack.c.0.s8 %v1527
  %v1529 = vlaneseq
  %v1530 = vshrl.u32 %v1529, 7
  %v1531 = vsub.s32 %v1528, %v1530
  %v1532 = vrot.slane %v1525, %v1531
  %v1534 = vunpack.c.l.s4 1966171168
  %v1535 = vunpack.c.0.s8 %v1534
  %v1536 = vlaneseq
  %v1537 = vshrl.u32 %v1536, 7
  %v1538 = vsub.s32 %v1535, %v1537
  %v1539 = vrot.slane %v1532, %v1538
  %v1541 = vmul.f32 %v1518, %v1539
  %v1542 = vld [vmem:[%s3] sm:$0x3]
  %v1544 = vlaneseq
  %v1545 = vshrl.u32 %v1544, 7
  %v1546 = vsub.s32 0, %v1545
  %v1547 = vrot.slane %v1541, %v1546
  %v1548 = vlaneseq
  %v1549 = vshrl.u32 %v1548, 7
  %v1550 = vsub.s32 1, %v1549
  %v1551 = vrot.slane %v1541, %v1550
  %v1554 = vmul.f32 %v1437, %v1547
  %v1555 = vmul.f32 %v1439, %v1551
  %v1558 = vcombine.low %v1554, %v1555
  %v1560 = vunpack.c.l.s4 1966171168
  %v1561 = vunpack.c.0.s8 %v1560
  %v1562 = vlaneseq
  %v1563 = vshrl.u32 %v1562, 7
  %v1564 = vsub.s32 %v1561, %v1563
  %v1565 = vrot.slane %v1558, %v1564
  %v1567 = vunpack.c.l.s4 1966171168
  %v1568 = vunpack.c.0.s8 %v1567
  %v1569 = vlaneseq
  %v1570 = vshrl.u32 %v1569, 7
  %v1571 = vsub.s32 %v1568, %v1570
  %v1572 = vrot.slane %v1565, %v1571
  %v1574 = vsub.f32 %v1542, %v1572
  %v1575 = vmul.f32 %v1244, %v1547
  %v1576 = vmul.f32 %v1246, %v1551
  %v1577 = vmul.f32 %v1248, %v1547
  %v1578 = vmul.f32 %v1250, %v1551
  %v1579 = vmul.f32 %v1254, %v1547
  %v1580 = vmul.f32 %v1256, %v1551
  %v1581 = vmul.f32 %v1258, %v1547
  %v1582 = vmul.f32 %v1260, %v1551
  %v1584 = vlaneseq
  %v1585 = vshrl.u32 %v1584, 7
  %v1586 = vsub.s32 0, %v1585
  %v1587 = vrot.slane %v1574, %v1586
  %v1588 = vlaneseq
  %v1589 = vshrl.u32 %v1588, 7
  %v1590 = vsub.s32 1, %v1589
  %v1591 = vrot.slane %v1574, %v1590
  %v1594 = vadd.f32 %v1575, %v1587
  %v1595 = vadd.f32 %v1576, %v1591
  %v1596 = vadd.f32 %v1577, %v1587
  %v1597 = vadd.f32 %v1578, %v1591
  %v1598 = vadd.f32 %v1579, %v1587
  %v1599 = vadd.f32 %v1580, %v1591
  %v1600 = vadd.f32 %v1581, %v1587
  %v1601 = vadd.f32 %v1582, %v1591
  %vm1602 = vcmp.ge.f32.partialorder %v1594, 0.0
  %vm1603 = vcmp.ge.f32.partialorder %v1595, 0.0
  %vm1604 = vcmp.ge.f32.partialorder %v1596, 0.0
  %vm1605 = vcmp.ge.f32.partialorder %v1597, 0.0
  %vm1606 = vcmp.ge.f32.partialorder %v1598, 0.0
  %vm1607 = vcmp.ge.f32.partialorder %v1599, 0.0
  %vm1608 = vcmp.ge.f32.partialorder %v1600, 0.0
  %vm1609 = vcmp.ge.f32.partialorder %v1601, 0.0
  %v1610 = vmul.f32 %v1594, 0.05
  %v1611 = vmul.f32 %v1595, 0.05
  %v1612 = vmul.f32 %v1596, 0.05
  %v1613 = vmul.f32 %v1597, 0.05
  %v1614 = vmul.f32 %v1598, 0.05
  %v1615 = vmul.f32 %v1599, 0.05
  %v1616 = vmul.f32 %v1600, 0.05
  %v1617 = vmul.f32 %v1601, 0.05
  %v1618 = vsel %vm1602, %v1594, %v1610
  %v1619 = vsel %vm1603, %v1595, %v1611
  %v1620 = vsel %vm1604, %v1596, %v1612
  %v1621 = vsel %vm1605, %v1597, %v1613
  %v1622 = vsel %vm1606, %v1598, %v1614
  %v1623 = vsel %vm1607, %v1599, %v1615
  %v1624 = vsel %vm1608, %v1600, %v1616
  %v1625 = vsel %vm1609, %v1601, %v1617
  %v1626 = vpack.c.bf16 %v1620, %v1618
  %v1627 = vpack.c.bf16 %v1621, %v1619
  %v1628 = vpack.c.bf16 %v1624, %v1622
  %v1629 = vpack.c.bf16 %v1625, %v1623
  %v1634 = vunpack.c.l.b16 %v1626
  %v1635 = vunpack.c.l.b16 %v1627
  %v1636 = vunpack.c.h.b16 %v1626
  %v1637 = vunpack.c.h.b16 %v1627
  %v1638 = vunpack.c.l.b16 %v1628
  %v1639 = vunpack.c.l.b16 %v1629
  %v1640 = vunpack.c.h.b16 %v1628
  %v1641 = vunpack.c.h.b16 %v1629
  %v1642 = vpack.c.b16 %v1635, %v1634
  %v1643 = vpack.c.b16 %v1637, %v1636
  %v1644 = vpack.c.b16 %v1639, %v1638
  %v1645 = vpack.c.b16 %v1641, %v1640
  %1650 = vst [vmem:[%s5] sm:$0xff] %v1642
  %1651 = vst [vmem:[%s5 + $0x8] sm:$0xff] %v1643
  %1652 = vst [vmem:[%s5 + $0x10] sm:$0xff] %v1644
  %1653 = vst [vmem:[%s5 + $0x18] sm:$0xff] %v1645
  // Predicated region
  $region22: #{g22_forward.10} parent=0 // pred_check
    _
  $region23: #{g22_forward.10} parent=0 // pred_check_branch
    %1655 = sbr.rel (0) target = $region25
  $region24: #{g22_forward.10} parent=0 // pred_region
    _
  $region25: #{g22_forward.10} parent=0 // pred_fallthru
    _
  // Predicated region
  $region26: #{g22_forward.10} parent=0 // pred_check
    _
  $region27: #{g22_forward.10} parent=0 // pred_check_branch
    %1657 = sbr.rel (0) target = $region29
  $region28: #{g22_forward.10} parent=0 // pred_region
    _
  $region29: #{g22_forward.10} parent=0 // pred_fallthru
    _

// kernel: g22_forward.11
$region0: #{g22_forward.11}
  #allocation0 [shape = 'u32[]', space=smem, size = 0x4, offset = 0x4, fixed_abs, tag = 'smem constant byte address 0x4 - core index']
  #allocation1 [shape = 'u32[144,128]{1,0:T(1,128)}', space=vmem, size = 0x12000, scoped, tag = 'internal scratch']
  %s0 = inlined_call_operand.vmem [shape: bf16[128,576], index: 0, kind: input, shape index: {}]
  %s1 = inlined_call_operand.vmem [shape: bf16[576,128], index: 1, kind: input, shape index: {}]
  %s2 = inlined_call_operand.vmem [shape: bf16[128,128], index: 2, kind: output, shape index: {}]
  %s3 = sld [smem:[#allocation0]]
  $region18: #{g22_forward.11} parent=0
    _
  %s5 = ssub.s32 1, %s3
  %s6 = scalar_select 0, %s5, %s3
  // Predicated region
  $region2: #{g22_forward.11} parent=0 // pred_check
    _
  $region3: #{g22_forward.11} parent=0 // pred_check_branch
    %8 = sbr.rel (0) target = $region5
  $region4: #{g22_forward.11} parent=0 // pred_region
    _
  $region5: #{g22_forward.11} parent=0 // pred_fallthru
    _
  // Predicated region
  $region6: #{g22_forward.11} parent=0 // pred_check
    _
  $region7: #{g22_forward.11} parent=0 // pred_check_branch
    %10 = sbr.rel (0) target = $region9
  $region8: #{g22_forward.11} parent=0 // pred_region
    _
  $region9: #{g22_forward.11} parent=0 // pred_fallthru
    _
  %v12 = vld [vmem:[%s0] sm:$0xff]
  %v13 = vld [vmem:[%s0 + $0x8] sm:$0xff]
  %v14 = vld [vmem:[%s0 + $0x10] sm:$0xf]
  %v15 = vld [vmem:[%s0 + $0x14] sm:$0xff]
  %v16 = vld [vmem:[%s0 + $0x1c] sm:$0xff]
  %v17 = vld [vmem:[%s0 + $0x24] sm:$0xf]
  %v18 = vld [vmem:[%s0 + $0x28] sm:$0xff]
  %v19 = vld [vmem:[%s0 + $0x30] sm:$0xff]
  %v20 = vld [vmem:[%s0 + $0x38] sm:$0xf]
  %v21 = vld [vmem:[%s0 + $0x3c] sm:$0xff]
  %v22 = vld [vmem:[%s0 + $0x44] sm:$0xff]
  %v23 = vld [vmem:[%s0 + $0x4c] sm:$0xf]
  %v24 = vld [vmem:[%s0 + $0x50] sm:$0xff]
  %v25 = vld [vmem:[%s0 + $0x58] sm:$0xff]
  %v26 = vld [vmem:[%s0 + $0x60] sm:$0xf]
  %v27 = vld [vmem:[%s0 + $0x64] sm:$0xff]
  %v28 = vld [vmem:[%s0 + $0x6c] sm:$0xff]
  %v29 = vld [vmem:[%s0 + $0x74] sm:$0xf]
  %v30 = vld [vmem:[%s0 + $0x78] sm:$0xff]
  %v31 = vld [vmem:[%s0 + $0x80] sm:$0xff]
  %v32 = vld [vmem:[%s0 + $0x88] sm:$0xf]
  %v33 = vld [vmem:[%s0 + $0x8c] sm:$0xff]
  %v34 = vld [vmem:[%s0 + $0x94] sm:$0xff]
  %v35 = vld [vmem:[%s0 + $0x9c] sm:$0xf]
  %v36 = vld [vmem:[%s0 + $0xa0] sm:$0xff]
  %v37 = vld [vmem:[%s0 + $0xa8] sm:$0xff]
  %v38 = vld [vmem:[%s0 + $0xb0] sm:$0xf]
  %v39 = vld [vmem:[%s0 + $0xb4] sm:$0xff]
  %v40 = vld [vmem:[%s0 + $0xbc] sm:$0xff]
  %v41 = vld [vmem:[%s0 + $0xc4] sm:$0xf]
  %v42 = vld [vmem:[%s0 + $0xc8] sm:$0xff]
  %v43 = vld [vmem:[%s0 + $0xd0] sm:$0xff]
  %v44 = vld [vmem:[%s0 + $0xd8] sm:$0xf]
  %v45 = vld [vmem:[%s0 + $0xdc] sm:$0xff]
  %v46 = vld [vmem:[%s0 + $0xe4] sm:$0xff]
  %v47 = vld [vmem:[%s0 + $0xec] sm:$0xf]
  %v48 = vld [vmem:[%s0 + $0xf0] sm:$0xff]
  %v49 = vld [vmem:[%s0 + $0xf8] sm:$0xff]
  %v50 = vld [vmem:[%s0 + $0x100] sm:$0xf]
  %v51 = vld [vmem:[%s0 + $0x104] sm:$0xff]
  %v52 = vld [vmem:[%s0 + $0x10c] sm:$0xff]
  %v53 = vld [vmem:[%s0 + $0x114] sm:$0xf]
  %v54 = vld [vmem:[%s0 + $0x118] sm:$0xff]
  %v55 = vld [vmem:[%s0 + $0x120] sm:$0xff]
  %v56 = vld [vmem:[%s0 + $0x128] sm:$0xf]
  %v57 = vld [vmem:[%s0 + $0x12c] sm:$0xff]
  %v58 = vld [vmem:[%s0 + $0x134] sm:$0xff]
  %v59 = vld [vmem:[%s0 + $0x13c] sm:$0xf]
  %v60 = vld [vmem:[%s1] sm:$0xf]
  %v61 = vld [vmem:[%s1 + $0x4] sm:$0xf]
  %v62 = vld [vmem:[%s1 + $0x8] sm:$0xf]
  %v63 = vld [vmem:[%s1 + $0xc] sm:$0xf]
  %v64 = vld [vmem:[%s1 + $0x10] sm:$0xf]
  %v65 = vld [vmem:[%s1 + $0x14] sm:$0xf]
  %v66 = vld [vmem:[%s1 + $0x18] sm:$0xf]
  %v67 = vld [vmem:[%s1 + $0x1c] sm:$0xf]
  %v68 = vld [vmem:[%s1 + $0x20] sm:$0xf]
  %v69 = vld [vmem:[%s1 + $0x24] sm:$0xf]
  %v70 = vld [vmem:[%s1 + $0x28] sm:$0xf]
  %v71 = vld [vmem:[%s1 + $0x2c] sm:$0xf]
  %v72 = vld [vmem:[%s1 + $0x30] sm:$0xf]
  %v73 = vld [vmem:[%s1 + $0x34] sm:$0xf]
  %v74 = vld [vmem:[%s1 + $0x38] sm:$0xf]
  %v75 = vld [vmem:[%s1 + $0x3c] sm:$0xf]
  %v76 = vld [vmem:[%s1 + $0x40] sm:$0xf]
  %v77 = vld [vmem:[%s1 + $0x44] sm:$0xf]
  %v78 = vld [vmem:[%s1 + $0x48] sm:$0xf]
  %v79 = vld [vmem:[%s1 + $0x4c] sm:$0xf]
  %v80 = vld [vmem:[%s1 + $0x50] sm:$0xf]
  %v81 = vld [vmem:[%s1 + $0x54] sm:$0xf]
  %v82 = vld [vmem:[%s1 + $0x58] sm:$0xf]
  %v83 = vld [vmem:[%s1 + $0x5c] sm:$0xf]
  %v84 = vld [vmem:[%s1 + $0x60] sm:$0xf]
  %v85 = vld [vmem:[%s1 + $0x64] sm:$0xf]
  %v86 = vld [vmem:[%s1 + $0x68] sm:$0xf]
  %v87 = vld [vmem:[%s1 + $0x6c] sm:$0xf]
  %v88 = vld [vmem:[%s1 + $0x70] sm:$0xf]
  %v89 = vld [vmem:[%s1 + $0x74] sm:$0xf]
  %v90 = vld [vmem:[%s1 + $0x78] sm:$0xf]
  %v91 = vld [vmem:[%s1 + $0x7c] sm:$0xf]
  %v92 = vld [vmem:[%s1 + $0x80] sm:$0xf]
  %v93 = vld [vmem:[%s1 + $0x84] sm:$0xf]
  %v94 = vld [vmem:[%s1 + $0x88] sm:$0xf]
  %v95 = vld [vmem:[%s1 + $0x8c] sm:$0xf]
  %v96 = vld [vmem:[%s1 + $0x90] sm:$0xf]
  %v97 = vld [vmem:[%s1 + $0x94] sm:$0xf]
  %v98 = vld [vmem:[%s1 + $0x98] sm:$0xf]
  %v99 = vld [vmem:[%s1 + $0x9c] sm:$0xf]
  %v100 = vld [vmem:[%s1 + $0xa0] sm:$0xf]
  %v101 = vld [vmem:[%s1 + $0xa4] sm:$0xf]
  %v102 = vld [vmem:[%s1 + $0xa8] sm:$0xf]
  %v103 = vld [vmem:[%s1 + $0xac] sm:$0xf]
  %v104 = vld [vmem:[%s1 + $0xb0] sm:$0xf]
  %v105 = vld [vmem:[%s1 + $0xb4] sm:$0xf]
  %v106 = vld [vmem:[%s1 + $0xb8] sm:$0xf]
  %v107 = vld [vmem:[%s1 + $0xbc] sm:$0xf]
  %v108 = vld [vmem:[%s1 + $0xc0] sm:$0xf]
  %v109 = vld [vmem:[%s1 + $0xc4] sm:$0xf]
  %v110 = vld [vmem:[%s1 + $0xc8] sm:$0xf]
  %v111 = vld [vmem:[%s1 + $0xcc] sm:$0xf]
  %v112 = vld [vmem:[%s1 + $0xd0] sm:$0xf]
  %v113 = vld [vmem:[%s1 + $0xd4] sm:$0xf]
  %v114 = vld [vmem:[%s1 + $0xd8] sm:$0xf]
  %v115 = vld [vmem:[%s1 + $0xdc] sm:$0xf]
  %v116 = vld [vmem:[%s1 + $0xe0] sm:$0xf]
  %v117 = vld [vmem:[%s1 + $0xe4] sm:$0xf]
  %v118 = vld [vmem:[%s1 + $0xe8] sm:$0xf]
  %v119 = vld [vmem:[%s1 + $0xec] sm:$0xf]
  %v120 = vld [vmem:[%s1 + $0xf0] sm:$0xf]
  %v121 = vld [vmem:[%s1 + $0xf4] sm:$0xf]
  %v122 = vld [vmem:[%s1 + $0xf8] sm:$0xf]
  %v123 = vld [vmem:[%s1 + $0xfc] sm:$0xf]
  %v124 = vld [vmem:[%s1 + $0x100] sm:$0xf]
  %v125 = vld [vmem:[%s1 + $0x104] sm:$0xf]
  %v126 = vld [vmem:[%s1 + $0x108] sm:$0xf]
  %v127 = vld [vmem:[%s1 + $0x10c] sm:$0xf]
  %v128 = vld [vmem:[%s1 + $0x110] sm:$0xf]
  %v129 = vld [vmem:[%s1 + $0x114] sm:$0xf]
  %v130 = vld [vmem:[%s1 + $0x118] sm:$0xf]
  %v131 = vld [vmem:[%s1 + $0x11c] sm:$0xf]
  %v180 = vunpack.c.l.b16 %v12
  %v181 = vunpack.c.h.b16 %v12
  %v182 = vunpack.c.l.b16 %v13
  %v183 = vunpack.c.h.b16 %v13
  %v184 = vunpack.c.l.b16 %v14
  %v185 = vunpack.c.l.b16 %v15
  %v186 = vunpack.c.h.b16 %v15
  %v187 = vunpack.c.l.b16 %v16
  %v188 = vunpack.c.h.b16 %v16
  %v189 = vunpack.c.l.b16 %v17
  %v190 = vunpack.c.l.b16 %v18
  %v191 = vunpack.c.h.b16 %v18
  %v192 = vunpack.c.l.b16 %v19
  %v193 = vunpack.c.h.b16 %v19
  %v194 = vunpack.c.l.b16 %v20
  %v195 = vunpack.c.l.b16 %v21
  %v196 = vunpack.c.h.b16 %v21
  %v197 = vunpack.c.l.b16 %v22
  %v198 = vunpack.c.h.b16 %v22
  %v199 = vunpack.c.l.b16 %v23
  %v200 = vunpack.c.l.b16 %v24
  %v201 = vunpack.c.h.b16 %v24
  %v202 = vunpack.c.l.b16 %v25
  %v203 = vunpack.c.h.b16 %v25
  %v204 = vunpack.c.l.b16 %v26
  %v205 = vunpack.c.l.b16 %v27
  %v206 = vunpack.c.h.b16 %v27
  %v207 = vunpack.c.l.b16 %v28
  %v208 = vunpack.c.h.b16 %v28
  %v209 = vunpack.c.l.b16 %v29
  %v210 = vunpack.c.l.b16 %v30
  %v211 = vunpack.c.h.b16 %v30
  %v212 = vunpack.c.l.b16 %v31
  %v213 = vunpack.c.h.b16 %v31
  %v214 = vunpack.c.l.b16 %v32
  %v215 = vunpack.c.l.b16 %v33
  %v216 = vunpack.c.h.b16 %v33
  %v217 = vunpack.c.l.b16 %v34
  %v218 = vunpack.c.h.b16 %v34
  %v219 = vunpack.c.l.b16 %v35
  %v220 = vunpack.c.l.b16 %v36
  %v221 = vunpack.c.h.b16 %v36
  %v222 = vunpack.c.l.b16 %v37
  %v223 = vunpack.c.h.b16 %v37
  %v224 = vunpack.c.l.b16 %v38
  %v225 = vunpack.c.l.b16 %v39
  %v226 = vunpack.c.h.b16 %v39
  %v227 = vunpack.c.l.b16 %v40
  %v228 = vunpack.c.h.b16 %v40
  %v229 = vunpack.c.l.b16 %v41
  %v230 = vunpack.c.l.b16 %v42
  %v231 = vunpack.c.h.b16 %v42
  %v232 = vunpack.c.l.b16 %v43
  %v233 = vunpack.c.h.b16 %v43
  %v234 = vunpack.c.l.b16 %v44
  %v235 = vunpack.c.l.b16 %v45
  %v236 = vunpack.c.h.b16 %v45
  %v237 = vunpack.c.l.b16 %v46
  %v238 = vunpack.c.h.b16 %v46
  %v239 = vunpack.c.l.b16 %v47
  %v240 = vunpack.c.l.b16 %v48
  %v241 = vunpack.c.h.b16 %v48
  %v242 = vunpack.c.l.b16 %v49
  %v243 = vunpack.c.h.b16 %v49
  %v244 = vunpack.c.l.b16 %v50
  %v245 = vunpack.c.l.b16 %v51
  %v246 = vunpack.c.h.b16 %v51
  %v247 = vunpack.c.l.b16 %v52
  %v248 = vunpack.c.h.b16 %v52
  %v249 = vunpack.c.l.b16 %v53
  %v250 = vunpack.c.l.b16 %v54
  %v251 = vunpack.c.h.b16 %v54
  %v252 = vunpack.c.l.b16 %v55
  %v253 = vunpack.c.h.b16 %v55
  %v254 = vunpack.c.l.b16 %v56
  %v255 = vunpack.c.l.b16 %v57
  %v256 = vunpack.c.h.b16 %v57
  %v257 = vunpack.c.l.b16 %v58
  %v258 = vunpack.c.h.b16 %v58
  %v259 = vunpack.c.l.b16 %v59
  %v260 = vpack.c.b16 %v185, %v180
  %v261 = vpack.c.b16 %v186, %v181
  %v262 = vpack.c.b16 %v187, %v182
  %v263 = vpack.c.b16 %v188, %v183
  %v264 = vpack.c.b16 %v189, %v184
  %v265 = vpack.c.b16 %v195, %v190
  %v266 = vpack.c.b16 %v196, %v191
  %v267 = vpack.c.b16 %v197, %v192
  %v268 = vpack.c.b16 %v198, %v193
  %v269 = vpack.c.b16 %v199, %v194
  %v270 = vpack.c.b16 %v205, %v200
  %v271 = vpack.c.b16 %v206, %v201
  %v272 = vpack.c.b16 %v207, %v202
  %v273 = vpack.c.b16 %v208, %v203
  %v274 = vpack.c.b16 %v209, %v204
  %v275 = vpack.c.b16 %v215, %v210
  %v276 = vpack.c.b16 %v216, %v211
  %v277 = vpack.c.b16 %v217, %v212
  %v278 = vpack.c.b16 %v218, %v213
  %v279 = vpack.c.b16 %v219, %v214
  %v280 = vpack.c.b16 %v225, %v220
  %v281 = vpack.c.b16 %v226, %v221
  %v282 = vpack.c.b16 %v227, %v222
  %v283 = vpack.c.b16 %v228, %v223
  %v284 = vpack.c.b16 %v229, %v224
  %v285 = vpack.c.b16 %v235, %v230
  %v286 = vpack.c.b16 %v236, %v231
  %v287 = vpack.c.b16 %v237, %v232
  %v288 = vpack.c.b16 %v238, %v233
  %v289 = vpack.c.b16 %v239, %v234
  %v290 = vpack.c.b16 %v245, %v240
  %v291 = vpack.c.b16 %v246, %v241
  %v292 = vpack.c.b16 %v247, %v242
  %v293 = vpack.c.b16 %v248, %v243
  %v294 = vpack.c.b16 %v249, %v244
  %v295 = vpack.c.b16 %v255, %v250
  %v296 = vpack.c.b16 %v256, %v251
  %v297 = vpack.c.b16 %v257, %v252
  %v298 = vpack.c.b16 %v258, %v253
  %v299 = vpack.c.b16 %v259, %v254
  %v404 = vunpack.c.l.b16 %v60
  %v405 = vunpack.c.l.b16 %v61
  %v406 = vunpack.c.l.b16 %v62
  %v407 = vunpack.c.l.b16 %v63
  %v408 = vunpack.c.l.b16 %v64
  %v409 = vunpack.c.l.b16 %v65
  %v410 = vunpack.c.l.b16 %v66
  %v411 = vunpack.c.l.b16 %v67
  %v412 = vunpack.c.l.b16 %v68
  %v413 = vunpack.c.l.b16 %v69
  %v414 = vunpack.c.l.b16 %v70
  %v415 = vunpack.c.l.b16 %v71
  %v416 = vunpack.c.l.b16 %v72
  %v417 = vunpack.c.l.b16 %v73
  %v418 = vunpack.c.l.b16 %v74
  %v419 = vunpack.c.l.b16 %v75
  %v420 = vunpack.c.l.b16 %v76
  %v421 = vunpack.c.l.b16 %v77
  %v422 = vunpack.c.l.b16 %v78
  %v423 = vunpack.c.l.b16 %v79
  %v424 = vunpack.c.l.b16 %v80
  %v425 = vunpack.c.l.b16 %v81
  %v426 = vunpack.c.l.b16 %v82
  %v427 = vunpack.c.l.b16 %v83
  %v428 = vunpack.c.l.b16 %v84
  %v429 = vunpack.c.l.b16 %v85
  %v430 = vunpack.c.l.b16 %v86
  %v431 = vunpack.c.l.b16 %v87
  %v432 = vunpack.c.l.b16 %v88
  %v433 = vunpack.c.l.b16 %v89
  %v434 = vunpack.c.l.b16 %v90
  %v435 = vunpack.c.l.b16 %v91
  %v436 = vunpack.c.l.b16 %v92
  %v437 = vunpack.c.l.b16 %v93
  %v438 = vunpack.c.l.b16 %v94
  %v439 = vunpack.c.l.b16 %v95
  %v440 = vunpack.c.l.b16 %v96
  %v441 = vunpack.c.l.b16 %v97
  %v442 = vunpack.c.l.b16 %v98
  %v443 = vunpack.c.l.b16 %v99
  %v444 = vunpack.c.l.b16 %v100
  %v445 = vunpack.c.l.b16 %v101
  %v446 = vunpack.c.l.b16 %v102
  %v447 = vunpack.c.l.b16 %v103
  %v448 = vunpack.c.l.b16 %v104
  %v449 = vunpack.c.l.b16 %v105
  %v450 = vunpack.c.l.b16 %v106
  %v451 = vunpack.c.l.b16 %v107
  %v452 = vunpack.c.l.b16 %v108
  %v453 = vunpack.c.l.b16 %v109
  %v454 = vunpack.c.l.b16 %v110
  %v455 = vunpack.c.l.b16 %v111
  %v456 = vunpack.c.l.b16 %v112
  %v457 = vunpack.c.l.b16 %v113
  %v458 = vunpack.c.l.b16 %v114
  %v459 = vunpack.c.l.b16 %v115
  %v460 = vunpack.c.l.b16 %v116
  %v461 = vunpack.c.l.b16 %v117
  %v462 = vunpack.c.l.b16 %v118
  %v463 = vunpack.c.l.b16 %v119
  %v464 = vunpack.c.l.b16 %v120
  %v465 = vunpack.c.l.b16 %v121
  %v466 = vunpack.c.l.b16 %v122
  %v467 = vunpack.c.l.b16 %v123
  %v468 = vunpack.c.l.b16 %v124
  %v469 = vunpack.c.l.b16 %v125
  %v470 = vunpack.c.l.b16 %v126
  %v471 = vunpack.c.l.b16 %v127
  %v472 = vunpack.c.l.b16 %v128
  %v473 = vunpack.c.l.b16 %v129
  %v474 = vunpack.c.l.b16 %v130
  %v475 = vunpack.c.l.b16 %v131
  %v476 = vpack.c.b16 %v405, %v404
  %v477 = vpack.c.b16 %v407, %v406
  %v478 = vpack.c.b16 %v409, %v408
  %v479 = vpack.c.b16 %v411, %v410
  %v480 = vpack.c.b16 %v413, %v412
  %v481 = vpack.c.b16 %v415, %v414
  %v482 = vpack.c.b16 %v417, %v416
  %v483 = vpack.c.b16 %v419, %v418
  %v484 = vpack.c.b16 %v421, %v420
  %v485 = vpack.c.b16 %v423, %v422
  %v486 = vpack.c.b16 %v425, %v424
  %v487 = vpack.c.b16 %v427, %v426
  %v488 = vpack.c.b16 %v429, %v428
  %v489 = vpack.c.b16 %v431, %v430
  %v490 = vpack.c.b16 %v433, %v432
  %v491 = vpack.c.b16 %v435, %v434
  %v492 = vpack.c.b16 %v437, %v436
  %v493 = vpack.c.b16 %v439, %v438
  %v494 = vpack.c.b16 %v441, %v440
  %v495 = vpack.c.b16 %v443, %v442
  %v496 = vpack.c.b16 %v445, %v444
  %v497 = vpack.c.b16 %v447, %v446
  %v498 = vpack.c.b16 %v449, %v448
  %v499 = vpack.c.b16 %v451, %v450
  %v500 = vpack.c.b16 %v453, %v452
  %v501 = vpack.c.b16 %v455, %v454
  %v502 = vpack.c.b16 %v457, %v456
  %v503 = vpack.c.b16 %v459, %v458
  %v504 = vpack.c.b16 %v461, %v460
  %v505 = vpack.c.b16 %v463, %v462
  %v506 = vpack.c.b16 %v465, %v464
  %v507 = vpack.c.b16 %v467, %v466
  %v508 = vpack.c.b16 %v469, %v468
  %v509 = vpack.c.b16 %v471, %v470
  %v510 = vpack.c.b16 %v473, %v472
  %v511 = vpack.c.b16 %v475, %v474
  %vm548 = vcmask 523264
  %v550 = vsel %vm548, %v264, 0
  %v553 = vsel %vm548, %v269, 0
  %v556 = vsel %vm548, %v274, 0
  %v559 = vsel %vm548, %v279, 0
  %v562 = vsel %vm548, %v284, 0
  %v565 = vsel %vm548, %v289, 0
  %v568 = vsel %vm548, %v294, 0
  %v571 = vsel %vm548, %v299, 0
  %573 = vmatprep.subr.bf16.mxu0 0
  %574 = vmatpush1.bf16.msra.mxu0 %v476
  %575 = vmatprep.subr.bf16.mxu0 0
  %576 = vmatpush1.bf16.msra.mxu0 %v477
  %577 = vmatprep.subr.bf16.mxu0 0
  %578 = vmatpush1.bf16.msra.mxu0 %v478
  %579 = vmatprep.subr.bf16.mxu0 0
  %580 = vmatpush1.bf16.msra.mxu0 %v479
  %581 = vmatprep.subr.bf16.mxu0 0
  %582 = vmatpush1.bf16.msra.mxu0 %v480
  %583 = vmatprep.subr.bf16.mxu0 0
  %584 = vmatpush1.bf16.msra.mxu0 %v481
  %585 = vmatprep.subr.bf16.mxu0 0
  %586 = vmatpush1.bf16.msra.mxu0 %v482
  %587 = vmatprep.subr.bf16.mxu0 0
  %588 = vmatpush1.bf16.msra.mxu0 %v483
  %589 = vmatprep.subr.bf16.mxu0 0
  %590 = vmatpush1.bf16.msra.mxu0 %v484
  %591 = vmatprep.subr.bf16.mxu0 0
  %592 = vmatpush1.bf16.msra.mxu0 %v485
  %593 = vmatprep.subr.bf16.mxu0 0
  %594 = vmatpush1.bf16.msra.mxu0 %v486
  %595 = vmatprep.subr.bf16.mxu0 0
  %596 = vmatpush1.bf16.msra.mxu0 %v487
  %597 = vmatprep.subr.bf16.mxu0 0
  %598 = vmatpush1.bf16.msra.mxu0 %v488
  %599 = vmatprep.subr.bf16.mxu0 0
  %600 = vmatpush1.bf16.msra.mxu0 %v489
  %601 = vmatprep.subr.bf16.mxu0 0
  %602 = vmatpush1.bf16.msra.mxu0 %v490
  %603 = vmatprep.subr.bf16.mxu0 0
  %604 = vmatpush1.bf16.msra.mxu0 %v491
  %605 = vmatprep.mubr.bf16.mxu0 %v261
  %606 = vmatmul.mubr.bf16.gmra.mrb[0].mxu0 %v260
  %v607 = vpop.f32.mrb[0].mxu0
  %v608 = vadd.f32 0.0, %v607
  %v609 = vpop.f32.mrb[0].mxu0
  %v610 = vpop.f32.mrb[0].mxu0
  %v611 = vadd.f32 0.0, %v610
  %v612 = vpop.f32.mrb[0].mxu0
  %613 = vmatprep.mubr.bf16.mxu0 %v266
  %614 = vmatmul.mubr.bf16.gmra.mrb[0].mxu0 %v265
  %v615 = vpop.f32.mrb[0].mxu0
  %v616 = vadd.f32 0.0, %v615
  %v617 = vpop.f32.mrb[0].mxu0
  %v618 = vpop.f32.mrb[0].mxu0
  %v619 = vadd.f32 0.0, %v618
  %v620 = vpop.f32.mrb[0].mxu0
  %621 = vmatprep.mubr.bf16.mxu0 %v271
  %622 = vmatmul.mubr.bf16.gmra.mrb[0].mxu0 %v270
  %v623 = vpop.f32.mrb[0].mxu0
  %v624 = vadd.f32 0.0, %v623
  %v625 = vpop.f32.mrb[0].mxu0
  %v626 = vpop.f32.mrb[0].mxu0
  %v627 = vadd.f32 0.0, %v626
  %v628 = vpop.f32.mrb[0].mxu0
  %629 = vmatprep.mubr.bf16.mxu0 %v276
  %630 = vmatmul.mubr.bf16.gmra.mrb[0].mxu0 %v275
  %v631 = vpop.f32.mrb[0].mxu0
  %v632 = vadd.f32 0.0, %v631
  %v633 = vpop.f32.mrb[0].mxu0
  %v634 = vpop.f32.mrb[0].mxu0
  %v635 = vadd.f32 0.0, %v634
  %v636 = vpop.f32.mrb[0].mxu0
  %637 = vmatprep.mubr.bf16.mxu0 %v281
  %638 = vmatmul.mubr.bf16.gmra.mrb[0].mxu0 %v280
  %v639 = vpop.f32.mrb[0].mxu0
  %v640 = vadd.f32 0.0, %v639
  %v641 = vpop.f32.mrb[0].mxu0
  %v642 = vpop.f32.mrb[0].mxu0
  %v643 = vadd.f32 0.0, %v642
  %v644 = vpop.f32.mrb[0].mxu0
  %645 = vmatprep.mubr.bf16.mxu0 %v286
  %646 = vmatmul.mubr.bf16.gmra.mrb[0].mxu0 %v285
  %v647 = vpop.f32.mrb[0].mxu0
  %v648 = vadd.f32 0.0, %v647
  %v649 = vpop.f32.mrb[0].mxu0
  %v650 = vpop.f32.mrb[0].mxu0
  %v651 = vadd.f32 0.0, %v650
  %v652 = vpop.f32.mrb[0].mxu0
  %653 = vmatprep.mubr.bf16.mxu0 %v291
  %654 = vmatmul.mubr.bf16.gmra.mrb[0].mxu0 %v290
  %v655 = vpop.f32.mrb[0].mxu0
  %v656 = vadd.f32 0.0, %v655
  %v657 = vpop.f32.mrb[0].mxu0
  %v658 = vpop.f32.mrb[0].mxu0
  %v659 = vadd.f32 0.0, %v658
  %v660 = vpop.f32.mrb[0].mxu0
  %661 = vmatprep.mubr.bf16.mxu0 %v296
  %662 = vmatmul.mubr.bf16.gmra.mrb[0].mxu0 %v295
  %v663 = vpop.f32.mrb[0].mxu0
  %v664 = vadd.f32 0.0, %v663
  %v665 = vpop.f32.mrb[0].mxu0
  %v666 = vpop.f32.mrb[0].mxu0
  %v667 = vadd.f32 0.0, %v666
  %v668 = vpop.f32.mrb[0].mxu0
  %669 = vdwg.mxu0
  %670 = vmatprep.subr.bf16.mxu0 0
  %671 = vmatpush1.bf16.msra.mxu0 %v492
  %672 = vmatprep.subr.bf16.mxu0 0
  %673 = vmatpush1.bf16.msra.mxu0 %v493
  %674 = vmatprep.subr.bf16.mxu0 0
  %675 = vmatpush1.bf16.msra.mxu0 %v494
  %676 = vmatprep.subr.bf16.mxu0 0
  %677 = vmatpush1.bf16.msra.mxu0 %v495
  %678 = vmatprep.subr.bf16.mxu0 0
  %679 = vmatpush1.bf16.msra.mxu0 %v496
  %680 = vmatprep.subr.bf16.mxu0 0
  %681 = vmatpush1.bf16.msra.mxu0 %v497
  %682 = vmatprep.subr.bf16.mxu0 0
  %683 = vmatpush1.bf16.msra.mxu0 %v498
  %684 = vmatprep.subr.bf16.mxu0 0
  %685 = vmatpush1.bf16.msra.mxu0 %v499
  %686 = vmatprep.subr.bf16.mxu0 0
  %687 = vmatpush1.bf16.msra.mxu0 %v500
  %688 = vmatprep.subr.bf16.mxu0 0
  %689 = vmatpush1.bf16.msra.mxu0 %v501
  %690 = vmatprep.subr.bf16.mxu0 0
  %691 = vmatpush1.bf16.msra.mxu0 %v502
  %692 = vmatprep.subr.bf16.mxu0 0
  %693 = vmatpush1.bf16.msra.mxu0 %v503
  %694 = vmatprep.subr.bf16.mxu0 0
  %695 = vmatpush1.bf16.msra.mxu0 %v504
  %696 = vmatprep.subr.bf16.mxu0 0
  %697 = vmatpush1.bf16.msra.mxu0 %v505
  %698 = vmatprep.subr.bf16.mxu0 0
  %699 = vmatpush1.bf16.msra.mxu0 %v506
  %700 = vmatprep.subr.bf16.mxu0 0
  %701 = vmatpush1.bf16.msra.mxu0 %v507
  %702 = vmatprep.mubr.bf16.mxu0 %v263
  %703 = vmatmul.mubr.bf16.gmra.mrb[0].mxu0 %v262
  %v704 = vpop.f32.mrb[0].mxu0
  %v705 = vadd.f32 %v608, %v704
  %v706 = vpop.f32.mrb[0].mxu0
  %v707 = vpop.f32.mrb[0].mxu0
  %v708 = vadd.f32 %v611, %v707
  %v709 = vpop.f32.mrb[0].mxu0
  %710 = vmatprep.mubr.bf16.mxu0 %v268
  %711 = vmatmul.mubr.bf16.gmra.mrb[0].mxu0 %v267
  %v712 = vpop.f32.mrb[0].mxu0
  %v713 = vadd.f32 %v616, %v712
  %v714 = vpop.f32.mrb[0].mxu0
  %v715 = vpop.f32.mrb[0].mxu0
  %v716 = vadd.f32 %v619, %v715
  %v717 = vpop.f32.mrb[0].mxu0
  %718 = vmatprep.mubr.bf16.mxu0 %v273
  %719 = vmatmul.mubr.bf16.gmra.mrb[0].mxu0 %v272
  %v720 = vpop.f32.mrb[0].mxu0
  %v721 = vadd.f32 %v624, %v720
  %v722 = vpop.f32.mrb[0].mxu0
  %v723 = vpop.f32.mrb[0].mxu0
  %v724 = vadd.f32 %v627, %v723
  %v725 = vpop.f32.mrb[0].mxu0
  %726 = vmatprep.mubr.bf16.mxu0 %v278
  %727 = vmatmul.mubr.bf16.gmra.mrb[0].mxu0 %v277
  %v728 = vpop.f32.mrb[0].mxu0
  %v729 = vadd.f32 %v632, %v728
  %v730 = vpop.f32.mrb[0].mxu0
  %v731 = vpop.f32.mrb[0].mxu0
  %v732 = vadd.f32 %v635, %v731
  %v733 = vpop.f32.mrb[0].mxu0
  %734 = vmatprep.mubr.bf16.mxu0 %v283
  %735 = vmatmul.mubr.bf16.gmra.mrb[0].mxu0 %v282
  %v736 = vpop.f32.mrb[0].mxu0
  %v737 = vadd.f32 %v640, %v736
  %v738 = vpop.f32.mrb[0].mxu0
  %v739 = vpop.f32.mrb[0].mxu0
  %v740 = vadd.f32 %v643, %v739
  %v741 = vpop.f32.mrb[0].mxu0
  %742 = vmatprep.mubr.bf16.mxu0 %v288
  %743 = vmatmul.mubr.bf16.gmra.mrb[0].mxu0 %v287
  %v744 = vpop.f32.mrb[0].mxu0
  %v745 = vadd.f32 %v648, %v744
  %v746 = vpop.f32.mrb[0].mxu0
  %v747 = vpop.f32.mrb[0].mxu0
  %v748 = vadd.f32 %v651, %v747
  %v749 = vpop.f32.mrb[0].mxu0
  %750 = vmatprep.mubr.bf16.mxu0 %v293
  %751 = vmatmul.mubr.bf16.gmra.mrb[0].mxu0 %v292
  %v752 = vpop.f32.mrb[0].mxu0
  %v753 = vadd.f32 %v656, %v752
  %v754 = vpop.f32.mrb[0].mxu0
  %v755 = vpop.f32.mrb[0].mxu0
  %v756 = vadd.f32 %v659, %v755
  %v757 = vpop.f32.mrb[0].mxu0
  %758 = vmatprep.mubr.bf16.mxu0 %v298
  %759 = vmatmul.mubr.bf16.gmra.mrb[0].mxu0 %v297
  %v760 = vpop.f32.mrb[0].mxu0
  %v761 = vadd.f32 %v664, %v760
  %v762 = vpop.f32.mrb[0].mxu0
  %v763 = vpop.f32.mrb[0].mxu0
  %v764 = vadd.f32 %v667, %v763
  %v765 = vpop.f32.mrb[0].mxu0
  %766 = vdwg.mxu0
  %767 = vmatprep.subr.bf16.mxu0 0
  %768 = vmatpush1.bf16.msra.mxu0 %v508
  %769 = vmatprep.subr.bf16.mxu0 0
  %770 = vmatpush1.bf16.msra.mxu0 %v509
  %771 = vmatprep.subr.bf16.mxu0 0
  %772 = vmatpush1.bf16.msra.mxu0 %v510
  %773 = vmatprep.subr.bf16.mxu0 0
  %774 = vmatpush1.bf16.msra.mxu0 %v511
  %775 = vmatprep.subr.bf16.mxu0 0
  %776 = vmatpush1.bf16.msra.mxu0 0
  %777 = vmatprep.subr.bf16.mxu0 0
  %778 = vmatpush1.bf16.msra.mxu0 0
  %779 = vmatprep.subr.bf16.mxu0 0
  %780 = vmatpush1.bf16.msra.mxu0 0
  %781 = vmatprep.subr.bf16.mxu0 0
  %782 = vmatpush1.bf16.msra.mxu0 0
  %783 = vmatprep.subr.bf16.mxu0 0
  %784 = vmatpush1.bf16.msra.mxu0 0
  %785 = vmatprep.subr.bf16.mxu0 0
  %786 = vmatpush1.bf16.msra.mxu0 0
  %787 = vmatprep.subr.bf16.mxu0 0
  %788 = vmatpush1.bf16.msra.mxu0 0
  %789 = vmatprep.subr.bf16.mxu0 0
  %790 = vmatpush1.bf16.msra.mxu0 0
  %791 = vmatprep.subr.bf16.mxu0 0
  %792 = vmatpush1.bf16.msra.mxu0 0
  %793 = vmatprep.subr.bf16.mxu0 0
  %794 = vmatpush1.bf16.msra.mxu0 0
  %795 = vmatprep.subr.bf16.mxu0 0
  %796 = vmatpush1.bf16.msra.mxu0 0
  %797 = vmatprep.subr.bf16.mxu0 0
  %798 = vmatpush1.bf16.msra.mxu0 0
  %799 = vmatprep.mubr.bf16.mxu0 0
  %800 = vmatmul.mubr.bf16.gmra.mrb[0].mxu0 %v550
  %v801 = vpop.f32.mrb[0].mxu0
  %v802 = vadd.f32 %v705, %v801
  %v803 = vpop.f32.mrb[0].mxu0
  %v804 = vpop.f32.mrb[0].mxu0
  %v805 = vadd.f32 %v708, %v804
  %v806 = vpop.f32.mrb[0].mxu0
  %807 = vmatprep.mubr.bf16.mxu0 0
  %808 = vmatmul.mubr.bf16.gmra.mrb[0].mxu0 %v553
  %v809 = vpop.f32.mrb[0].mxu0
  %v810 = vadd.f32 %v713, %v809
  %v811 = vpop.f32.mrb[0].mxu0
  %v812 = vpop.f32.mrb[0].mxu0
  %v813 = vadd.f32 %v716, %v812
  %v814 = vpop.f32.mrb[0].mxu0
  %815 = vmatprep.mubr.bf16.mxu0 0
  %816 = vmatmul.mubr.bf16.gmra.mrb[0].mxu0 %v556
  %v817 = vpop.f32.mrb[0].mxu0
  %v818 = vadd.f32 %v721, %v817
  %v819 = vpop.f32.mrb[0].mxu0
  %v820 = vpop.f32.mrb[0].mxu0
  %v821 = vadd.f32 %v724, %v820
  %v822 = vpop.f32.mrb[0].mxu0
  %823 = vmatprep.mubr.bf16.mxu0 0
  %824 = vmatmul.mubr.bf16.gmra.mrb[0].mxu0 %v559
  %v825 = vpop.f32.mrb[0].mxu0
  %v826 = vadd.f32 %v729, %v825
  %v827 = vpop.f32.mrb[0].mxu0
  %v828 = vpop.f32.mrb[0].mxu0
  %v829 = vadd.f32 %v732, %v828
  %v830 = vpop.f32.mrb[0].mxu0
  %831 = vmatprep.mubr.bf16.mxu0 0
  %832 = vmatmul.mubr.bf16.gmra.mrb[0].mxu0 %v562
  %v833 = vpop.f32.mrb[0].mxu0
  %v834 = vadd.f32 %v737, %v833
  %v835 = vpop.f32.mrb[0].mxu0
  %v836 = vpop.f32.mrb[0].mxu0
  %v837 = vadd.f32 %v740, %v836
  %v838 = vpop.f32.mrb[0].mxu0
  %839 = vmatprep.mubr.bf16.mxu0 0
  %840 = vmatmul.mubr.bf16.gmra.mrb[0].mxu0 %v565
  %v841 = vpop.f32.mrb[0].mxu0
  %v842 = vadd.f32 %v745, %v841
  %v843 = vpop.f32.mrb[0].mxu0
  %v844 = vpop.f32.mrb[0].mxu0
  %v845 = vadd.f32 %v748, %v844
  %v846 = vpop.f32.mrb[0].mxu0
  %847 = vmatprep.mubr.bf16.mxu0 0
  %848 = vmatmul.mubr.bf16.gmra.mrb[0].mxu0 %v568
  %v849 = vpop.f32.mrb[0].mxu0
  %v850 = vadd.f32 %v753, %v849
  %v851 = vpop.f32.mrb[0].mxu0
  %v852 = vpop.f32.mrb[0].mxu0
  %v853 = vadd.f32 %v756, %v852
  %v854 = vpop.f32.mrb[0].mxu0
  %855 = vmatprep.mubr.bf16.mxu0 0
  %856 = vmatmul.mubr.bf16.gmra.mrb[0].mxu0 %v571
  %v857 = vpop.f32.mrb[0].mxu0
  %v858 = vadd.f32 %v761, %v857
  %v859 = vpop.f32.mrb[0].mxu0
  %v860 = vpop.f32.mrb[0].mxu0
  %v861 = vadd.f32 %v764, %v860
  %v862 = vpop.f32.mrb[0].mxu0
  %863 = vdwg.mxu0
  %v864 = vtanh.pop %v802
  %v865 = vtanh.pop %v805
  %v866 = vtanh.pop %v810
  %v867 = vtanh.pop %v813
  %v868 = vtanh.pop %v818
  %v869 = vtanh.pop %v821
  %v870 = vtanh.pop %v826
  %v871 = vtanh.pop %v829
  %v872 = vtanh.pop %v834
  %v873 = vtanh.pop %v837
  %v874 = vtanh.pop %v842
  %v875 = vtanh.pop %v845
  %v876 = vtanh.pop %v850
  %v877 = vtanh.pop %v853
  %v878 = vtanh.pop %v858
  %v879 = vtanh.pop %v861
  %v880 = vpack.c.bf16 %v865, %v864
  %v881 = vpack.c.bf16 %v867, %v866
  %v882 = vpack.c.bf16 %v869, %v868
  %v883 = vpack.c.bf16 %v871, %v870
  %v884 = vpack.c.bf16 %v873, %v872
  %v885 = vpack.c.bf16 %v875, %v874
  %v886 = vpack.c.bf16 %v877, %v876
  %v887 = vpack.c.bf16 %v879, %v878
  %v896 = vunpack.c.l.b16 %v880
  %v897 = vunpack.c.h.b16 %v880
  %v898 = vunpack.c.l.b16 %v881
  %v899 = vunpack.c.h.b16 %v881
  %v900 = vunpack.c.l.b16 %v882
  %v901 = vunpack.c.h.b16 %v882
  %v902 = vunpack.c.l.b16 %v883
  %v903 = vunpack.c.h.b16 %v883
  %v904 = vunpack.c.l.b16 %v884
  %v905 = vunpack.c.h.b16 %v884
  %v906 = vunpack.c.l.b16 %v885
  %v907 = vunpack.c.h.b16 %v885
  %v908 = vunpack.c.l.b16 %v886
  %v909 = vunpack.c.h.b16 %v886
  %v910 = vunpack.c.l.b16 %v887
  %v911 = vunpack.c.h.b16 %v887
  %v912 = vpack.c.b16 %v896, %v896
  %v913 = vpack.c.b16 %v897, %v897
  %v914 = vpack.c.b16 %v898, %v898
  %v915 = vpack.c.b16 %v899, %v899
  %v916 = vpack.c.b16 %v900, %v900
  %v917 = vpack.c.b16 %v901, %v901
  %v918 = vpack.c.b16 %v902, %v902
  %v919 = vpack.c.b16 %v903, %v903
  %v920 = vpack.c.b16 %v904, %v904
  %v921 = vpack.c.b16 %v905, %v905
  %v922 = vpack.c.b16 %v906, %v906
  %v923 = vpack.c.b16 %v907, %v907
  %v924 = vpack.c.b16 %v908, %v908
  %v925 = vpack.c.b16 %v909, %v909
  %v926 = vpack.c.b16 %v910, %v910
  %v927 = vpack.c.b16 %v911, %v911
  %944 = vst [vmem:[%s2] sm:$0xf] %v912
  %945 = vst [vmem:[%s2 + $0x4] sm:$0xf] %v913
  %946 = vst [vmem:[%s2 + $0x8] sm:$0xf] %v914
  %947 = vst [vmem:[%s2 + $0xc] sm:$0xf] %v915
  %948 = vst [vmem:[%s2 + $0x10] sm:$0xf] %v916
  %949 = vst [vmem:[%s2 + $0x14] sm:$0xf] %v917
  %950 = vst [vmem:[%s2 + $0x18] sm:$0xf] %v918
  %951 = vst [vmem:[%s2 + $0x1c] sm:$0xf] %v919
  %952 = vst [vmem:[%s2 + $0x20] sm:$0xf] %v920
  %953 = vst [vmem:[%s2 + $0x24] sm:$0xf] %v921
  %954 = vst [vmem:[%s2 + $0x28] sm:$0xf] %v922
  %955 = vst [vmem:[%s2 + $0x2c] sm:$0xf] %v923
  %956 = vst [vmem:[%s2 + $0x30] sm:$0xf] %v924
  %957 = vst [vmem:[%s2 + $0x34] sm:$0xf] %v925
  %958 = vst [vmem:[%s2 + $0x38] sm:$0xf] %v926
  %959 = vst [vmem:[%s2 + $0x3c] sm:$0xf] %v927
  // Predicated region
  $region10: #{g22_forward.11} parent=0 // pred_check
    _
  $region11: #{g22_forward.11} parent=0 // pred_check_branch
    %961 = sbr.rel (0) target = $region13
  $region12: #{g22_forward.11} parent=0 // pred_region
    _
  $region13: #{g22_forward.11} parent=0 // pred_fallthru
    _
  // Predicated region
  $region14: #{g22_forward.11} parent=0 // pred_check
    _
  $region15: #{g22_forward.11} parent=0 // pred_check_branch
    %963 = sbr.rel (0) target = $region17
  $region16: #{g22_forward.11} parent=0 // pred_region
    _
  $region17: #{g22_forward.11} parent=0 // pred_fallthru
    _

</llo_original>
